<compile_context>
chip_gen: v7x
topology: tpu7x:2x2x1
jax: 0.10.0
libtpu: 0.0.40
codegen_flags: <defaults>
</compile_context>

<pallas_src>
import functools

import jax
import jax.numpy as jnp
from jax.experimental import pallas as pl
from jax.experimental.pallas import tpu as pltpu

BASE = 128
NODE_NUM = 192
IN_DIM = BASE + BASE + 2          # 258 (original module input width)
OUT_DIM = BASE                    # 128
N_LAYERS = 10

# MXU / lane friendly padded widths (all multiples of 128).
PAD_IN = 384                      # 258 -> 384
PAD_HID = 256                     # 192 -> 256


def _round_up(x, m):
    return (x + m - 1) // m * m


def _mlp_kernel(x_ref, w1_ref, b1_ref, wr_ref, br_ref, o_ref):
    # x_ref : (TB, 384)   bf16   (batch tile, zero-padded features)
    # w1_ref: (384, 256)  bf16   b1_ref: (1, 256)  f32
    # wr_ref: (9, 256, 256) bf16 br_ref: (9, 1, 256) f32
    # o_ref : (TB, 128)   f32

    # Layer 1 (ReLU): bf16 x bf16 -> f32 accumulate, f32 epilogue.
    y = jnp.dot(x_ref[...], w1_ref[...], preferred_element_type=jnp.float32)
    h = jnp.maximum(y + b1_ref[...], 0.0)

    # Layers 2..9 (ReLU) and the final output layer (no ReLU), fully unrolled.
    for i in range(N_LAYERS - 1):
        y = jnp.dot(h.astype(jnp.bfloat16), wr_ref[i],
                    preferred_element_type=jnp.float32)
        y = y + br_ref[i]
        h = jnp.maximum(y, 0.0) if i < N_LAYERS - 2 else y

    # Padded columns 128..255 of the last layer are exact zeros; drop them.
    o_ref[...] = h[:, :OUT_DIM].astype(o_ref.dtype)


def init_params(key):
    """PyTorch-Linear-style init U(-1/sqrt(fan_in), 1/sqrt(fan_in)).

    Weights stored [in_features, out_features] (transpose of torch) in f32.
    """
    dims = [(IN_DIM, NODE_NUM)] + [(NODE_NUM, NODE_NUM)] * 8 + [(NODE_NUM, OUT_DIM)]
    params = []
    for i, (fan_in, fan_out) in enumerate(dims):
        kw, kb = jax.random.split(jax.random.fold_in(key, i))
        bound = 1.0 / (fan_in ** 0.5)
        w = jax.random.uniform(kw, (fan_in, fan_out), jnp.float32, -bound, bound)
        b = jax.random.uniform(kb, (1, fan_out), jnp.float32, -bound, bound)
        params.append((w, b))
    return params


def pack_params(params):
    """Zero-pad every layer to 128-multiples, cast weights to bf16, and pack
    layers 2..10 into single stacked tensors (4 kernel inputs total)."""
    w1, b1 = params[0]
    w1p = jnp.zeros((PAD_IN, PAD_HID), jnp.bfloat16)
    w1p = w1p.at[:IN_DIM, :NODE_NUM].set(w1.astype(jnp.bfloat16))
    b1p = jnp.zeros((1, PAD_HID), jnp.float32).at[:, :NODE_NUM].set(b1)

    wr, br = [], []
    for w, b in params[1:]:
        wp = jnp.zeros((PAD_HID, PAD_HID), jnp.bfloat16)
        wp = wp.at[:w.shape[0], :w.shape[1]].set(w.astype(jnp.bfloat16))
        bp = jnp.zeros((1, PAD_HID), jnp.float32).at[:, :b.shape[1]].set(b)
        wr.append(wp)
        br.append(bp)
    return w1p, b1p, jnp.stack(wr), jnp.stack(br)


@functools.partial(jax.jit, static_argnames=("block_b",))
def network_forward(x, packed, block_b=256):
    w1p, b1p, wrp, brp = packed
    batch = x.shape[0]

    # Batch tile: multiple of 8 sublanes, no bigger than the (padded) batch.
    tb = min(_round_up(block_b, 8), _round_up(batch, 8))
    bp = _round_up(batch, tb)

    # Pad features 258 -> 384, batch -> multiple of tb; cast to bf16 for the MXU.
    xp = jnp.zeros((bp, PAD_IN), jnp.bfloat16)
    xp = xp.at[:batch, :IN_DIM].set(x.astype(jnp.bfloat16))

    out = pl.pallas_call(
        _mlp_kernel,
        out_shape=jax.ShapeDtypeStruct((bp, OUT_DIM), jnp.float32),
        grid_spec=pltpu.PrefetchScalarGridSpec(
            num_scalar_prefetch=0,
            grid=(bp // tb,),
            in_specs=[
                pl.BlockSpec((tb, PAD_IN), lambda i: (i, 0)),               # x tile
                pl.BlockSpec((PAD_IN, PAD_HID), lambda i: (0, 0)),          # w1 (resident)
                pl.BlockSpec((1, PAD_HID), lambda i: (0, 0)),               # b1 (resident)
                pl.BlockSpec((N_LAYERS - 1, PAD_HID, PAD_HID),
                             lambda i: (0, 0, 0)),                          # w2..w10 packed
                pl.BlockSpec((N_LAYERS - 1, 1, PAD_HID),
                             lambda i: (0, 0, 0)),                          # b2..b10 packed
            ],
            out_specs=pl.BlockSpec((tb, OUT_DIM), lambda i: (i, 0)),
        ),
        compiler_params=pltpu.CompilerParams(
            dimension_semantics=("parallel",),
        ),
    )(xp, w1p, b1p, wrp, brp)
    return out[:batch]


def reference_forward(x, params):
    """Pure-JAX reference matching the kernel's numerics
    (bf16 operands, f32 accumulation, f32 bias+ReLU)."""
    h = x
    for i, (w, b) in enumerate(params):
        y = jnp.dot(h.astype(jnp.bfloat16), w.astype(jnp.bfloat16),
                    preferred_element_type=jnp.float32) + b
        h = jnp.maximum(y, 0.0) if i < len(params) - 1 else y
    return h


if __name__ == "__main__":
    key = jax.random.PRNGKey(0)
    kx, kp = jax.random.split(key)

    batch = 256
    x = jax.random.normal(kx, (batch, IN_DIM), jnp.float32)
    params = init_params(kp)
    packed = pack_params(params)

    out = network_forward(x, packed, block_b=128)   # grid of 2 batch tiles
    out = jax.block_until_ready(out)

    ref = reference_forward(x, params)
    assert out.shape == (batch, OUT_DIM), out.shape
    max_err = float(jnp.max(jnp.abs(out - ref)))
    assert jnp.allclose(out, ref, atol=2e-3, rtol=2e-3), max_err

    print("KERNEL_OK")
</pallas_src>

<mosaic_0001>
module attributes {stable_mosaic.version = 11 : i64} {
  func.func @_mlp_kernel(%arg0: i32, %arg1: memref<128x384xbf16, #tpu.memory_space<vmem>>, %arg2: memref<384x256xbf16, #tpu.memory_space<vmem>>, %arg3: memref<1x256xf32, #tpu.memory_space<vmem>>, %arg4: memref<9x256x256xbf16, #tpu.memory_space<vmem>>, %arg5: memref<9x1x256xf32, #tpu.memory_space<vmem>>, %arg6: memref<128x128xf32, #tpu.memory_space<vmem>>) attributes {dimension_semantics = [#tpu.dimension_semantics<parallel>], iteration_bounds = array<i64: 2>, scalar_prefetch = 0 : i64, scratch_operands = 0 : i64, tpu.core_type = #tpu.core_type<tc>, window_params = [{transform_indices = @transform_0, window_bounds = array<i64: 128, 384>}, {pipeline_mode = #tpu.pipeline_mode<synchronous>, transform_indices = @transform_1, window_bounds = array<i64: 384, 256>}, {pipeline_mode = #tpu.pipeline_mode<synchronous>, transform_indices = @transform_2, window_bounds = array<i64: 1, 256>}, {pipeline_mode = #tpu.pipeline_mode<synchronous>, transform_indices = @transform_3, window_bounds = array<i64: 9, 256, 256>}, {pipeline_mode = #tpu.pipeline_mode<synchronous>, transform_indices = @transform_4, window_bounds = array<i64: 9, 1, 256>}, {transform_indices = @transform_5, window_bounds = array<i64: 128, 128>}]} {
    %c0 = arith.constant 0 : index
    %c0_0 = arith.constant 0 : index
    %0 = vector.load %arg1[%c0, %c0_0] : memref<128x384xbf16, #tpu.memory_space<vmem>>, vector<128x384xbf16>
    %c0_1 = arith.constant 0 : index
    %c0_2 = arith.constant 0 : index
    %1 = vector.load %arg2[%c0_1, %c0_2] : memref<384x256xbf16, #tpu.memory_space<vmem>>, vector<384x256xbf16>
    %cst = arith.constant dense<0.000000e+00> : vector<128x256xf32>
    %2 = tpu.matmul %0, %1, %cst {dimension_numbers = #tpu.dot_dimension_numbers<[1], [0], [0], [1], [0, 0, 1, 1], [], []>} : vector<128x384xbf16>, vector<384x256xbf16>, vector<128x256xf32> -> vector<128x256xf32>
    %c0_3 = arith.constant 0 : index
    %c0_4 = arith.constant 0 : index
    %3 = vector.load %arg3[%c0_3, %c0_4] : memref<1x256xf32, #tpu.memory_space<vmem>>, vector<1x256xf32>
    %4 = vector.broadcast %3 : vector<1x256xf32> to vector<128x256xf32>
    %5 = arith.addf %2, %4 : vector<128x256xf32>
    %cst_5 = arith.constant 0.000000e+00 : f32
    %6 = vector.broadcast %cst_5 : f32 to vector<128x256xf32>
    %7 = arith.maximumf %5, %6 : vector<128x256xf32>
    %8 = arith.truncf %7 : vector<128x256xf32> to vector<128x256xbf16>
    %c0_6 = arith.constant 0 : index
    %c0_7 = arith.constant 0 : index
    %c0_8 = arith.constant 0 : index
    %9 = vector.load %arg4[%c0_6, %c0_7, %c0_8] : memref<9x256x256xbf16, #tpu.memory_space<vmem>>, vector<1x256x256xbf16>
    %10 = vector.shape_cast %9 : vector<1x256x256xbf16> to vector<256x256xbf16>
    %cst_9 = arith.constant dense<0.000000e+00> : vector<128x256xf32>
    %11 = tpu.matmul %8, %10, %cst_9 {dimension_numbers = #tpu.dot_dimension_numbers<[1], [0], [0], [1], [0, 0, 1, 1], [], []>} : vector<128x256xbf16>, vector<256x256xbf16>, vector<128x256xf32> -> vector<128x256xf32>
    %c0_10 = arith.constant 0 : index
    %c0_11 = arith.constant 0 : index
    %c0_12 = arith.constant 0 : index
    %12 = vector.load %arg5[%c0_10, %c0_11, %c0_12] : memref<9x1x256xf32, #tpu.memory_space<vmem>>, vector<1x1x256xf32>
    %13 = vector.shape_cast %12 : vector<1x1x256xf32> to vector<1x256xf32>
    %14 = vector.broadcast %13 : vector<1x256xf32> to vector<128x256xf32>
    %15 = arith.addf %11, %14 : vector<128x256xf32>
    %cst_13 = arith.constant 0.000000e+00 : f32
    %16 = vector.broadcast %cst_13 : f32 to vector<128x256xf32>
    %17 = arith.maximumf %15, %16 : vector<128x256xf32>
    %18 = arith.truncf %17 : vector<128x256xf32> to vector<128x256xbf16>
    %c1 = arith.constant 1 : index
    %c0_14 = arith.constant 0 : index
    %c0_15 = arith.constant 0 : index
    %19 = vector.load %arg4[%c1, %c0_14, %c0_15] : memref<9x256x256xbf16, #tpu.memory_space<vmem>>, vector<1x256x256xbf16>
    %20 = vector.shape_cast %19 : vector<1x256x256xbf16> to vector<256x256xbf16>
    %cst_16 = arith.constant dense<0.000000e+00> : vector<128x256xf32>
    %21 = tpu.matmul %18, %20, %cst_16 {dimension_numbers = #tpu.dot_dimension_numbers<[1], [0], [0], [1], [0, 0, 1, 1], [], []>} : vector<128x256xbf16>, vector<256x256xbf16>, vector<128x256xf32> -> vector<128x256xf32>
    %c1_17 = arith.constant 1 : index
    %c0_18 = arith.constant 0 : index
    %c0_19 = arith.constant 0 : index
    %22 = vector.load %arg5[%c1_17, %c0_18, %c0_19] : memref<9x1x256xf32, #tpu.memory_space<vmem>>, vector<1x1x256xf32>
    %23 = vector.shape_cast %22 : vector<1x1x256xf32> to vector<1x256xf32>
    %24 = vector.broadcast %23 : vector<1x256xf32> to vector<128x256xf32>
    %25 = arith.addf %21, %24 : vector<128x256xf32>
    %cst_20 = arith.constant 0.000000e+00 : f32
    %26 = vector.broadcast %cst_20 : f32 to vector<128x256xf32>
    %27 = arith.maximumf %25, %26 : vector<128x256xf32>
    %28 = arith.truncf %27 : vector<128x256xf32> to vector<128x256xbf16>
    %c2 = arith.constant 2 : index
    %c0_21 = arith.constant 0 : index
    %c0_22 = arith.constant 0 : index
    %29 = vector.load %arg4[%c2, %c0_21, %c0_22] : memref<9x256x256xbf16, #tpu.memory_space<vmem>>, vector<1x256x256xbf16>
    %30 = vector.shape_cast %29 : vector<1x256x256xbf16> to vector<256x256xbf16>
    %cst_23 = arith.constant dense<0.000000e+00> : vector<128x256xf32>
    %31 = tpu.matmul %28, %30, %cst_23 {dimension_numbers = #tpu.dot_dimension_numbers<[1], [0], [0], [1], [0, 0, 1, 1], [], []>} : vector<128x256xbf16>, vector<256x256xbf16>, vector<128x256xf32> -> vector<128x256xf32>
    %c2_24 = arith.constant 2 : index
    %c0_25 = arith.constant 0 : index
    %c0_26 = arith.constant 0 : index
    %32 = vector.load %arg5[%c2_24, %c0_25, %c0_26] : memref<9x1x256xf32, #tpu.memory_space<vmem>>, vector<1x1x256xf32>
    %33 = vector.shape_cast %32 : vector<1x1x256xf32> to vector<1x256xf32>
    %34 = vector.broadcast %33 : vector<1x256xf32> to vector<128x256xf32>
    %35 = arith.addf %31, %34 : vector<128x256xf32>
    %cst_27 = arith.constant 0.000000e+00 : f32
    %36 = vector.broadcast %cst_27 : f32 to vector<128x256xf32>
    %37 = arith.maximumf %35, %36 : vector<128x256xf32>
    %38 = arith.truncf %37 : vector<128x256xf32> to vector<128x256xbf16>
    %c3 = arith.constant 3 : index
    %c0_28 = arith.constant 0 : index
    %c0_29 = arith.constant 0 : index
    %39 = vector.load %arg4[%c3, %c0_28, %c0_29] : memref<9x256x256xbf16, #tpu.memory_space<vmem>>, vector<1x256x256xbf16>
    %40 = vector.shape_cast %39 : vector<1x256x256xbf16> to vector<256x256xbf16>
    %cst_30 = arith.constant dense<0.000000e+00> : vector<128x256xf32>
    %41 = tpu.matmul %38, %40, %cst_30 {dimension_numbers = #tpu.dot_dimension_numbers<[1], [0], [0], [1], [0, 0, 1, 1], [], []>} : vector<128x256xbf16>, vector<256x256xbf16>, vector<128x256xf32> -> vector<128x256xf32>
    %c3_31 = arith.constant 3 : index
    %c0_32 = arith.constant 0 : index
    %c0_33 = arith.constant 0 : index
    %42 = vector.load %arg5[%c3_31, %c0_32, %c0_33] : memref<9x1x256xf32, #tpu.memory_space<vmem>>, vector<1x1x256xf32>
    %43 = vector.shape_cast %42 : vector<1x1x256xf32> to vector<1x256xf32>
    %44 = vector.broadcast %43 : vector<1x256xf32> to vector<128x256xf32>
    %45 = arith.addf %41, %44 : vector<128x256xf32>
    %cst_34 = arith.constant 0.000000e+00 : f32
    %46 = vector.broadcast %cst_34 : f32 to vector<128x256xf32>
    %47 = arith.maximumf %45, %46 : vector<128x256xf32>
    %48 = arith.truncf %47 : vector<128x256xf32> to vector<128x256xbf16>
    %c4 = arith.constant 4 : index
    %c0_35 = arith.constant 0 : index
    %c0_36 = arith.constant 0 : index
    %49 = vector.load %arg4[%c4, %c0_35, %c0_36] : memref<9x256x256xbf16, #tpu.memory_space<vmem>>, vector<1x256x256xbf16>
    %50 = vector.shape_cast %49 : vector<1x256x256xbf16> to vector<256x256xbf16>
    %cst_37 = arith.constant dense<0.000000e+00> : vector<128x256xf32>
    %51 = tpu.matmul %48, %50, %cst_37 {dimension_numbers = #tpu.dot_dimension_numbers<[1], [0], [0], [1], [0, 0, 1, 1], [], []>} : vector<128x256xbf16>, vector<256x256xbf16>, vector<128x256xf32> -> vector<128x256xf32>
    %c4_38 = arith.constant 4 : index
    %c0_39 = arith.constant 0 : index
    %c0_40 = arith.constant 0 : index
    %52 = vector.load %arg5[%c4_38, %c0_39, %c0_40] : memref<9x1x256xf32, #tpu.memory_space<vmem>>, vector<1x1x256xf32>
    %53 = vector.shape_cast %52 : vector<1x1x256xf32> to vector<1x256xf32>
    %54 = vector.broadcast %53 : vector<1x256xf32> to vector<128x256xf32>
    %55 = arith.addf %51, %54 : vector<128x256xf32>
    %cst_41 = arith.constant 0.000000e+00 : f32
    %56 = vector.broadcast %cst_41 : f32 to vector<128x256xf32>
    %57 = arith.maximumf %55, %56 : vector<128x256xf32>
    %58 = arith.truncf %57 : vector<128x256xf32> to vector<128x256xbf16>
    %c5 = arith.constant 5 : index
    %c0_42 = arith.constant 0 : index
    %c0_43 = arith.constant 0 : index
    %59 = vector.load %arg4[%c5, %c0_42, %c0_43] : memref<9x256x256xbf16, #tpu.memory_space<vmem>>, vector<1x256x256xbf16>
    %60 = vector.shape_cast %59 : vector<1x256x256xbf16> to vector<256x256xbf16>
    %cst_44 = arith.constant dense<0.000000e+00> : vector<128x256xf32>
    %61 = tpu.matmul %58, %60, %cst_44 {dimension_numbers = #tpu.dot_dimension_numbers<[1], [0], [0], [1], [0, 0, 1, 1], [], []>} : vector<128x256xbf16>, vector<256x256xbf16>, vector<128x256xf32> -> vector<128x256xf32>
    %c5_45 = arith.constant 5 : index
    %c0_46 = arith.constant 0 : index
    %c0_47 = arith.constant 0 : index
    %62 = vector.load %arg5[%c5_45, %c0_46, %c0_47] : memref<9x1x256xf32, #tpu.memory_space<vmem>>, vector<1x1x256xf32>
    %63 = vector.shape_cast %62 : vector<1x1x256xf32> to vector<1x256xf32>
    %64 = vector.broadcast %63 : vector<1x256xf32> to vector<128x256xf32>
    %65 = arith.addf %61, %64 : vector<128x256xf32>
    %cst_48 = arith.constant 0.000000e+00 : f32
    %66 = vector.broadcast %cst_48 : f32 to vector<128x256xf32>
    %67 = arith.maximumf %65, %66 : vector<128x256xf32>
    %68 = arith.truncf %67 : vector<128x256xf32> to vector<128x256xbf16>
    %c6 = arith.constant 6 : index
    %c0_49 = arith.constant 0 : index
    %c0_50 = arith.constant 0 : index
    %69 = vector.load %arg4[%c6, %c0_49, %c0_50] : memref<9x256x256xbf16, #tpu.memory_space<vmem>>, vector<1x256x256xbf16>
    %70 = vector.shape_cast %69 : vector<1x256x256xbf16> to vector<256x256xbf16>
    %cst_51 = arith.constant dense<0.000000e+00> : vector<128x256xf32>
    %71 = tpu.matmul %68, %70, %cst_51 {dimension_numbers = #tpu.dot_dimension_numbers<[1], [0], [0], [1], [0, 0, 1, 1], [], []>} : vector<128x256xbf16>, vector<256x256xbf16>, vector<128x256xf32> -> vector<128x256xf32>
    %c6_52 = arith.constant 6 : index
    %c0_53 = arith.constant 0 : index
    %c0_54 = arith.constant 0 : index
    %72 = vector.load %arg5[%c6_52, %c0_53, %c0_54] : memref<9x1x256xf32, #tpu.memory_space<vmem>>, vector<1x1x256xf32>
    %73 = vector.shape_cast %72 : vector<1x1x256xf32> to vector<1x256xf32>
    %74 = vector.broadcast %73 : vector<1x256xf32> to vector<128x256xf32>
    %75 = arith.addf %71, %74 : vector<128x256xf32>
    %cst_55 = arith.constant 0.000000e+00 : f32
    %76 = vector.broadcast %cst_55 : f32 to vector<128x256xf32>
    %77 = arith.maximumf %75, %76 : vector<128x256xf32>
    %78 = arith.truncf %77 : vector<128x256xf32> to vector<128x256xbf16>
    %c7 = arith.constant 7 : index
    %c0_56 = arith.constant 0 : index
    %c0_57 = arith.constant 0 : index
    %79 = vector.load %arg4[%c7, %c0_56, %c0_57] : memref<9x256x256xbf16, #tpu.memory_space<vmem>>, vector<1x256x256xbf16>
    %80 = vector.shape_cast %79 : vector<1x256x256xbf16> to vector<256x256xbf16>
    %cst_58 = arith.constant dense<0.000000e+00> : vector<128x256xf32>
    %81 = tpu.matmul %78, %80, %cst_58 {dimension_numbers = #tpu.dot_dimension_numbers<[1], [0], [0], [1], [0, 0, 1, 1], [], []>} : vector<128x256xbf16>, vector<256x256xbf16>, vector<128x256xf32> -> vector<128x256xf32>
    %c7_59 = arith.constant 7 : index
    %c0_60 = arith.constant 0 : index
    %c0_61 = arith.constant 0 : index
    %82 = vector.load %arg5[%c7_59, %c0_60, %c0_61] : memref<9x1x256xf32, #tpu.memory_space<vmem>>, vector<1x1x256xf32>
    %83 = vector.shape_cast %82 : vector<1x1x256xf32> to vector<1x256xf32>
    %84 = vector.broadcast %83 : vector<1x256xf32> to vector<128x256xf32>
    %85 = arith.addf %81, %84 : vector<128x256xf32>
    %cst_62 = arith.constant 0.000000e+00 : f32
    %86 = vector.broadcast %cst_62 : f32 to vector<128x256xf32>
    %87 = arith.maximumf %85, %86 : vector<128x256xf32>
    %88 = arith.truncf %87 : vector<128x256xf32> to vector<128x256xbf16>
    %c8 = arith.constant 8 : index
    %c0_63 = arith.constant 0 : index
    %c0_64 = arith.constant 0 : index
    %89 = vector.load %arg4[%c8, %c0_63, %c0_64] : memref<9x256x256xbf16, #tpu.memory_space<vmem>>, vector<1x256x256xbf16>
    %90 = vector.shape_cast %89 : vector<1x256x256xbf16> to vector<256x256xbf16>
    %cst_65 = arith.constant dense<0.000000e+00> : vector<128x256xf32>
    %91 = tpu.matmul %88, %90, %cst_65 {dimension_numbers = #tpu.dot_dimension_numbers<[1], [0], [0], [1], [0, 0, 1, 1], [], []>} : vector<128x256xbf16>, vector<256x256xbf16>, vector<128x256xf32> -> vector<128x256xf32>
    %c8_66 = arith.constant 8 : index
    %c0_67 = arith.constant 0 : index
    %c0_68 = arith.constant 0 : index
    %92 = vector.load %arg5[%c8_66, %c0_67, %c0_68] : memref<9x1x256xf32, #tpu.memory_space<vmem>>, vector<1x1x256xf32>
    %93 = vector.shape_cast %92 : vector<1x1x256xf32> to vector<1x256xf32>
    %94 = vector.broadcast %93 : vector<1x256xf32> to vector<128x256xf32>
    %95 = arith.addf %91, %94 : vector<128x256xf32>
    %96 = vector.extract_strided_slice %95 {offsets = [0, 0], sizes = [128, 128], strides = [1, 1]} : vector<128x256xf32> to vector<128x128xf32>
    %c0_69 = arith.constant 0 : index
    %c0_70 = arith.constant 0 : index
    %97 = vector.load %arg6[%c0_69, %c0_70] : memref<128x128xf32, #tpu.memory_space<vmem>>, vector<128x128xf32>
    tpu.vector_store %arg6[%c0_69, %c0_70], %96 {strides = array<i32>} : memref<128x128xf32, #tpu.memory_space<vmem>>, vector<128x128xf32>,
    return
  }
  func.func @transform_0(%arg0: i32) -> (i32, i32) {
    %c0_i32 = arith.constant 0 : i32
    %c0_i32_0 = arith.constant 0 : i32
    return %arg0, %c0_i32 : i32, i32
  }
  func.func @transform_1(%arg0: i32) -> (i32, i32) {
    %c0_i32 = arith.constant 0 : i32
    %c0_i32_0 = arith.constant 0 : i32
    %c0_i32_1 = arith.constant 0 : i32
    return %c0_i32, %c0_i32_0 : i32, i32
  }
  func.func @transform_2(%arg0: i32) -> (i32, i32) {
    %c0_i32 = arith.constant 0 : i32
    %c0_i32_0 = arith.constant 0 : i32
    %c0_i32_1 = arith.constant 0 : i32
    return %c0_i32, %c0_i32_0 : i32, i32
  }
  func.func @transform_3(%arg0: i32) -> (i32, i32, i32) {
    %c0_i32 = arith.constant 0 : i32
    %c0_i32_0 = arith.constant 0 : i32
    %c0_i32_1 = arith.constant 0 : i32
    %c0_i32_2 = arith.constant 0 : i32
    return %c0_i32, %c0_i32_0, %c0_i32_1 : i32, i32, i32
  }
  func.func @transform_4(%arg0: i32) -> (i32, i32, i32) {
    %c0_i32 = arith.constant 0 : i32
    %c0_i32_0 = arith.constant 0 : i32
    %c0_i32_1 = arith.constant 0 : i32
    %c0_i32_2 = arith.constant 0 : i32
    return %c0_i32, %c0_i32_0, %c0_i32_1 : i32, i32, i32
  }
  func.func @transform_5(%arg0: i32) -> (i32, i32) {
    %c0_i32 = arith.constant 0 : i32
    %c0_i32_0 = arith.constant 0 : i32
    return %arg0, %c0_i32 : i32, i32
  }
}

</mosaic_0001>

<llo_original>
// kernel: network_forward.1
$region0: #{network_forward.1}
  #allocation0 [shape = 'u32[]', space=smem, size = 0x4, offset = 0x4, fixed_abs, tag = 'smem constant byte address 0x4 - core index']
  #allocation1 [shape = 'u32[144,128]{1,0:T(1,128)}', space=vmem, size = 0x12000, scoped, tag = 'internal scratch']
  %s0 = inlined_call_operand.vmem [shape: bf16[256,384], index: 0, kind: input, shape index: {}]
  %s1 = inlined_call_operand.hbm [shape: bf16[384,256], index: 1, kind: input, shape index: {}]
  %s2 = inlined_call_operand.vmem [shape: f32[1,256], index: 2, kind: input, shape index: {}]
  %s3 = inlined_call_operand.vmem [shape: bf16[9,256,256], index: 3, kind: input, shape index: {}]
  %s4 = inlined_call_operand.vmem [shape: f32[9,1,256], index: 4, kind: input, shape index: {}]
  %s5 = inlined_call_operand.hbm [shape: f32[256,128], index: 5, kind: output, shape index: {}]
  %s6 = sld [smem:[#allocation0]]
  $region57: #{network_forward.1} parent=0
    _
  %s8 = ssub.s32 1, %s6
  %s9 = scalar_select 0, %s8, %s6
  $region1: #{network_forward.1} parent=0
    #allocation2 [shape = 'u8[196608]{0}', space=vmem, size = 0x30000, scoped, tag = 'input window, operand 1, single buffered']
    #allocation3 [shape = 's32[2]{0}', space=sflag, size = 0x8, scoped, tag = 'scoped memory for network_forward.1']
    #allocation4 [shape = 's32[2]{0}', space=sflag, size = 0x8, scoped, tag = 'scoped memory for network_forward.1']
    #allocation5 [shape = 'u8[131072]{0}', space=vmem, size = 0x20000, scoped, tag = 'output window, operand 0']
    %10 = vsyncpa [#allocation3], 0
    %11 = vsyncpa [#allocation4], 0
    %s12 = scalar_lea.sflag [#allocation4], 1
    %13 = vsyncpa %s12, 0
    loop: start=0, step=1, limit=4
    $region2: #{network_forward.1} parent=1 // loop_pre_header
      _
    $region3: #{network_forward.1} parent=1 // loop_header
      %s15 = sphi 0, %s19
      %p16 = scmp.ge.s32.totalorder %s15, 4
      %s25 = sphi 0, %s27
      %s28 = sphi 0, %s25
      %s29 = sphi 0, %s28
      %s45 = sphi 0, %s29
      %s49 = sphi 0, %s49
      %s51 = sphi 0, %s49
      %s52 = sphi 0, %s51
      %s66 = sphi 0, %s52
      %s70 = sphi 0, %s70
      %s72 = sphi 0, %s70
      %s73 = sphi 0, %s72
      %s87 = sphi 0, %s73
      %s91 = sphi 0, %s91
      %s93 = sphi 0, %s91
      %s94 = sphi 0, %s93
      %s108 = sphi 0, %s94
      %s112 = sphi 0, %s112
      %s114 = sphi 0, %s112
      %s115 = sphi 0, %s114
      %s129 = sphi 0, %s115
      %s135 = sphi 0, %s137
      %s138 = sphi 0, %s135
      %s139 = sphi 0, %s138
      %s155 = sphi 0, %s139
    $region4: #{network_forward.1} parent=1 // loop_header_branch
      %18 = sbr.rel (%p16) target = $region8
    $region5: #{network_forward.1} parent=1 // loop_body
      %s20 = ssub.s32 %s15, 1
      %s21 = ssub.s32 %s15, 2
      %s22 = sadd.s32 %s15, 1
      %s23 = ssub.s32 %s15, %s22
      %p24 = scmp.eq.s32.totalorder %s23, 0
      %s26 = sadd.s32 %s25, 1
      %s27 = scalar_select %p24, %s25, %s26
      %p30 = pneg %p24
      %p31 = scmp.eq.s32.totalorder %s15, 1
      %p32 = por %p30, %p31
      %p33 = scmp.ne.s32.totalorder %s25, %s28
      %p34 = scmp.eq.s32.totalorder %s15, 0
      %p35 = por %p33, %p34
      %p36 = scmp.ne.s32.totalorder %s25, %s28
      %p37 = scmp.eq.s32.totalorder %s20, 1
      %p38 = por %p36, %p37
      %p39 = scmp.ne.s32.totalorder %s28, %s29
      %p40 = scmp.eq.s32.totalorder %s20, 0
      %p41 = por %p39, %p40
      %p42 = scmp.ne.s32.totalorder %s28, %s29
      %p43 = scmp.eq.s32.totalorder %s21, 1
      %p44 = por %p42, %p43
      %p46 = scmp.ne.s32.totalorder %s29, %s45
      %p47 = scmp.eq.s32.totalorder %s21, 0
      %p48 = por %p46, %p47
      %s50 = sadd.s32 %s49, 1
      %p53 = scmp.eq.s32.totalorder %s15, 1
      %p54 = scmp.ne.s32.totalorder %s49, %s51
      %p55 = scmp.eq.s32.totalorder %s15, 0
      %p56 = por %p54, %p55
      %p57 = scmp.ne.s32.totalorder %s49, %s51
      %p58 = scmp.eq.s32.totalorder %s20, 1
      %p59 = por %p57, %p58
      %p60 = scmp.ne.s32.totalorder %s51, %s52
      %p61 = scmp.eq.s32.totalorder %s20, 0
      %p62 = por %p60, %p61
      %p63 = scmp.ne.s32.totalorder %s51, %s52
      %p64 = scmp.eq.s32.totalorder %s21, 1
      %p65 = por %p63, %p64
      %p67 = scmp.ne.s32.totalorder %s52, %s66
      %p68 = scmp.eq.s32.totalorder %s21, 0
      %p69 = por %p67, %p68
      %s71 = sadd.s32 %s70, 1
      %p74 = scmp.eq.s32.totalorder %s15, 1
      %p75 = scmp.ne.s32.totalorder %s70, %s72
      %p76 = scmp.eq.s32.totalorder %s15, 0
      %p77 = por %p75, %p76
      %p78 = scmp.ne.s32.totalorder %s70, %s72
      %p79 = scmp.eq.s32.totalorder %s20, 1
      %p80 = por %p78, %p79
      %p81 = scmp.ne.s32.totalorder %s72, %s73
      %p82 = scmp.eq.s32.totalorder %s20, 0
      %p83 = por %p81, %p82
      %p84 = scmp.ne.s32.totalorder %s72, %s73
      %p85 = scmp.eq.s32.totalorder %s21, 1
      %p86 = por %p84, %p85
      %p88 = scmp.ne.s32.totalorder %s73, %s87
      %p89 = scmp.eq.s32.totalorder %s21, 0
      %p90 = por %p88, %p89
      %s92 = sadd.s32 %s91, 1
      %p95 = scmp.eq.s32.totalorder %s15, 1
      %p96 = scmp.ne.s32.totalorder %s91, %s93
      %p97 = scmp.eq.s32.totalorder %s15, 0
      %p98 = por %p96, %p97
      %p99 = scmp.ne.s32.totalorder %s91, %s93
      %p100 = scmp.eq.s32.totalorder %s20, 1
      %p101 = por %p99, %p100
      %p102 = scmp.ne.s32.totalorder %s93, %s94
      %p103 = scmp.eq.s32.totalorder %s20, 0
      %p104 = por %p102, %p103
      %p105 = scmp.ne.s32.totalorder %s93, %s94
      %p106 = scmp.eq.s32.totalorder %s21, 1
      %p107 = por %p105, %p106
      %p109 = scmp.ne.s32.totalorder %s94, %s108
      %p110 = scmp.eq.s32.totalorder %s21, 0
      %p111 = por %p109, %p110
      %s113 = sadd.s32 %s112, 1
      %p116 = scmp.eq.s32.totalorder %s15, 1
      %p117 = scmp.ne.s32.totalorder %s112, %s114
      %p118 = scmp.eq.s32.totalorder %s15, 0
      %p119 = por %p117, %p118
      %p120 = scmp.ne.s32.totalorder %s112, %s114
      %p121 = scmp.eq.s32.totalorder %s20, 1
      %p122 = por %p120, %p121
      %p123 = scmp.ne.s32.totalorder %s114, %s115
      %p124 = scmp.eq.s32.totalorder %s20, 0
      %p125 = por %p123, %p124
      %p126 = scmp.ne.s32.totalorder %s114, %s115
      %p127 = scmp.eq.s32.totalorder %s21, 1
      %p128 = por %p126, %p127
      %p130 = scmp.ne.s32.totalorder %s115, %s129
      %p131 = scmp.eq.s32.totalorder %s21, 0
      %p132 = por %p130, %p131
      %s133 = ssub.s32 %s15, %s22
      %p134 = scmp.eq.s32.totalorder %s133, 0
      %s136 = sadd.s32 %s135, 1
      %s137 = scalar_select %p134, %s135, %s136
      %p140 = pneg %p134
      %p141 = scmp.eq.s32.totalorder %s15, 1
      %p142 = por %p140, %p141
      %p143 = scmp.ne.s32.totalorder %s135, %s138
      %p144 = scmp.eq.s32.totalorder %s15, 0
      %p145 = por %p143, %p144
      %p146 = scmp.ne.s32.totalorder %s135, %s138
      %p147 = scmp.eq.s32.totalorder %s20, 1
      %p148 = por %p146, %p147
      %p149 = scmp.ne.s32.totalorder %s138, %s139
      %p150 = scmp.eq.s32.totalorder %s20, 0
      %p151 = por %p149, %p150
      %p152 = scmp.ne.s32.totalorder %s138, %s139
      %p153 = scmp.eq.s32.totalorder %s21, 1
      %p154 = por %p152, %p153
      %p156 = scmp.ne.s32.totalorder %s139, %s155
      %p157 = scmp.eq.s32.totalorder %s21, 0
      %p158 = por %p156, %p157
      %p159 = scmp.le.s32.totalorder 1, %s15
      %p160 = scmp.lt.s32.totalorder %s15, 3
      %p161 = pnand %p159, %p160
      %p162 = pneg %p161
      // Predicated region
      $region9: #{network_forward.1} parent=5 // pred_check
        _
      $region10: #{network_forward.1} parent=5 // pred_check_branch
        %164 = sbr.rel (%p161) target = $region12
      $region11: #{network_forward.1} parent=5 // pred_region
        %s165 = ssub.s32 %s15, 1
        // Predicated region
        $region13: #{network_forward.1} parent=11 // pred_check
          %p166 = pneg %p62
        $region14: #{network_forward.1} parent=11 // pred_check_branch
          %168 = sbr.rel (%p166) target = $region16
        $region15: #{network_forward.1} parent=11 // pred_region
          %s170 = ssub.s32 6144, 6144
          %171 = vsyncadd [#allocation3], %s170
          %s172 = sshll.u32 [#allocation2], 4
          %s173 = int_to_ptr.vmem [resolvable:$true] %s172
          %178 = dma.hbm_to_vmem [thread:$0]  %s1, 6144, %s173, [#allocation3], 128, 128, 8
        $region16: #{network_forward.1} parent=11 // pred_fallthru
          _
        // Predicated region
        $region17: #{network_forward.1} parent=11 // pred_check
          %p179 = pneg %p83
        $region18: #{network_forward.1} parent=11 // pred_check_branch
          %181 = sbr.rel (%p179) target = $region20
        $region19: #{network_forward.1} parent=11 // pred_region
          _
        $region20: #{network_forward.1} parent=11 // pred_fallthru
          _
        // Predicated region
        $region21: #{network_forward.1} parent=11 // pred_check
          %p182 = pneg %p104
        $region22: #{network_forward.1} parent=11 // pred_check_branch
          %184 = sbr.rel (%p182) target = $region24
        $region23: #{network_forward.1} parent=11 // pred_region
          _
        $region24: #{network_forward.1} parent=11 // pred_fallthru
          _
        // Predicated region
        $region25: #{network_forward.1} parent=11 // pred_check
          %p185 = pneg %p125
        $region26: #{network_forward.1} parent=11 // pred_check_branch
          %187 = sbr.rel (%p185) target = $region28
        $region27: #{network_forward.1} parent=11 // pred_region
          _
        $region28: #{network_forward.1} parent=11 // pred_fallthru
          _
      $region12: #{network_forward.1} parent=5 // pred_fallthru
        _
      %p188 = scmp.lt.s32.totalorder %s15, 2
      // Predicated region
      $region29: #{network_forward.1} parent=5 // pred_check
        %p189 = pneg %p188
      $region30: #{network_forward.1} parent=5 // pred_check_branch
        %191 = sbr.rel (%p189) target = $region32
      $region31: #{network_forward.1} parent=5 // pred_region
        // Predicated region
        $region33: #{network_forward.1} parent=31 // pred_check
          %p192 = pneg %p35
        $region34: #{network_forward.1} parent=31 // pred_check_branch
          %194 = sbr.rel (%p192) target = $region36
        $region35: #{network_forward.1} parent=31 // pred_region
          %s195 = smul.u32 16, %s15
          %p196 = scmp.lt.s32.totalorder %s195, 31
          %s197 = scalar_select %p196, %s195, 31
          %s198 = smul.addr %s197, 3
          %s199 = smul.addr %s198, 4
          %s200 = scalar_lea.vmem %s0, %s199
          %s201 = smul.u32 16, %s15
        $region36: #{network_forward.1} parent=31 // pred_fallthru
          _
      $region32: #{network_forward.1} parent=5 // pred_fallthru
        _
      %p202 = scmp.le.s32.totalorder 1, %s15
      %p203 = scmp.lt.s32.totalorder %s15, 3
      %p204 = pnand %p202, %p203
      %p205 = pneg %p204
      // Predicated region
      $region37: #{network_forward.1} parent=5 // pred_check
        _
      $region38: #{network_forward.1} parent=5 // pred_check_branch
        %207 = sbr.rel (%p204) target = $region40
      $region39: #{network_forward.1} parent=5 // pred_region
        %s208 = ssub.s32 %s15, 1
        // Predicated region
        $region41: #{network_forward.1} parent=39 // pred_check
          %p209 = pneg %p62
        $region42: #{network_forward.1} parent=39 // pred_check_branch
          %211 = sbr.rel (%p209) target = $region44
        $region43: #{network_forward.1} parent=39 // pred_region
          %212 = dma.done [#allocation3], 6144
        $region44: #{network_forward.1} parent=39 // pred_fallthru
          _
        %s213 = smul.u32 16, %s20
        %p214 = scmp.lt.s32.totalorder %s213, 31
        %s215 = scalar_select %p214, %s213, 31
        %s216 = smul.addr %s215, 3
        %s217 = smul.addr %s216, 4
        %s218 = scalar_lea.vmem %s0, %s217
        %p219 = pneg %p41
        %p220 = pneg %p38
        %p221 = pneg %p62
        %p222 = pneg %p59
        %p223 = pneg %p83
        %p224 = pneg %p80
        %p225 = pneg %p104
        %p226 = pneg %p101
        %p227 = pneg %p125
        %p228 = pneg %p122
        %p229 = pneg %p151
        %p230 = pneg %p148
        %s231 = sand.u32 %s138, 1
        %s232 = scalar_lea.sflag [#allocation4], %s231
        %s233 = sand.u32 %s138, 1
        %s234 = smul.addr %s233, 128
        %s235 = scalar_lea.vmem [#allocation5], %s234
        %s236 = smul.u32 16, %s20
        %p237 = scmp.lt.s32.totalorder %s236, 31
        %s238 = scalar_select %p237, %s236, 31
        %s239 = smul.addr %s238, 3
        %s240 = smul.addr %s239, 4
        %s241 = scalar_lea.vmem %s0, %s240
        %s242 = smul.u32 16, %s20
        %s243 = smul.u32 16, %s20
        %v245 = vld [vmem:[%s241] sm:$0xff]
        %v246 = vld [vmem:[%s241 + $0x8] sm:$0xf]
        %v247 = vld [vmem:[%s241 + $0xc] sm:$0xff]
        %v248 = vld [vmem:[%s241 + $0x14] sm:$0xf]
        %v249 = vld [vmem:[%s241 + $0x18] sm:$0xff]
        %v250 = vld [vmem:[%s241 + $0x20] sm:$0xf]
        %v251 = vld [vmem:[%s241 + $0x24] sm:$0xff]
        %v252 = vld [vmem:[%s241 + $0x2c] sm:$0xf]
        %v253 = vld [vmem:[%s241 + $0x30] sm:$0xff]
        %v254 = vld [vmem:[%s241 + $0x38] sm:$0xf]
        %v255 = vld [vmem:[%s241 + $0x3c] sm:$0xff]
        %v256 = vld [vmem:[%s241 + $0x44] sm:$0xf]
        %v257 = vld [vmem:[%s241 + $0x48] sm:$0xff]
        %v258 = vld [vmem:[%s241 + $0x50] sm:$0xf]
        %v259 = vld [vmem:[%s241 + $0x54] sm:$0xff]
        %v260 = vld [vmem:[%s241 + $0x5c] sm:$0xf]
        %v261 = vld [vmem:[%s241 + $0x60] sm:$0xff]
        %v262 = vld [vmem:[%s241 + $0x68] sm:$0xf]
        %v263 = vld [vmem:[%s241 + $0x6c] sm:$0xff]
        %v264 = vld [vmem:[%s241 + $0x74] sm:$0xf]
        %v265 = vld [vmem:[%s241 + $0x78] sm:$0xff]
        %v266 = vld [vmem:[%s241 + $0x80] sm:$0xf]
        %v267 = vld [vmem:[%s241 + $0x84] sm:$0xff]
        %v268 = vld [vmem:[%s241 + $0x8c] sm:$0xf]
        %v269 = vld [vmem:[%s241 + $0x90] sm:$0xff]
        %v270 = vld [vmem:[%s241 + $0x98] sm:$0xf]
        %v271 = vld [vmem:[%s241 + $0x9c] sm:$0xff]
        %v272 = vld [vmem:[%s241 + $0xa4] sm:$0xf]
        %v273 = vld [vmem:[%s241 + $0xa8] sm:$0xff]
        %v274 = vld [vmem:[%s241 + $0xb0] sm:$0xf]
        %v275 = vld [vmem:[%s241 + $0xb4] sm:$0xff]
        %v276 = vld [vmem:[%s241 + $0xbc] sm:$0xf]
        %v277 = vld [vmem:[#allocation2] sm:$0xff]
        %v278 = vld [vmem:[#allocation2 + $0x8] sm:$0xff]
        %v279 = vld [vmem:[#allocation2 + $0x10] sm:$0xff]
        %v280 = vld [vmem:[#allocation2 + $0x18] sm:$0xff]
        %v281 = vld [vmem:[#allocation2 + $0x20] sm:$0xff]
        %v282 = vld [vmem:[#allocation2 + $0x28] sm:$0xff]
        %v283 = vld [vmem:[#allocation2 + $0x30] sm:$0xff]
        %v284 = vld [vmem:[#allocation2 + $0x38] sm:$0xff]
        %v285 = vld [vmem:[#allocation2 + $0x40] sm:$0xff]
        %v286 = vld [vmem:[#allocation2 + $0x48] sm:$0xff]
        %v287 = vld [vmem:[#allocation2 + $0x50] sm:$0xff]
        %v288 = vld [vmem:[#allocation2 + $0x58] sm:$0xff]
        %v289 = vld [vmem:[#allocation2 + $0x60] sm:$0xff]
        %v290 = vld [vmem:[#allocation2 + $0x68] sm:$0xff]
        %v291 = vld [vmem:[#allocation2 + $0x70] sm:$0xff]
        %v292 = vld [vmem:[#allocation2 + $0x78] sm:$0xff]
        %v293 = vld [vmem:[#allocation2 + $0x80] sm:$0xff]
        %v294 = vld [vmem:[#allocation2 + $0x88] sm:$0xff]
        %v295 = vld [vmem:[#allocation2 + $0x90] sm:$0xff]
        %v296 = vld [vmem:[#allocation2 + $0x98] sm:$0xff]
        %v297 = vld [vmem:[#allocation2 + $0xa0] sm:$0xff]
        %v298 = vld [vmem:[#allocation2 + $0xa8] sm:$0xff]
        %v299 = vld [vmem:[#allocation2 + $0xb0] sm:$0xff]
        %v300 = vld [vmem:[#allocation2 + $0xb8] sm:$0xff]
        %v301 = vld [vmem:[#allocation2 + $0xc0] sm:$0xff]
        %v302 = vld [vmem:[#allocation2 + $0xc8] sm:$0xff]
        %v303 = vld [vmem:[#allocation2 + $0xd0] sm:$0xff]
        %v304 = vld [vmem:[#allocation2 + $0xd8] sm:$0xff]
        %v305 = vld [vmem:[#allocation2 + $0xe0] sm:$0xff]
        %v306 = vld [vmem:[#allocation2 + $0xe8] sm:$0xff]
        %v307 = vld [vmem:[#allocation2 + $0xf0] sm:$0xff]
        %v308 = vld [vmem:[#allocation2 + $0xf8] sm:$0xff]
        %v309 = vld [vmem:[#allocation2 + $0x100] sm:$0xff]
        %v310 = vld [vmem:[#allocation2 + $0x108] sm:$0xff]
        %v311 = vld [vmem:[#allocation2 + $0x110] sm:$0xff]
        %v312 = vld [vmem:[#allocation2 + $0x118] sm:$0xff]
        %v313 = vld [vmem:[#allocation2 + $0x120] sm:$0xff]
        %v314 = vld [vmem:[#allocation2 + $0x128] sm:$0xff]
        %v315 = vld [vmem:[#allocation2 + $0x130] sm:$0xff]
        %v316 = vld [vmem:[#allocation2 + $0x138] sm:$0xff]
        %v317 = vld [vmem:[#allocation2 + $0x140] sm:$0xff]
        %v318 = vld [vmem:[#allocation2 + $0x148] sm:$0xff]
        %v319 = vld [vmem:[#allocation2 + $0x150] sm:$0xff]
        %v320 = vld [vmem:[#allocation2 + $0x158] sm:$0xff]
        %v321 = vld [vmem:[#allocation2 + $0x160] sm:$0xff]
        %v322 = vld [vmem:[#allocation2 + $0x168] sm:$0xff]
        %v323 = vld [vmem:[#allocation2 + $0x170] sm:$0xff]
        %v324 = vld [vmem:[#allocation2 + $0x178] sm:$0xff]
        %v325 = vld [vmem:[%s2] sm:$0x3]
        %v327 = vlaneseq
        %v328 = vshrl.u32 %v327, 7
        %v329 = vsub.s32 0, %v328
        %v330 = vrot.slane %v325, %v329
        %v331 = vlaneseq
        %v332 = vshrl.u32 %v331, 7
        %v333 = vsub.s32 1, %v332
        %v334 = vrot.slane %v325, %v333
        %v369 = vunpack.c.l.b16 %v245
        %v370 = vunpack.c.h.b16 %v245
        %v371 = vunpack.c.l.b16 %v246
        %v372 = vunpack.c.l.b16 %v247
        %v373 = vunpack.c.h.b16 %v247
        %v374 = vunpack.c.l.b16 %v248
        %v375 = vunpack.c.l.b16 %v249
        %v376 = vunpack.c.h.b16 %v249
        %v377 = vunpack.c.l.b16 %v250
        %v378 = vunpack.c.l.b16 %v251
        %v379 = vunpack.c.h.b16 %v251
        %v380 = vunpack.c.l.b16 %v252
        %v381 = vunpack.c.l.b16 %v253
        %v382 = vunpack.c.h.b16 %v253
        %v383 = vunpack.c.l.b16 %v254
        %v384 = vunpack.c.l.b16 %v255
        %v385 = vunpack.c.h.b16 %v255
        %v386 = vunpack.c.l.b16 %v256
        %v387 = vunpack.c.l.b16 %v257
        %v388 = vunpack.c.h.b16 %v257
        %v389 = vunpack.c.l.b16 %v258
        %v390 = vunpack.c.l.b16 %v259
        %v391 = vunpack.c.h.b16 %v259
        %v392 = vunpack.c.l.b16 %v260
        %v393 = vunpack.c.l.b16 %v261
        %v394 = vunpack.c.h.b16 %v261
        %v395 = vunpack.c.l.b16 %v262
        %v396 = vunpack.c.l.b16 %v263
        %v397 = vunpack.c.h.b16 %v263
        %v398 = vunpack.c.l.b16 %v264
        %v399 = vunpack.c.l.b16 %v265
        %v400 = vunpack.c.h.b16 %v265
        %v401 = vunpack.c.l.b16 %v266
        %v402 = vunpack.c.l.b16 %v267
        %v403 = vunpack.c.h.b16 %v267
        %v404 = vunpack.c.l.b16 %v268
        %v405 = vunpack.c.l.b16 %v269
        %v406 = vunpack.c.h.b16 %v269
        %v407 = vunpack.c.l.b16 %v270
        %v408 = vunpack.c.l.b16 %v271
        %v409 = vunpack.c.h.b16 %v271
        %v410 = vunpack.c.l.b16 %v272
        %v411 = vunpack.c.l.b16 %v273
        %v412 = vunpack.c.h.b16 %v273
        %v413 = vunpack.c.l.b16 %v274
        %v414 = vunpack.c.l.b16 %v275
        %v415 = vunpack.c.h.b16 %v275
        %v416 = vunpack.c.l.b16 %v276
        %v417 = vpack.c.b16 %v372, %v369
        %v418 = vpack.c.b16 %v373, %v370
        %v419 = vpack.c.b16 %v374, %v371
        %v420 = vpack.c.b16 %v378, %v375
        %v421 = vpack.c.b16 %v379, %v376
        %v422 = vpack.c.b16 %v380, %v377
        %v423 = vpack.c.b16 %v384, %v381
        %v424 = vpack.c.b16 %v385, %v382
        %v425 = vpack.c.b16 %v386, %v383
        %v426 = vpack.c.b16 %v390, %v387
        %v427 = vpack.c.b16 %v391, %v388
        %v428 = vpack.c.b16 %v392, %v389
        %v429 = vpack.c.b16 %v396, %v393
        %v430 = vpack.c.b16 %v397, %v394
        %v431 = vpack.c.b16 %v398, %v395
        %v432 = vpack.c.b16 %v402, %v399
        %v433 = vpack.c.b16 %v403, %v400
        %v434 = vpack.c.b16 %v404, %v401
        %v435 = vpack.c.b16 %v408, %v405
        %v436 = vpack.c.b16 %v409, %v406
        %v437 = vpack.c.b16 %v410, %v407
        %v438 = vpack.c.b16 %v414, %v411
        %v439 = vpack.c.b16 %v415, %v412
        %v440 = vpack.c.b16 %v416, %v413
        %v513 = vunpack.c.l.b16 %v277
        %v514 = vunpack.c.h.b16 %v277
        %v515 = vunpack.c.l.b16 %v278
        %v516 = vunpack.c.h.b16 %v278
        %v517 = vunpack.c.l.b16 %v279
        %v518 = vunpack.c.h.b16 %v279
        %v519 = vunpack.c.l.b16 %v280
        %v520 = vunpack.c.h.b16 %v280
        %v521 = vunpack.c.l.b16 %v281
        %v522 = vunpack.c.h.b16 %v281
        %v523 = vunpack.c.l.b16 %v282
        %v524 = vunpack.c.h.b16 %v282
        %v525 = vunpack.c.l.b16 %v283
        %v526 = vunpack.c.h.b16 %v283
        %v527 = vunpack.c.l.b16 %v284
        %v528 = vunpack.c.h.b16 %v284
        %v529 = vunpack.c.l.b16 %v285
        %v530 = vunpack.c.h.b16 %v285
        %v531 = vunpack.c.l.b16 %v286
        %v532 = vunpack.c.h.b16 %v286
        %v533 = vunpack.c.l.b16 %v287
        %v534 = vunpack.c.h.b16 %v287
        %v535 = vunpack.c.l.b16 %v288
        %v536 = vunpack.c.h.b16 %v288
        %v537 = vunpack.c.l.b16 %v289
        %v538 = vunpack.c.h.b16 %v289
        %v539 = vunpack.c.l.b16 %v290
        %v540 = vunpack.c.h.b16 %v290
        %v541 = vunpack.c.l.b16 %v291
        %v542 = vunpack.c.h.b16 %v291
        %v543 = vunpack.c.l.b16 %v292
        %v544 = vunpack.c.h.b16 %v292
        %v545 = vunpack.c.l.b16 %v293
        %v546 = vunpack.c.h.b16 %v293
        %v547 = vunpack.c.l.b16 %v294
        %v548 = vunpack.c.h.b16 %v294
        %v549 = vunpack.c.l.b16 %v295
        %v550 = vunpack.c.h.b16 %v295
        %v551 = vunpack.c.l.b16 %v296
        %v552 = vunpack.c.h.b16 %v296
        %v553 = vunpack.c.l.b16 %v297
        %v554 = vunpack.c.h.b16 %v297
        %v555 = vunpack.c.l.b16 %v298
        %v556 = vunpack.c.h.b16 %v298
        %v557 = vunpack.c.l.b16 %v299
        %v558 = vunpack.c.h.b16 %v299
        %v559 = vunpack.c.l.b16 %v300
        %v560 = vunpack.c.h.b16 %v300
        %v561 = vunpack.c.l.b16 %v301
        %v562 = vunpack.c.h.b16 %v301
        %v563 = vunpack.c.l.b16 %v302
        %v564 = vunpack.c.h.b16 %v302
        %v565 = vunpack.c.l.b16 %v303
        %v566 = vunpack.c.h.b16 %v303
        %v567 = vunpack.c.l.b16 %v304
        %v568 = vunpack.c.h.b16 %v304
        %v569 = vunpack.c.l.b16 %v305
        %v570 = vunpack.c.h.b16 %v305
        %v571 = vunpack.c.l.b16 %v306
        %v572 = vunpack.c.h.b16 %v306
        %v573 = vunpack.c.l.b16 %v307
        %v574 = vunpack.c.h.b16 %v307
        %v575 = vunpack.c.l.b16 %v308
        %v576 = vunpack.c.h.b16 %v308
        %v577 = vunpack.c.l.b16 %v309
        %v578 = vunpack.c.h.b16 %v309
        %v579 = vunpack.c.l.b16 %v310
        %v580 = vunpack.c.h.b16 %v310
        %v581 = vunpack.c.l.b16 %v311
        %v582 = vunpack.c.h.b16 %v311
        %v583 = vunpack.c.l.b16 %v312
        %v584 = vunpack.c.h.b16 %v312
        %v585 = vunpack.c.l.b16 %v313
        %v586 = vunpack.c.h.b16 %v313
        %v587 = vunpack.c.l.b16 %v314
        %v588 = vunpack.c.h.b16 %v314
        %v589 = vunpack.c.l.b16 %v315
        %v590 = vunpack.c.h.b16 %v315
        %v591 = vunpack.c.l.b16 %v316
        %v592 = vunpack.c.h.b16 %v316
        %v593 = vunpack.c.l.b16 %v317
        %v594 = vunpack.c.h.b16 %v317
        %v595 = vunpack.c.l.b16 %v318
        %v596 = vunpack.c.h.b16 %v318
        %v597 = vunpack.c.l.b16 %v319
        %v598 = vunpack.c.h.b16 %v319
        %v599 = vunpack.c.l.b16 %v320
        %v600 = vunpack.c.h.b16 %v320
        %v601 = vunpack.c.l.b16 %v321
        %v602 = vunpack.c.h.b16 %v321
        %v603 = vunpack.c.l.b16 %v322
        %v604 = vunpack.c.h.b16 %v322
        %v605 = vunpack.c.l.b16 %v323
        %v606 = vunpack.c.h.b16 %v323
        %v607 = vunpack.c.l.b16 %v324
        %v608 = vunpack.c.h.b16 %v324
        %v609 = vpack.c.b16 %v515, %v513
        %v610 = vpack.c.b16 %v516, %v514
        %v611 = vpack.c.b16 %v519, %v517
        %v612 = vpack.c.b16 %v520, %v518
        %v613 = vpack.c.b16 %v523, %v521
        %v614 = vpack.c.b16 %v524, %v522
        %v615 = vpack.c.b16 %v527, %v525
        %v616 = vpack.c.b16 %v528, %v526
        %v617 = vpack.c.b16 %v531, %v529
        %v618 = vpack.c.b16 %v532, %v530
        %v619 = vpack.c.b16 %v535, %v533
        %v620 = vpack.c.b16 %v536, %v534
        %v621 = vpack.c.b16 %v539, %v537
        %v622 = vpack.c.b16 %v540, %v538
        %v623 = vpack.c.b16 %v543, %v541
        %v624 = vpack.c.b16 %v544, %v542
        %v625 = vpack.c.b16 %v547, %v545
        %v626 = vpack.c.b16 %v548, %v546
        %v627 = vpack.c.b16 %v551, %v549
        %v628 = vpack.c.b16 %v552, %v550
        %v629 = vpack.c.b16 %v555, %v553
        %v630 = vpack.c.b16 %v556, %v554
        %v631 = vpack.c.b16 %v559, %v557
        %v632 = vpack.c.b16 %v560, %v558
        %v633 = vpack.c.b16 %v563, %v561
        %v634 = vpack.c.b16 %v564, %v562
        %v635 = vpack.c.b16 %v567, %v565
        %v636 = vpack.c.b16 %v568, %v566
        %v637 = vpack.c.b16 %v571, %v569
        %v638 = vpack.c.b16 %v572, %v570
        %v639 = vpack.c.b16 %v575, %v573
        %v640 = vpack.c.b16 %v576, %v574
        %v641 = vpack.c.b16 %v579, %v577
        %v642 = vpack.c.b16 %v580, %v578
        %v643 = vpack.c.b16 %v583, %v581
        %v644 = vpack.c.b16 %v584, %v582
        %v645 = vpack.c.b16 %v587, %v585
        %v646 = vpack.c.b16 %v588, %v586
        %v647 = vpack.c.b16 %v591, %v589
        %v648 = vpack.c.b16 %v592, %v590
        %v649 = vpack.c.b16 %v595, %v593
        %v650 = vpack.c.b16 %v596, %v594
        %v651 = vpack.c.b16 %v599, %v597
        %v652 = vpack.c.b16 %v600, %v598
        %v653 = vpack.c.b16 %v603, %v601
        %v654 = vpack.c.b16 %v604, %v602
        %v655 = vpack.c.b16 %v607, %v605
        %v656 = vpack.c.b16 %v608, %v606
        %705 = vmatprep.subr.bf16.mxu0 %v610
        %706 = vmatpush1.bf16.msra.mxu0 %v609
        %707 = vmatprep.subr.bf16.mxu0 %v612
        %708 = vmatpush1.bf16.msra.mxu0 %v611
        %709 = vmatprep.subr.bf16.mxu0 %v614
        %710 = vmatpush1.bf16.msra.mxu0 %v613
        %711 = vmatprep.subr.bf16.mxu0 %v616
        %712 = vmatpush1.bf16.msra.mxu0 %v615
        %713 = vmatprep.subr.bf16.mxu0 %v618
        %714 = vmatpush1.bf16.msra.mxu0 %v617
        %715 = vmatprep.subr.bf16.mxu0 %v620
        %716 = vmatpush1.bf16.msra.mxu0 %v619
        %717 = vmatprep.subr.bf16.mxu0 %v622
        %718 = vmatpush1.bf16.msra.mxu0 %v621
        %719 = vmatprep.subr.bf16.mxu0 %v624
        %720 = vmatpush1.bf16.msra.mxu0 %v623
        %721 = vmatprep.subr.bf16.mxu0 %v626
        %722 = vmatpush1.bf16.msra.mxu0 %v625
        %723 = vmatprep.subr.bf16.mxu0 %v628
        %724 = vmatpush1.bf16.msra.mxu0 %v627
        %725 = vmatprep.subr.bf16.mxu0 %v630
        %726 = vmatpush1.bf16.msra.mxu0 %v629
        %727 = vmatprep.subr.bf16.mxu0 %v632
        %728 = vmatpush1.bf16.msra.mxu0 %v631
        %729 = vmatprep.subr.bf16.mxu0 %v634
        %730 = vmatpush1.bf16.msra.mxu0 %v633
        %731 = vmatprep.subr.bf16.mxu0 %v636
        %732 = vmatpush1.bf16.msra.mxu0 %v635
        %733 = vmatprep.subr.bf16.mxu0 %v638
        %734 = vmatpush1.bf16.msra.mxu0 %v637
        %735 = vmatprep.subr.bf16.mxu0 %v640
        %736 = vmatpush1.bf16.msra.mxu0 %v639
        %737 = vmatprep.mubr.bf16.mxu0 %v418
        %738 = vmatmul.mubr.bf16.gmra.mrb[0].mxu0 %v417
        %v739 = vpop.f32.mrb[0].mxu0
        %v740 = vadd.f32 %v330, %v739
        %v741 = vpop.f32.mrb[0].mxu0
        %v742 = vadd.f32 %v334, %v741
        %v743 = vpop.f32.mrb[0].mxu0
        %v744 = vadd.f32 %v330, %v743
        %v745 = vpop.f32.mrb[0].mxu0
        %v746 = vadd.f32 %v334, %v745
        %747 = vmatprep.mubr.bf16.mxu0 %v421
        %748 = vmatmul.mubr.bf16.gmra.mrb[0].mxu0 %v420
        %v749 = vpop.f32.mrb[0].mxu0
        %v750 = vadd.f32 %v330, %v749
        %v751 = vpop.f32.mrb[0].mxu0
        %v752 = vadd.f32 %v334, %v751
        %v753 = vpop.f32.mrb[0].mxu0
        %v754 = vadd.f32 %v330, %v753
        %v755 = vpop.f32.mrb[0].mxu0
        %v756 = vadd.f32 %v334, %v755
        %757 = vmatprep.mubr.bf16.mxu0 %v424
        %758 = vmatmul.mubr.bf16.gmra.mrb[0].mxu0 %v423
        %v759 = vpop.f32.mrb[0].mxu0
        %v760 = vadd.f32 %v330, %v759
        %v761 = vpop.f32.mrb[0].mxu0
        %v762 = vadd.f32 %v334, %v761
        %v763 = vpop.f32.mrb[0].mxu0
        %v764 = vadd.f32 %v330, %v763
        %v765 = vpop.f32.mrb[0].mxu0
        %v766 = vadd.f32 %v334, %v765
        %767 = vmatprep.mubr.bf16.mxu0 %v427
        %768 = vmatmul.mubr.bf16.gmra.mrb[0].mxu0 %v426
        %v769 = vpop.f32.mrb[0].mxu0
        %v770 = vadd.f32 %v330, %v769
        %v771 = vpop.f32.mrb[0].mxu0
        %v772 = vadd.f32 %v334, %v771
        %v773 = vpop.f32.mrb[0].mxu0
        %v774 = vadd.f32 %v330, %v773
        %v775 = vpop.f32.mrb[0].mxu0
        %v776 = vadd.f32 %v334, %v775
        %777 = vmatprep.mubr.bf16.mxu0 %v430
        %778 = vmatmul.mubr.bf16.gmra.mrb[0].mxu0 %v429
        %v779 = vpop.f32.mrb[0].mxu0
        %v780 = vadd.f32 %v330, %v779
        %v781 = vpop.f32.mrb[0].mxu0
        %v782 = vadd.f32 %v334, %v781
        %v783 = vpop.f32.mrb[0].mxu0
        %v784 = vadd.f32 %v330, %v783
        %v785 = vpop.f32.mrb[0].mxu0
        %v786 = vadd.f32 %v334, %v785
        %787 = vmatprep.mubr.bf16.mxu0 %v433
        %788 = vmatmul.mubr.bf16.gmra.mrb[0].mxu0 %v432
        %v789 = vpop.f32.mrb[0].mxu0
        %v790 = vadd.f32 %v330, %v789
        %v791 = vpop.f32.mrb[0].mxu0
        %v792 = vadd.f32 %v334, %v791
        %v793 = vpop.f32.mrb[0].mxu0
        %v794 = vadd.f32 %v330, %v793
        %v795 = vpop.f32.mrb[0].mxu0
        %v796 = vadd.f32 %v334, %v795
        %797 = vmatprep.mubr.bf16.mxu0 %v436
        %798 = vmatmul.mubr.bf16.gmra.mrb[0].mxu0 %v435
        %v799 = vpop.f32.mrb[0].mxu0
        %v800 = vadd.f32 %v330, %v799
        %v801 = vpop.f32.mrb[0].mxu0
        %v802 = vadd.f32 %v334, %v801
        %v803 = vpop.f32.mrb[0].mxu0
        %v804 = vadd.f32 %v330, %v803
        %v805 = vpop.f32.mrb[0].mxu0
        %v806 = vadd.f32 %v334, %v805
        %807 = vmatprep.mubr.bf16.mxu0 %v439
        %808 = vmatmul.mubr.bf16.gmra.mrb[0].mxu0 %v438
        %v809 = vpop.f32.mrb[0].mxu0
        %v810 = vadd.f32 %v330, %v809
        %v811 = vpop.f32.mrb[0].mxu0
        %v812 = vadd.f32 %v334, %v811
        %v813 = vpop.f32.mrb[0].mxu0
        %v814 = vadd.f32 %v330, %v813
        %v815 = vpop.f32.mrb[0].mxu0
        %v816 = vadd.f32 %v334, %v815
        %817 = vdwg.mxu0
        %818 = vmatprep.subr.bf16.mxu0 %v642
        %819 = vmatpush1.bf16.msra.mxu0 %v641
        %820 = vmatprep.subr.bf16.mxu0 %v644
        %821 = vmatpush1.bf16.msra.mxu0 %v643
        %822 = vmatprep.subr.bf16.mxu0 %v646
        %823 = vmatpush1.bf16.msra.mxu0 %v645
        %824 = vmatprep.subr.bf16.mxu0 %v648
        %825 = vmatpush1.bf16.msra.mxu0 %v647
        %826 = vmatprep.subr.bf16.mxu0 %v650
        %827 = vmatpush1.bf16.msra.mxu0 %v649
        %828 = vmatprep.subr.bf16.mxu0 %v652
        %829 = vmatpush1.bf16.msra.mxu0 %v651
        %830 = vmatprep.subr.bf16.mxu0 %v654
        %831 = vmatpush1.bf16.msra.mxu0 %v653
        %832 = vmatprep.subr.bf16.mxu0 %v656
        %833 = vmatpush1.bf16.msra.mxu0 %v655
        %834 = vmatprep.subr.bf16.mxu0 0
        %835 = vmatpush1.bf16.msra.mxu0 0
        %836 = vmatprep.subr.bf16.mxu0 0
        %837 = vmatpush1.bf16.msra.mxu0 0
        %838 = vmatprep.subr.bf16.mxu0 0
        %839 = vmatpush1.bf16.msra.mxu0 0
        %840 = vmatprep.subr.bf16.mxu0 0
        %841 = vmatpush1.bf16.msra.mxu0 0
        %842 = vmatprep.subr.bf16.mxu0 0
        %843 = vmatpush1.bf16.msra.mxu0 0
        %844 = vmatprep.subr.bf16.mxu0 0
        %845 = vmatpush1.bf16.msra.mxu0 0
        %846 = vmatprep.subr.bf16.mxu0 0
        %847 = vmatpush1.bf16.msra.mxu0 0
        %848 = vmatprep.subr.bf16.mxu0 0
        %849 = vmatpush1.bf16.msra.mxu0 0
        %850 = vmatprep.mubr.bf16.mxu0 0
        %851 = vmatmul.mubr.bf16.gmra.mrb[0].mxu0 %v419
        %v852 = vpop.f32.mrb[0].mxu0
        %v853 = vadd.f32 %v740, %v852
        %v854 = vpop.f32.mrb[0].mxu0
        %v855 = vadd.f32 %v742, %v854
        %v856 = vpop.f32.mrb[0].mxu0
        %v857 = vadd.f32 %v744, %v856
        %v858 = vpop.f32.mrb[0].mxu0
        %v859 = vadd.f32 %v746, %v858
        %860 = vmatprep.mubr.bf16.mxu0 0
        %861 = vmatmul.mubr.bf16.gmra.mrb[0].mxu0 %v422
        %v862 = vpop.f32.mrb[0].mxu0
        %v863 = vadd.f32 %v750, %v862
        %v864 = vpop.f32.mrb[0].mxu0
        %v865 = vadd.f32 %v752, %v864
        %v866 = vpop.f32.mrb[0].mxu0
        %v867 = vadd.f32 %v754, %v866
        %v868 = vpop.f32.mrb[0].mxu0
        %v869 = vadd.f32 %v756, %v868
        %870 = vmatprep.mubr.bf16.mxu0 0
        %871 = vmatmul.mubr.bf16.gmra.mrb[0].mxu0 %v425
        %v872 = vpop.f32.mrb[0].mxu0
        %v873 = vadd.f32 %v760, %v872
        %v874 = vpop.f32.mrb[0].mxu0
        %v875 = vadd.f32 %v762, %v874
        %v876 = vpop.f32.mrb[0].mxu0
        %v877 = vadd.f32 %v764, %v876
        %v878 = vpop.f32.mrb[0].mxu0
        %v879 = vadd.f32 %v766, %v878
        %880 = vmatprep.mubr.bf16.mxu0 0
        %881 = vmatmul.mubr.bf16.gmra.mrb[0].mxu0 %v428
        %v882 = vpop.f32.mrb[0].mxu0
        %v883 = vadd.f32 %v770, %v882
        %v884 = vpop.f32.mrb[0].mxu0
        %v885 = vadd.f32 %v772, %v884
        %v886 = vpop.f32.mrb[0].mxu0
        %v887 = vadd.f32 %v774, %v886
        %v888 = vpop.f32.mrb[0].mxu0
        %v889 = vadd.f32 %v776, %v888
        %890 = vmatprep.mubr.bf16.mxu0 0
        %891 = vmatmul.mubr.bf16.gmra.mrb[0].mxu0 %v431
        %v892 = vpop.f32.mrb[0].mxu0
        %v893 = vadd.f32 %v780, %v892
        %v894 = vpop.f32.mrb[0].mxu0
        %v895 = vadd.f32 %v782, %v894
        %v896 = vpop.f32.mrb[0].mxu0
        %v897 = vadd.f32 %v784, %v896
        %v898 = vpop.f32.mrb[0].mxu0
        %v899 = vadd.f32 %v786, %v898
        %900 = vmatprep.mubr.bf16.mxu0 0
        %901 = vmatmul.mubr.bf16.gmra.mrb[0].mxu0 %v434
        %v902 = vpop.f32.mrb[0].mxu0
        %v903 = vadd.f32 %v790, %v902
        %v904 = vpop.f32.mrb[0].mxu0
        %v905 = vadd.f32 %v792, %v904
        %v906 = vpop.f32.mrb[0].mxu0
        %v907 = vadd.f32 %v794, %v906
        %v908 = vpop.f32.mrb[0].mxu0
        %v909 = vadd.f32 %v796, %v908
        %910 = vmatprep.mubr.bf16.mxu0 0
        %911 = vmatmul.mubr.bf16.gmra.mrb[0].mxu0 %v437
        %v912 = vpop.f32.mrb[0].mxu0
        %v913 = vadd.f32 %v800, %v912
        %v914 = vpop.f32.mrb[0].mxu0
        %v915 = vadd.f32 %v802, %v914
        %v916 = vpop.f32.mrb[0].mxu0
        %v917 = vadd.f32 %v804, %v916
        %v918 = vpop.f32.mrb[0].mxu0
        %v919 = vadd.f32 %v806, %v918
        %920 = vmatprep.mubr.bf16.mxu0 0
        %921 = vmatmul.mubr.bf16.gmra.mrb[0].mxu0 %v440
        %v922 = vpop.f32.mrb[0].mxu0
        %v923 = vadd.f32 %v810, %v922
        %v924 = vpop.f32.mrb[0].mxu0
        %v925 = vadd.f32 %v812, %v924
        %v926 = vpop.f32.mrb[0].mxu0
        %v927 = vadd.f32 %v814, %v926
        %v928 = vpop.f32.mrb[0].mxu0
        %v929 = vadd.f32 %v816, %v928
        %930 = vdwg.mxu0
        %v931 = vmax.f32 %v853, 0.0
        %v932 = vmax.f32 %v855, 0.0
        %v933 = vmax.f32 %v857, 0.0
        %v934 = vmax.f32 %v859, 0.0
        %v935 = vmax.f32 %v863, 0.0
        %v936 = vmax.f32 %v865, 0.0
        %v937 = vmax.f32 %v867, 0.0
        %v938 = vmax.f32 %v869, 0.0
        %v939 = vmax.f32 %v873, 0.0
        %v940 = vmax.f32 %v875, 0.0
        %v941 = vmax.f32 %v877, 0.0
        %v942 = vmax.f32 %v879, 0.0
        %v943 = vmax.f32 %v883, 0.0
        %v944 = vmax.f32 %v885, 0.0
        %v945 = vmax.f32 %v887, 0.0
        %v946 = vmax.f32 %v889, 0.0
        %v947 = vmax.f32 %v893, 0.0
        %v948 = vmax.f32 %v895, 0.0
        %v949 = vmax.f32 %v897, 0.0
        %v950 = vmax.f32 %v899, 0.0
        %v951 = vmax.f32 %v903, 0.0
        %v952 = vmax.f32 %v905, 0.0
        %v953 = vmax.f32 %v907, 0.0
        %v954 = vmax.f32 %v909, 0.0
        %v955 = vmax.f32 %v913, 0.0
        %v956 = vmax.f32 %v915, 0.0
        %v957 = vmax.f32 %v917, 0.0
        %v958 = vmax.f32 %v919, 0.0
        %v959 = vmax.f32 %v923, 0.0
        %v960 = vmax.f32 %v925, 0.0
        %v961 = vmax.f32 %v927, 0.0
        %v962 = vmax.f32 %v929, 0.0
        %v963 = vpack.c.bf16 %v933, %v931
        %v964 = vpack.c.bf16 %v934, %v932
        %v965 = vpack.c.bf16 %v937, %v935
        %v966 = vpack.c.bf16 %v938, %v936
        %v967 = vpack.c.bf16 %v941, %v939
        %v968 = vpack.c.bf16 %v942, %v940
        %v969 = vpack.c.bf16 %v945, %v943
        %v970 = vpack.c.bf16 %v946, %v944
        %v971 = vpack.c.bf16 %v949, %v947
        %v972 = vpack.c.bf16 %v950, %v948
        %v973 = vpack.c.bf16 %v953, %v951
        %v974 = vpack.c.bf16 %v954, %v952
        %v975 = vpack.c.bf16 %v957, %v955
        %v976 = vpack.c.bf16 %v958, %v956
        %v977 = vpack.c.bf16 %v961, %v959
        %v978 = vpack.c.bf16 %v962, %v960
        %v979 = vld [vmem:[%s3] sm:$0xff]
        %v980 = vld [vmem:[%s3 + $0x8] sm:$0xff]
        %v981 = vld [vmem:[%s3 + $0x10] sm:$0xff]
        %v982 = vld [vmem:[%s3 + $0x18] sm:$0xff]
        %v983 = vld [vmem:[%s3 + $0x20] sm:$0xff]
        %v984 = vld [vmem:[%s3 + $0x28] sm:$0xff]
        %v985 = vld [vmem:[%s3 + $0x30] sm:$0xff]
        %v986 = vld [vmem:[%s3 + $0x38] sm:$0xff]
        %v987 = vld [vmem:[%s3 + $0x40] sm:$0xff]
        %v988 = vld [vmem:[%s3 + $0x48] sm:$0xff]
        %v989 = vld [vmem:[%s3 + $0x50] sm:$0xff]
        %v990 = vld [vmem:[%s3 + $0x58] sm:$0xff]
        %v991 = vld [vmem:[%s3 + $0x60] sm:$0xff]
        %v992 = vld [vmem:[%s3 + $0x68] sm:$0xff]
        %v993 = vld [vmem:[%s3 + $0x70] sm:$0xff]
        %v994 = vld [vmem:[%s3 + $0x78] sm:$0xff]
        %v995 = vld [vmem:[%s3 + $0x80] sm:$0xff]
        %v996 = vld [vmem:[%s3 + $0x88] sm:$0xff]
        %v997 = vld [vmem:[%s3 + $0x90] sm:$0xff]
        %v998 = vld [vmem:[%s3 + $0x98] sm:$0xff]
        %v999 = vld [vmem:[%s3 + $0xa0] sm:$0xff]
        %v1000 = vld [vmem:[%s3 + $0xa8] sm:$0xff]
        %v1001 = vld [vmem:[%s3 + $0xb0] sm:$0xff]
        %v1002 = vld [vmem:[%s3 + $0xb8] sm:$0xff]
        %v1003 = vld [vmem:[%s3 + $0xc0] sm:$0xff]
        %v1004 = vld [vmem:[%s3 + $0xc8] sm:$0xff]
        %v1005 = vld [vmem:[%s3 + $0xd0] sm:$0xff]
        %v1006 = vld [vmem:[%s3 + $0xd8] sm:$0xff]
        %v1007 = vld [vmem:[%s3 + $0xe0] sm:$0xff]
        %v1008 = vld [vmem:[%s3 + $0xe8] sm:$0xff]
        %v1009 = vld [vmem:[%s3 + $0xf0] sm:$0xff]
        %v1010 = vld [vmem:[%s3 + $0xf8] sm:$0xff]
        %v1011 = vld [vmem:[%s4] sm:$0x3]
        %v1013 = vlaneseq
        %v1014 = vshrl.u32 %v1013, 7
        %v1015 = vsub.s32 0, %v1014
        %v1016 = vrot.slane %v1011, %v1015
        %v1017 = vlaneseq
        %v1018 = vshrl.u32 %v1017, 7
        %v1019 = vsub.s32 1, %v1018
        %v1020 = vrot.slane %v1011, %v1019
        %v1055 = vunpack.c.l.b16 %v979
        %v1056 = vunpack.c.h.b16 %v979
        %v1057 = vunpack.c.l.b16 %v980
        %v1058 = vunpack.c.h.b16 %v980
        %v1059 = vunpack.c.l.b16 %v981
        %v1060 = vunpack.c.h.b16 %v981
        %v1061 = vunpack.c.l.b16 %v982
        %v1062 = vunpack.c.h.b16 %v982
        %v1063 = vunpack.c.l.b16 %v983
        %v1064 = vunpack.c.h.b16 %v983
        %v1065 = vunpack.c.l.b16 %v984
        %v1066 = vunpack.c.h.b16 %v984
        %v1067 = vunpack.c.l.b16 %v985
        %v1068 = vunpack.c.h.b16 %v985
        %v1069 = vunpack.c.l.b16 %v986
        %v1070 = vunpack.c.h.b16 %v986
        %v1071 = vunpack.c.l.b16 %v987
        %v1072 = vunpack.c.h.b16 %v987
        %v1073 = vunpack.c.l.b16 %v988
        %v1074 = vunpack.c.h.b16 %v988
        %v1075 = vunpack.c.l.b16 %v989
        %v1076 = vunpack.c.h.b16 %v989
        %v1077 = vunpack.c.l.b16 %v990
        %v1078 = vunpack.c.h.b16 %v990
        %v1079 = vunpack.c.l.b16 %v991
        %v1080 = vunpack.c.h.b16 %v991
        %v1081 = vunpack.c.l.b16 %v992
        %v1082 = vunpack.c.h.b16 %v992
        %v1083 = vunpack.c.l.b16 %v993
        %v1084 = vunpack.c.h.b16 %v993
        %v1085 = vunpack.c.l.b16 %v994
        %v1086 = vunpack.c.h.b16 %v994
        %v1087 = vunpack.c.l.b16 %v995
        %v1088 = vunpack.c.h.b16 %v995
        %v1089 = vunpack.c.l.b16 %v996
        %v1090 = vunpack.c.h.b16 %v996
        %v1091 = vunpack.c.l.b16 %v997
        %v1092 = vunpack.c.h.b16 %v997
        %v1093 = vunpack.c.l.b16 %v998
        %v1094 = vunpack.c.h.b16 %v998
        %v1095 = vunpack.c.l.b16 %v999
        %v1096 = vunpack.c.h.b16 %v999
        %v1097 = vunpack.c.l.b16 %v1000
        %v1098 = vunpack.c.h.b16 %v1000
        %v1099 = vunpack.c.l.b16 %v1001
        %v1100 = vunpack.c.h.b16 %v1001
        %v1101 = vunpack.c.l.b16 %v1002
        %v1102 = vunpack.c.h.b16 %v1002
        %v1103 = vunpack.c.l.b16 %v1003
        %v1104 = vunpack.c.h.b16 %v1003
        %v1105 = vunpack.c.l.b16 %v1004
        %v1106 = vunpack.c.h.b16 %v1004
        %v1107 = vunpack.c.l.b16 %v1005
        %v1108 = vunpack.c.h.b16 %v1005
        %v1109 = vunpack.c.l.b16 %v1006
        %v1110 = vunpack.c.h.b16 %v1006
        %v1111 = vunpack.c.l.b16 %v1007
        %v1112 = vunpack.c.h.b16 %v1007
        %v1113 = vunpack.c.l.b16 %v1008
        %v1114 = vunpack.c.h.b16 %v1008
        %v1115 = vunpack.c.l.b16 %v1009
        %v1116 = vunpack.c.h.b16 %v1009
        %v1117 = vunpack.c.l.b16 %v1010
        %v1118 = vunpack.c.h.b16 %v1010
        %v1119 = vpack.c.b16 %v1057, %v1055
        %v1120 = vpack.c.b16 %v1058, %v1056
        %v1121 = vpack.c.b16 %v1061, %v1059
        %v1122 = vpack.c.b16 %v1062, %v1060
        %v1123 = vpack.c.b16 %v1065, %v1063
        %v1124 = vpack.c.b16 %v1066, %v1064
        %v1125 = vpack.c.b16 %v1069, %v1067
        %v1126 = vpack.c.b16 %v1070, %v1068
        %v1127 = vpack.c.b16 %v1073, %v1071
        %v1128 = vpack.c.b16 %v1074, %v1072
        %v1129 = vpack.c.b16 %v1077, %v1075
        %v1130 = vpack.c.b16 %v1078, %v1076
        %v1131 = vpack.c.b16 %v1081, %v1079
        %v1132 = vpack.c.b16 %v1082, %v1080
        %v1133 = vpack.c.b16 %v1085, %v1083
        %v1134 = vpack.c.b16 %v1086, %v1084
        %v1135 = vpack.c.b16 %v1089, %v1087
        %v1136 = vpack.c.b16 %v1090, %v1088
        %v1137 = vpack.c.b16 %v1093, %v1091
        %v1138 = vpack.c.b16 %v1094, %v1092
        %v1139 = vpack.c.b16 %v1097, %v1095
        %v1140 = vpack.c.b16 %v1098, %v1096
        %v1141 = vpack.c.b16 %v1101, %v1099
        %v1142 = vpack.c.b16 %v1102, %v1100
        %v1143 = vpack.c.b16 %v1105, %v1103
        %v1144 = vpack.c.b16 %v1106, %v1104
        %v1145 = vpack.c.b16 %v1109, %v1107
        %v1146 = vpack.c.b16 %v1110, %v1108
        %v1147 = vpack.c.b16 %v1113, %v1111
        %v1148 = vpack.c.b16 %v1114, %v1112
        %v1149 = vpack.c.b16 %v1117, %v1115
        %v1150 = vpack.c.b16 %v1118, %v1116
        %1183 = vmatprep.subr.bf16.mxu0 %v1120
        %1184 = vmatpush1.bf16.msra.mxu0 %v1119
        %1185 = vmatprep.subr.bf16.mxu0 %v1122
        %1186 = vmatpush1.bf16.msra.mxu0 %v1121
        %1187 = vmatprep.subr.bf16.mxu0 %v1124
        %1188 = vmatpush1.bf16.msra.mxu0 %v1123
        %1189 = vmatprep.subr.bf16.mxu0 %v1126
        %1190 = vmatpush1.bf16.msra.mxu0 %v1125
        %1191 = vmatprep.subr.bf16.mxu0 %v1128
        %1192 = vmatpush1.bf16.msra.mxu0 %v1127
        %1193 = vmatprep.subr.bf16.mxu0 %v1130
        %1194 = vmatpush1.bf16.msra.mxu0 %v1129
        %1195 = vmatprep.subr.bf16.mxu0 %v1132
        %1196 = vmatpush1.bf16.msra.mxu0 %v1131
        %1197 = vmatprep.subr.bf16.mxu0 %v1134
        %1198 = vmatpush1.bf16.msra.mxu0 %v1133
        %1199 = vmatprep.subr.bf16.mxu0 %v1136
        %1200 = vmatpush1.bf16.msra.mxu0 %v1135
        %1201 = vmatprep.subr.bf16.mxu0 %v1138
        %1202 = vmatpush1.bf16.msra.mxu0 %v1137
        %1203 = vmatprep.subr.bf16.mxu0 %v1140
        %1204 = vmatpush1.bf16.msra.mxu0 %v1139
        %1205 = vmatprep.subr.bf16.mxu0 %v1142
        %1206 = vmatpush1.bf16.msra.mxu0 %v1141
        %1207 = vmatprep.subr.bf16.mxu0 %v1144
        %1208 = vmatpush1.bf16.msra.mxu0 %v1143
        %1209 = vmatprep.subr.bf16.mxu0 %v1146
        %1210 = vmatpush1.bf16.msra.mxu0 %v1145
        %1211 = vmatprep.subr.bf16.mxu0 %v1148
        %1212 = vmatpush1.bf16.msra.mxu0 %v1147
        %1213 = vmatprep.subr.bf16.mxu0 %v1150
        %1214 = vmatpush1.bf16.msra.mxu0 %v1149
        %1215 = vmatprep.mubr.bf16.mxu0 %v964
        %1216 = vmatmul.mubr.bf16.gmra.mrb[0].mxu0 %v963
        %v1217 = vpop.f32.mrb[0].mxu0
        %v1218 = vadd.f32 %v1016, %v1217
        %v1219 = vpop.f32.mrb[0].mxu0
        %v1220 = vadd.f32 %v1020, %v1219
        %v1221 = vpop.f32.mrb[0].mxu0
        %v1222 = vadd.f32 %v1016, %v1221
        %v1223 = vpop.f32.mrb[0].mxu0
        %v1224 = vadd.f32 %v1020, %v1223
        %1225 = vmatprep.mubr.bf16.mxu0 %v966
        %1226 = vmatmul.mubr.bf16.gmra.mrb[0].mxu0 %v965
        %v1227 = vpop.f32.mrb[0].mxu0
        %v1228 = vadd.f32 %v1016, %v1227
        %v1229 = vpop.f32.mrb[0].mxu0
        %v1230 = vadd.f32 %v1020, %v1229
        %v1231 = vpop.f32.mrb[0].mxu0
        %v1232 = vadd.f32 %v1016, %v1231
        %v1233 = vpop.f32.mrb[0].mxu0
        %v1234 = vadd.f32 %v1020, %v1233
        %1235 = vmatprep.mubr.bf16.mxu0 %v968
        %1236 = vmatmul.mubr.bf16.gmra.mrb[0].mxu0 %v967
        %v1237 = vpop.f32.mrb[0].mxu0
        %v1238 = vadd.f32 %v1016, %v1237
        %v1239 = vpop.f32.mrb[0].mxu0
        %v1240 = vadd.f32 %v1020, %v1239
        %v1241 = vpop.f32.mrb[0].mxu0
        %v1242 = vadd.f32 %v1016, %v1241
        %v1243 = vpop.f32.mrb[0].mxu0
        %v1244 = vadd.f32 %v1020, %v1243
        %1245 = vmatprep.mubr.bf16.mxu0 %v970
        %1246 = vmatmul.mubr.bf16.gmra.mrb[0].mxu0 %v969
        %v1247 = vpop.f32.mrb[0].mxu0
        %v1248 = vadd.f32 %v1016, %v1247
        %v1249 = vpop.f32.mrb[0].mxu0
        %v1250 = vadd.f32 %v1020, %v1249
        %v1251 = vpop.f32.mrb[0].mxu0
        %v1252 = vadd.f32 %v1016, %v1251
        %v1253 = vpop.f32.mrb[0].mxu0
        %v1254 = vadd.f32 %v1020, %v1253
        %1255 = vmatprep.mubr.bf16.mxu0 %v972
        %1256 = vmatmul.mubr.bf16.gmra.mrb[0].mxu0 %v971
        %v1257 = vpop.f32.mrb[0].mxu0
        %v1258 = vadd.f32 %v1016, %v1257
        %v1259 = vpop.f32.mrb[0].mxu0
        %v1260 = vadd.f32 %v1020, %v1259
        %v1261 = vpop.f32.mrb[0].mxu0
        %v1262 = vadd.f32 %v1016, %v1261
        %v1263 = vpop.f32.mrb[0].mxu0
        %v1264 = vadd.f32 %v1020, %v1263
        %1265 = vmatprep.mubr.bf16.mxu0 %v974
        %1266 = vmatmul.mubr.bf16.gmra.mrb[0].mxu0 %v973
        %v1267 = vpop.f32.mrb[0].mxu0
        %v1268 = vadd.f32 %v1016, %v1267
        %v1269 = vpop.f32.mrb[0].mxu0
        %v1270 = vadd.f32 %v1020, %v1269
        %v1271 = vpop.f32.mrb[0].mxu0
        %v1272 = vadd.f32 %v1016, %v1271
        %v1273 = vpop.f32.mrb[0].mxu0
        %v1274 = vadd.f32 %v1020, %v1273
        %1275 = vmatprep.mubr.bf16.mxu0 %v976
        %1276 = vmatmul.mubr.bf16.gmra.mrb[0].mxu0 %v975
        %v1277 = vpop.f32.mrb[0].mxu0
        %v1278 = vadd.f32 %v1016, %v1277
        %v1279 = vpop.f32.mrb[0].mxu0
        %v1280 = vadd.f32 %v1020, %v1279
        %v1281 = vpop.f32.mrb[0].mxu0
        %v1282 = vadd.f32 %v1016, %v1281
        %v1283 = vpop.f32.mrb[0].mxu0
        %v1284 = vadd.f32 %v1020, %v1283
        %1285 = vmatprep.mubr.bf16.mxu0 %v978
        %1286 = vmatmul.mubr.bf16.gmra.mrb[0].mxu0 %v977
        %v1287 = vpop.f32.mrb[0].mxu0
        %v1288 = vadd.f32 %v1016, %v1287
        %v1289 = vpop.f32.mrb[0].mxu0
        %v1290 = vadd.f32 %v1020, %v1289
        %v1291 = vpop.f32.mrb[0].mxu0
        %v1292 = vadd.f32 %v1016, %v1291
        %v1293 = vpop.f32.mrb[0].mxu0
        %v1294 = vadd.f32 %v1020, %v1293
        %1295 = vdwg.mxu0
        %v1296 = vmax.f32 %v1218, 0.0
        %v1297 = vmax.f32 %v1220, 0.0
        %v1298 = vmax.f32 %v1222, 0.0
        %v1299 = vmax.f32 %v1224, 0.0
        %v1300 = vmax.f32 %v1228, 0.0
        %v1301 = vmax.f32 %v1230, 0.0
        %v1302 = vmax.f32 %v1232, 0.0
        %v1303 = vmax.f32 %v1234, 0.0
        %v1304 = vmax.f32 %v1238, 0.0
        %v1305 = vmax.f32 %v1240, 0.0
        %v1306 = vmax.f32 %v1242, 0.0
        %v1307 = vmax.f32 %v1244, 0.0
        %v1308 = vmax.f32 %v1248, 0.0
        %v1309 = vmax.f32 %v1250, 0.0
        %v1310 = vmax.f32 %v1252, 0.0
        %v1311 = vmax.f32 %v1254, 0.0
        %v1312 = vmax.f32 %v1258, 0.0
        %v1313 = vmax.f32 %v1260, 0.0
        %v1314 = vmax.f32 %v1262, 0.0
        %v1315 = vmax.f32 %v1264, 0.0
        %v1316 = vmax.f32 %v1268, 0.0
        %v1317 = vmax.f32 %v1270, 0.0
        %v1318 = vmax.f32 %v1272, 0.0
        %v1319 = vmax.f32 %v1274, 0.0
        %v1320 = vmax.f32 %v1278, 0.0
        %v1321 = vmax.f32 %v1280, 0.0
        %v1322 = vmax.f32 %v1282, 0.0
        %v1323 = vmax.f32 %v1284, 0.0
        %v1324 = vmax.f32 %v1288, 0.0
        %v1325 = vmax.f32 %v1290, 0.0
        %v1326 = vmax.f32 %v1292, 0.0
        %v1327 = vmax.f32 %v1294, 0.0
        %v1328 = vpack.c.bf16 %v1298, %v1296
        %v1329 = vpack.c.bf16 %v1299, %v1297
        %v1330 = vpack.c.bf16 %v1302, %v1300
        %v1331 = vpack.c.bf16 %v1303, %v1301
        %v1332 = vpack.c.bf16 %v1306, %v1304
        %v1333 = vpack.c.bf16 %v1307, %v1305
        %v1334 = vpack.c.bf16 %v1310, %v1308
        %v1335 = vpack.c.bf16 %v1311, %v1309
        %v1336 = vpack.c.bf16 %v1314, %v1312
        %v1337 = vpack.c.bf16 %v1315, %v1313
        %v1338 = vpack.c.bf16 %v1318, %v1316
        %v1339 = vpack.c.bf16 %v1319, %v1317
        %v1340 = vpack.c.bf16 %v1322, %v1320
        %v1341 = vpack.c.bf16 %v1323, %v1321
        %v1342 = vpack.c.bf16 %v1326, %v1324
        %v1343 = vpack.c.bf16 %v1327, %v1325
        %s1344 = scalar_lea.vmem %s3, 256
        %v1345 = vld [vmem:[%s1344] sm:$0xff]
        %v1346 = vld [vmem:[%s1344 + $0x8] sm:$0xff]
        %v1347 = vld [vmem:[%s1344 + $0x10] sm:$0xff]
        %v1348 = vld [vmem:[%s1344 + $0x18] sm:$0xff]
        %v1349 = vld [vmem:[%s1344 + $0x20] sm:$0xff]
        %v1350 = vld [vmem:[%s1344 + $0x28] sm:$0xff]
        %v1351 = vld [vmem:[%s1344 + $0x30] sm:$0xff]
        %v1352 = vld [vmem:[%s1344 + $0x38] sm:$0xff]
        %v1353 = vld [vmem:[%s1344 + $0x40] sm:$0xff]
        %v1354 = vld [vmem:[%s1344 + $0x48] sm:$0xff]
        %v1355 = vld [vmem:[%s1344 + $0x50] sm:$0xff]
        %v1356 = vld [vmem:[%s1344 + $0x58] sm:$0xff]
        %v1357 = vld [vmem:[%s1344 + $0x60] sm:$0xff]
        %v1358 = vld [vmem:[%s1344 + $0x68] sm:$0xff]
        %v1359 = vld [vmem:[%s1344 + $0x70] sm:$0xff]
        %v1360 = vld [vmem:[%s1344 + $0x78] sm:$0xff]
        %v1361 = vld [vmem:[%s1344 + $0x80] sm:$0xff]
        %v1362 = vld [vmem:[%s1344 + $0x88] sm:$0xff]
        %v1363 = vld [vmem:[%s1344 + $0x90] sm:$0xff]
        %v1364 = vld [vmem:[%s1344 + $0x98] sm:$0xff]
        %v1365 = vld [vmem:[%s1344 + $0xa0] sm:$0xff]
        %v1366 = vld [vmem:[%s1344 + $0xa8] sm:$0xff]
        %v1367 = vld [vmem:[%s1344 + $0xb0] sm:$0xff]
        %v1368 = vld [vmem:[%s1344 + $0xb8] sm:$0xff]
        %v1369 = vld [vmem:[%s1344 + $0xc0] sm:$0xff]
        %v1370 = vld [vmem:[%s1344 + $0xc8] sm:$0xff]
        %v1371 = vld [vmem:[%s1344 + $0xd0] sm:$0xff]
        %v1372 = vld [vmem:[%s1344 + $0xd8] sm:$0xff]
        %v1373 = vld [vmem:[%s1344 + $0xe0] sm:$0xff]
        %v1374 = vld [vmem:[%s1344 + $0xe8] sm:$0xff]
        %v1375 = vld [vmem:[%s1344 + $0xf0] sm:$0xff]
        %v1376 = vld [vmem:[%s1344 + $0xf8] sm:$0xff]
        %s1377 = scalar_lea.vmem %s4, 2
        %v1378 = vld [vmem:[%s1377] sm:$0x3]
        %v1380 = vlaneseq
        %v1381 = vshrl.u32 %v1380, 7
        %v1382 = vsub.s32 0, %v1381
        %v1383 = vrot.slane %v1378, %v1382
        %v1384 = vlaneseq
        %v1385 = vshrl.u32 %v1384, 7
        %v1386 = vsub.s32 1, %v1385
        %v1387 = vrot.slane %v1378, %v1386
        %v1422 = vunpack.c.l.b16 %v1345
        %v1423 = vunpack.c.h.b16 %v1345
        %v1424 = vunpack.c.l.b16 %v1346
        %v1425 = vunpack.c.h.b16 %v1346
        %v1426 = vunpack.c.l.b16 %v1347
        %v1427 = vunpack.c.h.b16 %v1347
        %v1428 = vunpack.c.l.b16 %v1348
        %v1429 = vunpack.c.h.b16 %v1348
        %v1430 = vunpack.c.l.b16 %v1349
        %v1431 = vunpack.c.h.b16 %v1349
        %v1432 = vunpack.c.l.b16 %v1350
        %v1433 = vunpack.c.h.b16 %v1350
        %v1434 = vunpack.c.l.b16 %v1351
        %v1435 = vunpack.c.h.b16 %v1351
        %v1436 = vunpack.c.l.b16 %v1352
        %v1437 = vunpack.c.h.b16 %v1352
        %v1438 = vunpack.c.l.b16 %v1353
        %v1439 = vunpack.c.h.b16 %v1353
        %v1440 = vunpack.c.l.b16 %v1354
        %v1441 = vunpack.c.h.b16 %v1354
        %v1442 = vunpack.c.l.b16 %v1355
        %v1443 = vunpack.c.h.b16 %v1355
        %v1444 = vunpack.c.l.b16 %v1356
        %v1445 = vunpack.c.h.b16 %v1356
        %v1446 = vunpack.c.l.b16 %v1357
        %v1447 = vunpack.c.h.b16 %v1357
        %v1448 = vunpack.c.l.b16 %v1358
        %v1449 = vunpack.c.h.b16 %v1358
        %v1450 = vunpack.c.l.b16 %v1359
        %v1451 = vunpack.c.h.b16 %v1359
        %v1452 = vunpack.c.l.b16 %v1360
        %v1453 = vunpack.c.h.b16 %v1360
        %v1454 = vunpack.c.l.b16 %v1361
        %v1455 = vunpack.c.h.b16 %v1361
        %v1456 = vunpack.c.l.b16 %v1362
        %v1457 = vunpack.c.h.b16 %v1362
        %v1458 = vunpack.c.l.b16 %v1363
        %v1459 = vunpack.c.h.b16 %v1363
        %v1460 = vunpack.c.l.b16 %v1364
        %v1461 = vunpack.c.h.b16 %v1364
        %v1462 = vunpack.c.l.b16 %v1365
        %v1463 = vunpack.c.h.b16 %v1365
        %v1464 = vunpack.c.l.b16 %v1366
        %v1465 = vunpack.c.h.b16 %v1366
        %v1466 = vunpack.c.l.b16 %v1367
        %v1467 = vunpack.c.h.b16 %v1367
        %v1468 = vunpack.c.l.b16 %v1368
        %v1469 = vunpack.c.h.b16 %v1368
        %v1470 = vunpack.c.l.b16 %v1369
        %v1471 = vunpack.c.h.b16 %v1369
        %v1472 = vunpack.c.l.b16 %v1370
        %v1473 = vunpack.c.h.b16 %v1370
        %v1474 = vunpack.c.l.b16 %v1371
        %v1475 = vunpack.c.h.b16 %v1371
        %v1476 = vunpack.c.l.b16 %v1372
        %v1477 = vunpack.c.h.b16 %v1372
        %v1478 = vunpack.c.l.b16 %v1373
        %v1479 = vunpack.c.h.b16 %v1373
        %v1480 = vunpack.c.l.b16 %v1374
        %v1481 = vunpack.c.h.b16 %v1374
        %v1482 = vunpack.c.l.b16 %v1375
        %v1483 = vunpack.c.h.b16 %v1375
        %v1484 = vunpack.c.l.b16 %v1376
        %v1485 = vunpack.c.h.b16 %v1376
        %v1486 = vpack.c.b16 %v1424, %v1422
        %v1487 = vpack.c.b16 %v1425, %v1423
        %v1488 = vpack.c.b16 %v1428, %v1426
        %v1489 = vpack.c.b16 %v1429, %v1427
        %v1490 = vpack.c.b16 %v1432, %v1430
        %v1491 = vpack.c.b16 %v1433, %v1431
        %v1492 = vpack.c.b16 %v1436, %v1434
        %v1493 = vpack.c.b16 %v1437, %v1435
        %v1494 = vpack.c.b16 %v1440, %v1438
        %v1495 = vpack.c.b16 %v1441, %v1439
        %v1496 = vpack.c.b16 %v1444, %v1442
        %v1497 = vpack.c.b16 %v1445, %v1443
        %v1498 = vpack.c.b16 %v1448, %v1446
        %v1499 = vpack.c.b16 %v1449, %v1447
        %v1500 = vpack.c.b16 %v1452, %v1450
        %v1501 = vpack.c.b16 %v1453, %v1451
        %v1502 = vpack.c.b16 %v1456, %v1454
        %v1503 = vpack.c.b16 %v1457, %v1455
        %v1504 = vpack.c.b16 %v1460, %v1458
        %v1505 = vpack.c.b16 %v1461, %v1459
        %v1506 = vpack.c.b16 %v1464, %v1462
        %v1507 = vpack.c.b16 %v1465, %v1463
        %v1508 = vpack.c.b16 %v1468, %v1466
        %v1509 = vpack.c.b16 %v1469, %v1467
        %v1510 = vpack.c.b16 %v1472, %v1470
        %v1511 = vpack.c.b16 %v1473, %v1471
        %v1512 = vpack.c.b16 %v1476, %v1474
        %v1513 = vpack.c.b16 %v1477, %v1475
        %v1514 = vpack.c.b16 %v1480, %v1478
        %v1515 = vpack.c.b16 %v1481, %v1479
        %v1516 = vpack.c.b16 %v1484, %v1482
        %v1517 = vpack.c.b16 %v1485, %v1483
        %1550 = vmatprep.subr.bf16.mxu0 %v1487
        %1551 = vmatpush1.bf16.msra.mxu0 %v1486
        %1552 = vmatprep.subr.bf16.mxu0 %v1489
        %1553 = vmatpush1.bf16.msra.mxu0 %v1488
        %1554 = vmatprep.subr.bf16.mxu0 %v1491
        %1555 = vmatpush1.bf16.msra.mxu0 %v1490
        %1556 = vmatprep.subr.bf16.mxu0 %v1493
        %1557 = vmatpush1.bf16.msra.mxu0 %v1492
        %1558 = vmatprep.subr.bf16.mxu0 %v1495
        %1559 = vmatpush1.bf16.msra.mxu0 %v1494
        %1560 = vmatprep.subr.bf16.mxu0 %v1497
        %1561 = vmatpush1.bf16.msra.mxu0 %v1496
        %1562 = vmatprep.subr.bf16.mxu0 %v1499
        %1563 = vmatpush1.bf16.msra.mxu0 %v1498
        %1564 = vmatprep.subr.bf16.mxu0 %v1501
        %1565 = vmatpush1.bf16.msra.mxu0 %v1500
        %1566 = vmatprep.subr.bf16.mxu0 %v1503
        %1567 = vmatpush1.bf16.msra.mxu0 %v1502
        %1568 = vmatprep.subr.bf16.mxu0 %v1505
        %1569 = vmatpush1.bf16.msra.mxu0 %v1504
        %1570 = vmatprep.subr.bf16.mxu0 %v1507
        %1571 = vmatpush1.bf16.msra.mxu0 %v1506
        %1572 = vmatprep.subr.bf16.mxu0 %v1509
        %1573 = vmatpush1.bf16.msra.mxu0 %v1508
        %1574 = vmatprep.subr.bf16.mxu0 %v1511
        %1575 = vmatpush1.bf16.msra.mxu0 %v1510
        %1576 = vmatprep.subr.bf16.mxu0 %v1513
        %1577 = vmatpush1.bf16.msra.mxu0 %v1512
        %1578 = vmatprep.subr.bf16.mxu0 %v1515
        %1579 = vmatpush1.bf16.msra.mxu0 %v1514
        %1580 = vmatprep.subr.bf16.mxu0 %v1517
        %1581 = vmatpush1.bf16.msra.mxu0 %v1516
        %1582 = vmatprep.mubr.bf16.mxu0 %v1329
        %1583 = vmatmul.mubr.bf16.gmra.mrb[0].mxu0 %v1328
        %v1584 = vpop.f32.mrb[0].mxu0
        %v1585 = vadd.f32 %v1383, %v1584
        %v1586 = vpop.f32.mrb[0].mxu0
        %v1587 = vadd.f32 %v1387, %v1586
        %v1588 = vpop.f32.mrb[0].mxu0
        %v1589 = vadd.f32 %v1383, %v1588
        %v1590 = vpop.f32.mrb[0].mxu0
        %v1591 = vadd.f32 %v1387, %v1590
        %1592 = vmatprep.mubr.bf16.mxu0 %v1331
        %1593 = vmatmul.mubr.bf16.gmra.mrb[0].mxu0 %v1330
        %v1594 = vpop.f32.mrb[0].mxu0
        %v1595 = vadd.f32 %v1383, %v1594
        %v1596 = vpop.f32.mrb[0].mxu0
        %v1597 = vadd.f32 %v1387, %v1596
        %v1598 = vpop.f32.mrb[0].mxu0
        %v1599 = vadd.f32 %v1383, %v1598
        %v1600 = vpop.f32.mrb[0].mxu0
        %v1601 = vadd.f32 %v1387, %v1600
        %1602 = vmatprep.mubr.bf16.mxu0 %v1333
        %1603 = vmatmul.mubr.bf16.gmra.mrb[0].mxu0 %v1332
        %v1604 = vpop.f32.mrb[0].mxu0
        %v1605 = vadd.f32 %v1383, %v1604
        %v1606 = vpop.f32.mrb[0].mxu0
        %v1607 = vadd.f32 %v1387, %v1606
        %v1608 = vpop.f32.mrb[0].mxu0
        %v1609 = vadd.f32 %v1383, %v1608
        %v1610 = vpop.f32.mrb[0].mxu0
        %v1611 = vadd.f32 %v1387, %v1610
        %1612 = vmatprep.mubr.bf16.mxu0 %v1335
        %1613 = vmatmul.mubr.bf16.gmra.mrb[0].mxu0 %v1334
        %v1614 = vpop.f32.mrb[0].mxu0
        %v1615 = vadd.f32 %v1383, %v1614
        %v1616 = vpop.f32.mrb[0].mxu0
        %v1617 = vadd.f32 %v1387, %v1616
        %v1618 = vpop.f32.mrb[0].mxu0
        %v1619 = vadd.f32 %v1383, %v1618
        %v1620 = vpop.f32.mrb[0].mxu0
        %v1621 = vadd.f32 %v1387, %v1620
        %1622 = vmatprep.mubr.bf16.mxu0 %v1337
        %1623 = vmatmul.mubr.bf16.gmra.mrb[0].mxu0 %v1336
        %v1624 = vpop.f32.mrb[0].mxu0
        %v1625 = vadd.f32 %v1383, %v1624
        %v1626 = vpop.f32.mrb[0].mxu0
        %v1627 = vadd.f32 %v1387, %v1626
        %v1628 = vpop.f32.mrb[0].mxu0
        %v1629 = vadd.f32 %v1383, %v1628
        %v1630 = vpop.f32.mrb[0].mxu0
        %v1631 = vadd.f32 %v1387, %v1630
        %1632 = vmatprep.mubr.bf16.mxu0 %v1339
        %1633 = vmatmul.mubr.bf16.gmra.mrb[0].mxu0 %v1338
        %v1634 = vpop.f32.mrb[0].mxu0
        %v1635 = vadd.f32 %v1383, %v1634
        %v1636 = vpop.f32.mrb[0].mxu0
        %v1637 = vadd.f32 %v1387, %v1636
        %v1638 = vpop.f32.mrb[0].mxu0
        %v1639 = vadd.f32 %v1383, %v1638
        %v1640 = vpop.f32.mrb[0].mxu0
        %v1641 = vadd.f32 %v1387, %v1640
        %1642 = vmatprep.mubr.bf16.mxu0 %v1341
        %1643 = vmatmul.mubr.bf16.gmra.mrb[0].mxu0 %v1340
        %v1644 = vpop.f32.mrb[0].mxu0
        %v1645 = vadd.f32 %v1383, %v1644
        %v1646 = vpop.f32.mrb[0].mxu0
        %v1647 = vadd.f32 %v1387, %v1646
        %v1648 = vpop.f32.mrb[0].mxu0
        %v1649 = vadd.f32 %v1383, %v1648
        %v1650 = vpop.f32.mrb[0].mxu0
        %v1651 = vadd.f32 %v1387, %v1650
        %1652 = vmatprep.mubr.bf16.mxu0 %v1343
        %1653 = vmatmul.mubr.bf16.gmra.mrb[0].mxu0 %v1342
        %v1654 = vpop.f32.mrb[0].mxu0
        %v1655 = vadd.f32 %v1383, %v1654
        %v1656 = vpop.f32.mrb[0].mxu0
        %v1657 = vadd.f32 %v1387, %v1656
        %v1658 = vpop.f32.mrb[0].mxu0
        %v1659 = vadd.f32 %v1383, %v1658
        %v1660 = vpop.f32.mrb[0].mxu0
        %v1661 = vadd.f32 %v1387, %v1660
        %1662 = vdwg.mxu0
        %v1663 = vmax.f32 %v1585, 0.0
        %v1664 = vmax.f32 %v1587, 0.0
        %v1665 = vmax.f32 %v1589, 0.0
        %v1666 = vmax.f32 %v1591, 0.0
        %v1667 = vmax.f32 %v1595, 0.0
        %v1668 = vmax.f32 %v1597, 0.0
        %v1669 = vmax.f32 %v1599, 0.0
        %v1670 = vmax.f32 %v1601, 0.0
        %v1671 = vmax.f32 %v1605, 0.0
        %v1672 = vmax.f32 %v1607, 0.0
        %v1673 = vmax.f32 %v1609, 0.0
        %v1674 = vmax.f32 %v1611, 0.0
        %v1675 = vmax.f32 %v1615, 0.0
        %v1676 = vmax.f32 %v1617, 0.0
        %v1677 = vmax.f32 %v1619, 0.0
        %v1678 = vmax.f32 %v1621, 0.0
        %v1679 = vmax.f32 %v1625, 0.0
        %v1680 = vmax.f32 %v1627, 0.0
        %v1681 = vmax.f32 %v1629, 0.0
        %v1682 = vmax.f32 %v1631, 0.0
        %v1683 = vmax.f32 %v1635, 0.0
        %v1684 = vmax.f32 %v1637, 0.0
        %v1685 = vmax.f32 %v1639, 0.0
        %v1686 = vmax.f32 %v1641, 0.0
        %v1687 = vmax.f32 %v1645, 0.0
        %v1688 = vmax.f32 %v1647, 0.0
        %v1689 = vmax.f32 %v1649, 0.0
        %v1690 = vmax.f32 %v1651, 0.0
        %v1691 = vmax.f32 %v1655, 0.0
        %v1692 = vmax.f32 %v1657, 0.0
        %v1693 = vmax.f32 %v1659, 0.0
        %v1694 = vmax.f32 %v1661, 0.0
        %v1695 = vpack.c.bf16 %v1665, %v1663
        %v1696 = vpack.c.bf16 %v1666, %v1664
        %v1697 = vpack.c.bf16 %v1669, %v1667
        %v1698 = vpack.c.bf16 %v1670, %v1668
        %v1699 = vpack.c.bf16 %v1673, %v1671
        %v1700 = vpack.c.bf16 %v1674, %v1672
        %v1701 = vpack.c.bf16 %v1677, %v1675
        %v1702 = vpack.c.bf16 %v1678, %v1676
        %v1703 = vpack.c.bf16 %v1681, %v1679
        %v1704 = vpack.c.bf16 %v1682, %v1680
        %v1705 = vpack.c.bf16 %v1685, %v1683
        %v1706 = vpack.c.bf16 %v1686, %v1684
        %v1707 = vpack.c.bf16 %v1689, %v1687
        %v1708 = vpack.c.bf16 %v1690, %v1688
        %v1709 = vpack.c.bf16 %v1693, %v1691
        %v1710 = vpack.c.bf16 %v1694, %v1692
        %s1711 = scalar_lea.vmem %s3, 512
        %v1712 = vld [vmem:[%s1711] sm:$0xff]
        %v1713 = vld [vmem:[%s1711 + $0x8] sm:$0xff]
        %v1714 = vld [vmem:[%s1711 + $0x10] sm:$0xff]
        %v1715 = vld [vmem:[%s1711 + $0x18] sm:$0xff]
        %v1716 = vld [vmem:[%s1711 + $0x20] sm:$0xff]
        %v1717 = vld [vmem:[%s1711 + $0x28] sm:$0xff]
        %v1718 = vld [vmem:[%s1711 + $0x30] sm:$0xff]
        %v1719 = vld [vmem:[%s1711 + $0x38] sm:$0xff]
        %v1720 = vld [vmem:[%s1711 + $0x40] sm:$0xff]
        %v1721 = vld [vmem:[%s1711 + $0x48] sm:$0xff]
        %v1722 = vld [vmem:[%s1711 + $0x50] sm:$0xff]
        %v1723 = vld [vmem:[%s1711 + $0x58] sm:$0xff]
        %v1724 = vld [vmem:[%s1711 + $0x60] sm:$0xff]
        %v1725 = vld [vmem:[%s1711 + $0x68] sm:$0xff]
        %v1726 = vld [vmem:[%s1711 + $0x70] sm:$0xff]
        %v1727 = vld [vmem:[%s1711 + $0x78] sm:$0xff]
        %v1728 = vld [vmem:[%s1711 + $0x80] sm:$0xff]
        %v1729 = vld [vmem:[%s1711 + $0x88] sm:$0xff]
        %v1730 = vld [vmem:[%s1711 + $0x90] sm:$0xff]
        %v1731 = vld [vmem:[%s1711 + $0x98] sm:$0xff]
        %v1732 = vld [vmem:[%s1711 + $0xa0] sm:$0xff]
        %v1733 = vld [vmem:[%s1711 + $0xa8] sm:$0xff]
        %v1734 = vld [vmem:[%s1711 + $0xb0] sm:$0xff]
        %v1735 = vld [vmem:[%s1711 + $0xb8] sm:$0xff]
        %v1736 = vld [vmem:[%s1711 + $0xc0] sm:$0xff]
        %v1737 = vld [vmem:[%s1711 + $0xc8] sm:$0xff]
        %v1738 = vld [vmem:[%s1711 + $0xd0] sm:$0xff]
        %v1739 = vld [vmem:[%s1711 + $0xd8] sm:$0xff]
        %v1740 = vld [vmem:[%s1711 + $0xe0] sm:$0xff]
        %v1741 = vld [vmem:[%s1711 + $0xe8] sm:$0xff]
        %v1742 = vld [vmem:[%s1711 + $0xf0] sm:$0xff]
        %v1743 = vld [vmem:[%s1711 + $0xf8] sm:$0xff]
        %s1744 = scalar_lea.vmem %s4, 4
        %v1745 = vld [vmem:[%s1744] sm:$0x3]
        %v1747 = vlaneseq
        %v1748 = vshrl.u32 %v1747, 7
        %v1749 = vsub.s32 0, %v1748
        %v1750 = vrot.slane %v1745, %v1749
        %v1751 = vlaneseq
        %v1752 = vshrl.u32 %v1751, 7
        %v1753 = vsub.s32 1, %v1752
        %v1754 = vrot.slane %v1745, %v1753
        %v1789 = vunpack.c.l.b16 %v1712
        %v1790 = vunpack.c.h.b16 %v1712
        %v1791 = vunpack.c.l.b16 %v1713
        %v1792 = vunpack.c.h.b16 %v1713
        %v1793 = vunpack.c.l.b16 %v1714
        %v1794 = vunpack.c.h.b16 %v1714
        %v1795 = vunpack.c.l.b16 %v1715
        %v1796 = vunpack.c.h.b16 %v1715
        %v1797 = vunpack.c.l.b16 %v1716
        %v1798 = vunpack.c.h.b16 %v1716
        %v1799 = vunpack.c.l.b16 %v1717
        %v1800 = vunpack.c.h.b16 %v1717
        %v1801 = vunpack.c.l.b16 %v1718
        %v1802 = vunpack.c.h.b16 %v1718
        %v1803 = vunpack.c.l.b16 %v1719
        %v1804 = vunpack.c.h.b16 %v1719
        %v1805 = vunpack.c.l.b16 %v1720
        %v1806 = vunpack.c.h.b16 %v1720
        %v1807 = vunpack.c.l.b16 %v1721
        %v1808 = vunpack.c.h.b16 %v1721
        %v1809 = vunpack.c.l.b16 %v1722
        %v1810 = vunpack.c.h.b16 %v1722
        %v1811 = vunpack.c.l.b16 %v1723
        %v1812 = vunpack.c.h.b16 %v1723
        %v1813 = vunpack.c.l.b16 %v1724
        %v1814 = vunpack.c.h.b16 %v1724
        %v1815 = vunpack.c.l.b16 %v1725
        %v1816 = vunpack.c.h.b16 %v1725
        %v1817 = vunpack.c.l.b16 %v1726
        %v1818 = vunpack.c.h.b16 %v1726
        %v1819 = vunpack.c.l.b16 %v1727
        %v1820 = vunpack.c.h.b16 %v1727
        %v1821 = vunpack.c.l.b16 %v1728
        %v1822 = vunpack.c.h.b16 %v1728
        %v1823 = vunpack.c.l.b16 %v1729
        %v1824 = vunpack.c.h.b16 %v1729
        %v1825 = vunpack.c.l.b16 %v1730
        %v1826 = vunpack.c.h.b16 %v1730
        %v1827 = vunpack.c.l.b16 %v1731
        %v1828 = vunpack.c.h.b16 %v1731
        %v1829 = vunpack.c.l.b16 %v1732
        %v1830 = vunpack.c.h.b16 %v1732
        %v1831 = vunpack.c.l.b16 %v1733
        %v1832 = vunpack.c.h.b16 %v1733
        %v1833 = vunpack.c.l.b16 %v1734
        %v1834 = vunpack.c.h.b16 %v1734
        %v1835 = vunpack.c.l.b16 %v1735
        %v1836 = vunpack.c.h.b16 %v1735
        %v1837 = vunpack.c.l.b16 %v1736
        %v1838 = vunpack.c.h.b16 %v1736
        %v1839 = vunpack.c.l.b16 %v1737
        %v1840 = vunpack.c.h.b16 %v1737
        %v1841 = vunpack.c.l.b16 %v1738
        %v1842 = vunpack.c.h.b16 %v1738
        %v1843 = vunpack.c.l.b16 %v1739
        %v1844 = vunpack.c.h.b16 %v1739
        %v1845 = vunpack.c.l.b16 %v1740
        %v1846 = vunpack.c.h.b16 %v1740
        %v1847 = vunpack.c.l.b16 %v1741
        %v1848 = vunpack.c.h.b16 %v1741
        %v1849 = vunpack.c.l.b16 %v1742
        %v1850 = vunpack.c.h.b16 %v1742
        %v1851 = vunpack.c.l.b16 %v1743
        %v1852 = vunpack.c.h.b16 %v1743
        %v1853 = vpack.c.b16 %v1791, %v1789
        %v1854 = vpack.c.b16 %v1792, %v1790
        %v1855 = vpack.c.b16 %v1795, %v1793
        %v1856 = vpack.c.b16 %v1796, %v1794
        %v1857 = vpack.c.b16 %v1799, %v1797
        %v1858 = vpack.c.b16 %v1800, %v1798
        %v1859 = vpack.c.b16 %v1803, %v1801
        %v1860 = vpack.c.b16 %v1804, %v1802
        %v1861 = vpack.c.b16 %v1807, %v1805
        %v1862 = vpack.c.b16 %v1808, %v1806
        %v1863 = vpack.c.b16 %v1811, %v1809
        %v1864 = vpack.c.b16 %v1812, %v1810
        %v1865 = vpack.c.b16 %v1815, %v1813
        %v1866 = vpack.c.b16 %v1816, %v1814
        %v1867 = vpack.c.b16 %v1819, %v1817
        %v1868 = vpack.c.b16 %v1820, %v1818
        %v1869 = vpack.c.b16 %v1823, %v1821
        %v1870 = vpack.c.b16 %v1824, %v1822
        %v1871 = vpack.c.b16 %v1827, %v1825
        %v1872 = vpack.c.b16 %v1828, %v1826
        %v1873 = vpack.c.b16 %v1831, %v1829
        %v1874 = vpack.c.b16 %v1832, %v1830
        %v1875 = vpack.c.b16 %v1835, %v1833
        %v1876 = vpack.c.b16 %v1836, %v1834
        %v1877 = vpack.c.b16 %v1839, %v1837
        %v1878 = vpack.c.b16 %v1840, %v1838
        %v1879 = vpack.c.b16 %v1843, %v1841
        %v1880 = vpack.c.b16 %v1844, %v1842
        %v1881 = vpack.c.b16 %v1847, %v1845
        %v1882 = vpack.c.b16 %v1848, %v1846
        %v1883 = vpack.c.b16 %v1851, %v1849
        %v1884 = vpack.c.b16 %v1852, %v1850
        %1917 = vmatprep.subr.bf16.mxu0 %v1854
        %1918 = vmatpush1.bf16.msra.mxu0 %v1853
        %1919 = vmatprep.subr.bf16.mxu0 %v1856
        %1920 = vmatpush1.bf16.msra.mxu0 %v1855
        %1921 = vmatprep.subr.bf16.mxu0 %v1858
        %1922 = vmatpush1.bf16.msra.mxu0 %v1857
        %1923 = vmatprep.subr.bf16.mxu0 %v1860
        %1924 = vmatpush1.bf16.msra.mxu0 %v1859
        %1925 = vmatprep.subr.bf16.mxu0 %v1862
        %1926 = vmatpush1.bf16.msra.mxu0 %v1861
        %1927 = vmatprep.subr.bf16.mxu0 %v1864
        %1928 = vmatpush1.bf16.msra.mxu0 %v1863
        %1929 = vmatprep.subr.bf16.mxu0 %v1866
        %1930 = vmatpush1.bf16.msra.mxu0 %v1865
        %1931 = vmatprep.subr.bf16.mxu0 %v1868
        %1932 = vmatpush1.bf16.msra.mxu0 %v1867
        %1933 = vmatprep.subr.bf16.mxu0 %v1870
        %1934 = vmatpush1.bf16.msra.mxu0 %v1869
        %1935 = vmatprep.subr.bf16.mxu0 %v1872
        %1936 = vmatpush1.bf16.msra.mxu0 %v1871
        %1937 = vmatprep.subr.bf16.mxu0 %v1874
        %1938 = vmatpush1.bf16.msra.mxu0 %v1873
        %1939 = vmatprep.subr.bf16.mxu0 %v1876
        %1940 = vmatpush1.bf16.msra.mxu0 %v1875
        %1941 = vmatprep.subr.bf16.mxu0 %v1878
        %1942 = vmatpush1.bf16.msra.mxu0 %v1877
        %1943 = vmatprep.subr.bf16.mxu0 %v1880
        %1944 = vmatpush1.bf16.msra.mxu0 %v1879
        %1945 = vmatprep.subr.bf16.mxu0 %v1882
        %1946 = vmatpush1.bf16.msra.mxu0 %v1881
        %1947 = vmatprep.subr.bf16.mxu0 %v1884
        %1948 = vmatpush1.bf16.msra.mxu0 %v1883
        %1949 = vmatprep.mubr.bf16.mxu0 %v1696
        %1950 = vmatmul.mubr.bf16.gmra.mrb[0].mxu0 %v1695
        %v1951 = vpop.f32.mrb[0].mxu0
        %v1952 = vadd.f32 %v1750, %v1951
        %v1953 = vpop.f32.mrb[0].mxu0
        %v1954 = vadd.f32 %v1754, %v1953
        %v1955 = vpop.f32.mrb[0].mxu0
        %v1956 = vadd.f32 %v1750, %v1955
        %v1957 = vpop.f32.mrb[0].mxu0
        %v1958 = vadd.f32 %v1754, %v1957
        %1959 = vmatprep.mubr.bf16.mxu0 %v1698
        %1960 = vmatmul.mubr.bf16.gmra.mrb[0].mxu0 %v1697
        %v1961 = vpop.f32.mrb[0].mxu0
        %v1962 = vadd.f32 %v1750, %v1961
        %v1963 = vpop.f32.mrb[0].mxu0
        %v1964 = vadd.f32 %v1754, %v1963
        %v1965 = vpop.f32.mrb[0].mxu0
        %v1966 = vadd.f32 %v1750, %v1965
        %v1967 = vpop.f32.mrb[0].mxu0
        %v1968 = vadd.f32 %v1754, %v1967
        %1969 = vmatprep.mubr.bf16.mxu0 %v1700
        %1970 = vmatmul.mubr.bf16.gmra.mrb[0].mxu0 %v1699
        %v1971 = vpop.f32.mrb[0].mxu0
        %v1972 = vadd.f32 %v1750, %v1971
        %v1973 = vpop.f32.mrb[0].mxu0
        %v1974 = vadd.f32 %v1754, %v1973
        %v1975 = vpop.f32.mrb[0].mxu0
        %v1976 = vadd.f32 %v1750, %v1975
        %v1977 = vpop.f32.mrb[0].mxu0
        %v1978 = vadd.f32 %v1754, %v1977
        %1979 = vmatprep.mubr.bf16.mxu0 %v1702
        %1980 = vmatmul.mubr.bf16.gmra.mrb[0].mxu0 %v1701
        %v1981 = vpop.f32.mrb[0].mxu0
        %v1982 = vadd.f32 %v1750, %v1981
        %v1983 = vpop.f32.mrb[0].mxu0
        %v1984 = vadd.f32 %v1754, %v1983
        %v1985 = vpop.f32.mrb[0].mxu0
        %v1986 = vadd.f32 %v1750, %v1985
        %v1987 = vpop.f32.mrb[0].mxu0
        %v1988 = vadd.f32 %v1754, %v1987
        %1989 = vmatprep.mubr.bf16.mxu0 %v1704
        %1990 = vmatmul.mubr.bf16.gmra.mrb[0].mxu0 %v1703
        %v1991 = vpop.f32.mrb[0].mxu0
        %v1992 = vadd.f32 %v1750, %v1991
        %v1993 = vpop.f32.mrb[0].mxu0
        %v1994 = vadd.f32 %v1754, %v1993
        %v1995 = vpop.f32.mrb[0].mxu0
        %v1996 = vadd.f32 %v1750, %v1995
        %v1997 = vpop.f32.mrb[0].mxu0
        %v1998 = vadd.f32 %v1754, %v1997
        %1999 = vmatprep.mubr.bf16.mxu0 %v1706
        %2000 = vmatmul.mubr.bf16.gmra.mrb[0].mxu0 %v1705
        %v2001 = vpop.f32.mrb[0].mxu0
        %v2002 = vadd.f32 %v1750, %v2001
        %v2003 = vpop.f32.mrb[0].mxu0
        %v2004 = vadd.f32 %v1754, %v2003
        %v2005 = vpop.f32.mrb[0].mxu0
        %v2006 = vadd.f32 %v1750, %v2005
        %v2007 = vpop.f32.mrb[0].mxu0
        %v2008 = vadd.f32 %v1754, %v2007
        %2009 = vmatprep.mubr.bf16.mxu0 %v1708
        %2010 = vmatmul.mubr.bf16.gmra.mrb[0].mxu0 %v1707
        %v2011 = vpop.f32.mrb[0].mxu0
        %v2012 = vadd.f32 %v1750, %v2011
        %v2013 = vpop.f32.mrb[0].mxu0
        %v2014 = vadd.f32 %v1754, %v2013
        %v2015 = vpop.f32.mrb[0].mxu0
        %v2016 = vadd.f32 %v1750, %v2015
        %v2017 = vpop.f32.mrb[0].mxu0
        %v2018 = vadd.f32 %v1754, %v2017
        %2019 = vmatprep.mubr.bf16.mxu0 %v1710
        %2020 = vmatmul.mubr.bf16.gmra.mrb[0].mxu0 %v1709
        %v2021 = vpop.f32.mrb[0].mxu0
        %v2022 = vadd.f32 %v1750, %v2021
        %v2023 = vpop.f32.mrb[0].mxu0
        %v2024 = vadd.f32 %v1754, %v2023
        %v2025 = vpop.f32.mrb[0].mxu0
        %v2026 = vadd.f32 %v1750, %v2025
        %v2027 = vpop.f32.mrb[0].mxu0
        %v2028 = vadd.f32 %v1754, %v2027
        %2029 = vdwg.mxu0
        %v2030 = vmax.f32 %v1952, 0.0
        %v2031 = vmax.f32 %v1954, 0.0
        %v2032 = vmax.f32 %v1956, 0.0
        %v2033 = vmax.f32 %v1958, 0.0
        %v2034 = vmax.f32 %v1962, 0.0
        %v2035 = vmax.f32 %v1964, 0.0
        %v2036 = vmax.f32 %v1966, 0.0
        %v2037 = vmax.f32 %v1968, 0.0
        %v2038 = vmax.f32 %v1972, 0.0
        %v2039 = vmax.f32 %v1974, 0.0
        %v2040 = vmax.f32 %v1976, 0.0
        %v2041 = vmax.f32 %v1978, 0.0
        %v2042 = vmax.f32 %v1982, 0.0
        %v2043 = vmax.f32 %v1984, 0.0
        %v2044 = vmax.f32 %v1986, 0.0
        %v2045 = vmax.f32 %v1988, 0.0
        %v2046 = vmax.f32 %v1992, 0.0
        %v2047 = vmax.f32 %v1994, 0.0
        %v2048 = vmax.f32 %v1996, 0.0
        %v2049 = vmax.f32 %v1998, 0.0
        %v2050 = vmax.f32 %v2002, 0.0
        %v2051 = vmax.f32 %v2004, 0.0
        %v2052 = vmax.f32 %v2006, 0.0
        %v2053 = vmax.f32 %v2008, 0.0
        %v2054 = vmax.f32 %v2012, 0.0
        %v2055 = vmax.f32 %v2014, 0.0
        %v2056 = vmax.f32 %v2016, 0.0
        %v2057 = vmax.f32 %v2018, 0.0
        %v2058 = vmax.f32 %v2022, 0.0
        %v2059 = vmax.f32 %v2024, 0.0
        %v2060 = vmax.f32 %v2026, 0.0
        %v2061 = vmax.f32 %v2028, 0.0
        %v2062 = vpack.c.bf16 %v2032, %v2030
        %v2063 = vpack.c.bf16 %v2033, %v2031
        %v2064 = vpack.c.bf16 %v2036, %v2034
        %v2065 = vpack.c.bf16 %v2037, %v2035
        %v2066 = vpack.c.bf16 %v2040, %v2038
        %v2067 = vpack.c.bf16 %v2041, %v2039
        %v2068 = vpack.c.bf16 %v2044, %v2042
        %v2069 = vpack.c.bf16 %v2045, %v2043
        %v2070 = vpack.c.bf16 %v2048, %v2046
        %v2071 = vpack.c.bf16 %v2049, %v2047
        %v2072 = vpack.c.bf16 %v2052, %v2050
        %v2073 = vpack.c.bf16 %v2053, %v2051
        %v2074 = vpack.c.bf16 %v2056, %v2054
        %v2075 = vpack.c.bf16 %v2057, %v2055
        %v2076 = vpack.c.bf16 %v2060, %v2058
        %v2077 = vpack.c.bf16 %v2061, %v2059
        %s2078 = scalar_lea.vmem %s3, 768
        %v2079 = vld [vmem:[%s2078] sm:$0xff]
        %v2080 = vld [vmem:[%s2078 + $0x8] sm:$0xff]
        %v2081 = vld [vmem:[%s2078 + $0x10] sm:$0xff]
        %v2082 = vld [vmem:[%s2078 + $0x18] sm:$0xff]
        %v2083 = vld [vmem:[%s2078 + $0x20] sm:$0xff]
        %v2084 = vld [vmem:[%s2078 + $0x28] sm:$0xff]
        %v2085 = vld [vmem:[%s2078 + $0x30] sm:$0xff]
        %v2086 = vld [vmem:[%s2078 + $0x38] sm:$0xff]
        %v2087 = vld [vmem:[%s2078 + $0x40] sm:$0xff]
        %v2088 = vld [vmem:[%s2078 + $0x48] sm:$0xff]
        %v2089 = vld [vmem:[%s2078 + $0x50] sm:$0xff]
        %v2090 = vld [vmem:[%s2078 + $0x58] sm:$0xff]
        %v2091 = vld [vmem:[%s2078 + $0x60] sm:$0xff]
        %v2092 = vld [vmem:[%s2078 + $0x68] sm:$0xff]
        %v2093 = vld [vmem:[%s2078 + $0x70] sm:$0xff]
        %v2094 = vld [vmem:[%s2078 + $0x78] sm:$0xff]
        %v2095 = vld [vmem:[%s2078 + $0x80] sm:$0xff]
        %v2096 = vld [vmem:[%s2078 + $0x88] sm:$0xff]
        %v2097 = vld [vmem:[%s2078 + $0x90] sm:$0xff]
        %v2098 = vld [vmem:[%s2078 + $0x98] sm:$0xff]
        %v2099 = vld [vmem:[%s2078 + $0xa0] sm:$0xff]
        %v2100 = vld [vmem:[%s2078 + $0xa8] sm:$0xff]
        %v2101 = vld [vmem:[%s2078 + $0xb0] sm:$0xff]
        %v2102 = vld [vmem:[%s2078 + $0xb8] sm:$0xff]
        %v2103 = vld [vmem:[%s2078 + $0xc0] sm:$0xff]
        %v2104 = vld [vmem:[%s2078 + $0xc8] sm:$0xff]
        %v2105 = vld [vmem:[%s2078 + $0xd0] sm:$0xff]
        %v2106 = vld [vmem:[%s2078 + $0xd8] sm:$0xff]
        %v2107 = vld [vmem:[%s2078 + $0xe0] sm:$0xff]
        %v2108 = vld [vmem:[%s2078 + $0xe8] sm:$0xff]
        %v2109 = vld [vmem:[%s2078 + $0xf0] sm:$0xff]
        %v2110 = vld [vmem:[%s2078 + $0xf8] sm:$0xff]
        %s2111 = scalar_lea.vmem %s4, 6
        %v2112 = vld [vmem:[%s2111] sm:$0x3]
        %v2114 = vlaneseq
        %v2115 = vshrl.u32 %v2114, 7
        %v2116 = vsub.s32 0, %v2115
        %v2117 = vrot.slane %v2112, %v2116
        %v2118 = vlaneseq
        %v2119 = vshrl.u32 %v2118, 7
        %v2120 = vsub.s32 1, %v2119
        %v2121 = vrot.slane %v2112, %v2120
        %v2156 = vunpack.c.l.b16 %v2079
        %v2157 = vunpack.c.h.b16 %v2079
        %v2158 = vunpack.c.l.b16 %v2080
        %v2159 = vunpack.c.h.b16 %v2080
        %v2160 = vunpack.c.l.b16 %v2081
        %v2161 = vunpack.c.h.b16 %v2081
        %v2162 = vunpack.c.l.b16 %v2082
        %v2163 = vunpack.c.h.b16 %v2082
        %v2164 = vunpack.c.l.b16 %v2083
        %v2165 = vunpack.c.h.b16 %v2083
        %v2166 = vunpack.c.l.b16 %v2084
        %v2167 = vunpack.c.h.b16 %v2084
        %v2168 = vunpack.c.l.b16 %v2085
        %v2169 = vunpack.c.h.b16 %v2085
        %v2170 = vunpack.c.l.b16 %v2086
        %v2171 = vunpack.c.h.b16 %v2086
        %v2172 = vunpack.c.l.b16 %v2087
        %v2173 = vunpack.c.h.b16 %v2087
        %v2174 = vunpack.c.l.b16 %v2088
        %v2175 = vunpack.c.h.b16 %v2088
        %v2176 = vunpack.c.l.b16 %v2089
        %v2177 = vunpack.c.h.b16 %v2089
        %v2178 = vunpack.c.l.b16 %v2090
        %v2179 = vunpack.c.h.b16 %v2090
        %v2180 = vunpack.c.l.b16 %v2091
        %v2181 = vunpack.c.h.b16 %v2091
        %v2182 = vunpack.c.l.b16 %v2092
        %v2183 = vunpack.c.h.b16 %v2092
        %v2184 = vunpack.c.l.b16 %v2093
        %v2185 = vunpack.c.h.b16 %v2093
        %v2186 = vunpack.c.l.b16 %v2094
        %v2187 = vunpack.c.h.b16 %v2094
        %v2188 = vunpack.c.l.b16 %v2095
        %v2189 = vunpack.c.h.b16 %v2095
        %v2190 = vunpack.c.l.b16 %v2096
        %v2191 = vunpack.c.h.b16 %v2096
        %v2192 = vunpack.c.l.b16 %v2097
        %v2193 = vunpack.c.h.b16 %v2097
        %v2194 = vunpack.c.l.b16 %v2098
        %v2195 = vunpack.c.h.b16 %v2098
        %v2196 = vunpack.c.l.b16 %v2099
        %v2197 = vunpack.c.h.b16 %v2099
        %v2198 = vunpack.c.l.b16 %v2100
        %v2199 = vunpack.c.h.b16 %v2100
        %v2200 = vunpack.c.l.b16 %v2101
        %v2201 = vunpack.c.h.b16 %v2101
        %v2202 = vunpack.c.l.b16 %v2102
        %v2203 = vunpack.c.h.b16 %v2102
        %v2204 = vunpack.c.l.b16 %v2103
        %v2205 = vunpack.c.h.b16 %v2103
        %v2206 = vunpack.c.l.b16 %v2104
        %v2207 = vunpack.c.h.b16 %v2104
        %v2208 = vunpack.c.l.b16 %v2105
        %v2209 = vunpack.c.h.b16 %v2105
        %v2210 = vunpack.c.l.b16 %v2106
        %v2211 = vunpack.c.h.b16 %v2106
        %v2212 = vunpack.c.l.b16 %v2107
        %v2213 = vunpack.c.h.b16 %v2107
        %v2214 = vunpack.c.l.b16 %v2108
        %v2215 = vunpack.c.h.b16 %v2108
        %v2216 = vunpack.c.l.b16 %v2109
        %v2217 = vunpack.c.h.b16 %v2109
        %v2218 = vunpack.c.l.b16 %v2110
        %v2219 = vunpack.c.h.b16 %v2110
        %v2220 = vpack.c.b16 %v2158, %v2156
        %v2221 = vpack.c.b16 %v2159, %v2157
        %v2222 = vpack.c.b16 %v2162, %v2160
        %v2223 = vpack.c.b16 %v2163, %v2161
        %v2224 = vpack.c.b16 %v2166, %v2164
        %v2225 = vpack.c.b16 %v2167, %v2165
        %v2226 = vpack.c.b16 %v2170, %v2168
        %v2227 = vpack.c.b16 %v2171, %v2169
        %v2228 = vpack.c.b16 %v2174, %v2172
        %v2229 = vpack.c.b16 %v2175, %v2173
        %v2230 = vpack.c.b16 %v2178, %v2176
        %v2231 = vpack.c.b16 %v2179, %v2177
        %v2232 = vpack.c.b16 %v2182, %v2180
        %v2233 = vpack.c.b16 %v2183, %v2181
        %v2234 = vpack.c.b16 %v2186, %v2184
        %v2235 = vpack.c.b16 %v2187, %v2185
        %v2236 = vpack.c.b16 %v2190, %v2188
        %v2237 = vpack.c.b16 %v2191, %v2189
        %v2238 = vpack.c.b16 %v2194, %v2192
        %v2239 = vpack.c.b16 %v2195, %v2193
        %v2240 = vpack.c.b16 %v2198, %v2196
        %v2241 = vpack.c.b16 %v2199, %v2197
        %v2242 = vpack.c.b16 %v2202, %v2200
        %v2243 = vpack.c.b16 %v2203, %v2201
        %v2244 = vpack.c.b16 %v2206, %v2204
        %v2245 = vpack.c.b16 %v2207, %v2205
        %v2246 = vpack.c.b16 %v2210, %v2208
        %v2247 = vpack.c.b16 %v2211, %v2209
        %v2248 = vpack.c.b16 %v2214, %v2212
        %v2249 = vpack.c.b16 %v2215, %v2213
        %v2250 = vpack.c.b16 %v2218, %v2216
        %v2251 = vpack.c.b16 %v2219, %v2217
        %2284 = vmatprep.subr.bf16.mxu0 %v2221
        %2285 = vmatpush1.bf16.msra.mxu0 %v2220
        %2286 = vmatprep.subr.bf16.mxu0 %v2223
        %2287 = vmatpush1.bf16.msra.mxu0 %v2222
        %2288 = vmatprep.subr.bf16.mxu0 %v2225
        %2289 = vmatpush1.bf16.msra.mxu0 %v2224
        %2290 = vmatprep.subr.bf16.mxu0 %v2227
        %2291 = vmatpush1.bf16.msra.mxu0 %v2226
        %2292 = vmatprep.subr.bf16.mxu0 %v2229
        %2293 = vmatpush1.bf16.msra.mxu0 %v2228
        %2294 = vmatprep.subr.bf16.mxu0 %v2231
        %2295 = vmatpush1.bf16.msra.mxu0 %v2230
        %2296 = vmatprep.subr.bf16.mxu0 %v2233
        %2297 = vmatpush1.bf16.msra.mxu0 %v2232
        %2298 = vmatprep.subr.bf16.mxu0 %v2235
        %2299 = vmatpush1.bf16.msra.mxu0 %v2234
        %2300 = vmatprep.subr.bf16.mxu0 %v2237
        %2301 = vmatpush1.bf16.msra.mxu0 %v2236
        %2302 = vmatprep.subr.bf16.mxu0 %v2239
        %2303 = vmatpush1.bf16.msra.mxu0 %v2238
        %2304 = vmatprep.subr.bf16.mxu0 %v2241
        %2305 = vmatpush1.bf16.msra.mxu0 %v2240
        %2306 = vmatprep.subr.bf16.mxu0 %v2243
        %2307 = vmatpush1.bf16.msra.mxu0 %v2242
        %2308 = vmatprep.subr.bf16.mxu0 %v2245
        %2309 = vmatpush1.bf16.msra.mxu0 %v2244
        %2310 = vmatprep.subr.bf16.mxu0 %v2247
        %2311 = vmatpush1.bf16.msra.mxu0 %v2246
        %2312 = vmatprep.subr.bf16.mxu0 %v2249
        %2313 = vmatpush1.bf16.msra.mxu0 %v2248
        %2314 = vmatprep.subr.bf16.mxu0 %v2251
        %2315 = vmatpush1.bf16.msra.mxu0 %v2250
        %2316 = vmatprep.mubr.bf16.mxu0 %v2063
        %2317 = vmatmul.mubr.bf16.gmra.mrb[0].mxu0 %v2062
        %v2318 = vpop.f32.mrb[0].mxu0
        %v2319 = vadd.f32 %v2117, %v2318
        %v2320 = vpop.f32.mrb[0].mxu0
        %v2321 = vadd.f32 %v2121, %v2320
        %v2322 = vpop.f32.mrb[0].mxu0
        %v2323 = vadd.f32 %v2117, %v2322
        %v2324 = vpop.f32.mrb[0].mxu0
        %v2325 = vadd.f32 %v2121, %v2324
        %2326 = vmatprep.mubr.bf16.mxu0 %v2065
        %2327 = vmatmul.mubr.bf16.gmra.mrb[0].mxu0 %v2064
        %v2328 = vpop.f32.mrb[0].mxu0
        %v2329 = vadd.f32 %v2117, %v2328
        %v2330 = vpop.f32.mrb[0].mxu0
        %v2331 = vadd.f32 %v2121, %v2330
        %v2332 = vpop.f32.mrb[0].mxu0
        %v2333 = vadd.f32 %v2117, %v2332
        %v2334 = vpop.f32.mrb[0].mxu0
        %v2335 = vadd.f32 %v2121, %v2334
        %2336 = vmatprep.mubr.bf16.mxu0 %v2067
        %2337 = vmatmul.mubr.bf16.gmra.mrb[0].mxu0 %v2066
        %v2338 = vpop.f32.mrb[0].mxu0
        %v2339 = vadd.f32 %v2117, %v2338
        %v2340 = vpop.f32.mrb[0].mxu0
        %v2341 = vadd.f32 %v2121, %v2340
        %v2342 = vpop.f32.mrb[0].mxu0
        %v2343 = vadd.f32 %v2117, %v2342
        %v2344 = vpop.f32.mrb[0].mxu0
        %v2345 = vadd.f32 %v2121, %v2344
        %2346 = vmatprep.mubr.bf16.mxu0 %v2069
        %2347 = vmatmul.mubr.bf16.gmra.mrb[0].mxu0 %v2068
        %v2348 = vpop.f32.mrb[0].mxu0
        %v2349 = vadd.f32 %v2117, %v2348
        %v2350 = vpop.f32.mrb[0].mxu0
        %v2351 = vadd.f32 %v2121, %v2350
        %v2352 = vpop.f32.mrb[0].mxu0
        %v2353 = vadd.f32 %v2117, %v2352
        %v2354 = vpop.f32.mrb[0].mxu0
        %v2355 = vadd.f32 %v2121, %v2354
        %2356 = vmatprep.mubr.bf16.mxu0 %v2071
        %2357 = vmatmul.mubr.bf16.gmra.mrb[0].mxu0 %v2070
        %v2358 = vpop.f32.mrb[0].mxu0
        %v2359 = vadd.f32 %v2117, %v2358
        %v2360 = vpop.f32.mrb[0].mxu0
        %v2361 = vadd.f32 %v2121, %v2360
        %v2362 = vpop.f32.mrb[0].mxu0
        %v2363 = vadd.f32 %v2117, %v2362
        %v2364 = vpop.f32.mrb[0].mxu0
        %v2365 = vadd.f32 %v2121, %v2364
        %2366 = vmatprep.mubr.bf16.mxu0 %v2073
        %2367 = vmatmul.mubr.bf16.gmra.mrb[0].mxu0 %v2072
        %v2368 = vpop.f32.mrb[0].mxu0
        %v2369 = vadd.f32 %v2117, %v2368
        %v2370 = vpop.f32.mrb[0].mxu0
        %v2371 = vadd.f32 %v2121, %v2370
        %v2372 = vpop.f32.mrb[0].mxu0
        %v2373 = vadd.f32 %v2117, %v2372
        %v2374 = vpop.f32.mrb[0].mxu0
        %v2375 = vadd.f32 %v2121, %v2374
        %2376 = vmatprep.mubr.bf16.mxu0 %v2075
        %2377 = vmatmul.mubr.bf16.gmra.mrb[0].mxu0 %v2074
        %v2378 = vpop.f32.mrb[0].mxu0
        %v2379 = vadd.f32 %v2117, %v2378
        %v2380 = vpop.f32.mrb[0].mxu0
        %v2381 = vadd.f32 %v2121, %v2380
        %v2382 = vpop.f32.mrb[0].mxu0
        %v2383 = vadd.f32 %v2117, %v2382
        %v2384 = vpop.f32.mrb[0].mxu0
        %v2385 = vadd.f32 %v2121, %v2384
        %2386 = vmatprep.mubr.bf16.mxu0 %v2077
        %2387 = vmatmul.mubr.bf16.gmra.mrb[0].mxu0 %v2076
        %v2388 = vpop.f32.mrb[0].mxu0
        %v2389 = vadd.f32 %v2117, %v2388
        %v2390 = vpop.f32.mrb[0].mxu0
        %v2391 = vadd.f32 %v2121, %v2390
        %v2392 = vpop.f32.mrb[0].mxu0
        %v2393 = vadd.f32 %v2117, %v2392
        %v2394 = vpop.f32.mrb[0].mxu0
        %v2395 = vadd.f32 %v2121, %v2394
        %2396 = vdwg.mxu0
        %v2397 = vmax.f32 %v2319, 0.0
        %v2398 = vmax.f32 %v2321, 0.0
        %v2399 = vmax.f32 %v2323, 0.0
        %v2400 = vmax.f32 %v2325, 0.0
        %v2401 = vmax.f32 %v2329, 0.0
        %v2402 = vmax.f32 %v2331, 0.0
        %v2403 = vmax.f32 %v2333, 0.0
        %v2404 = vmax.f32 %v2335, 0.0
        %v2405 = vmax.f32 %v2339, 0.0
        %v2406 = vmax.f32 %v2341, 0.0
        %v2407 = vmax.f32 %v2343, 0.0
        %v2408 = vmax.f32 %v2345, 0.0
        %v2409 = vmax.f32 %v2349, 0.0
        %v2410 = vmax.f32 %v2351, 0.0
        %v2411 = vmax.f32 %v2353, 0.0
        %v2412 = vmax.f32 %v2355, 0.0
        %v2413 = vmax.f32 %v2359, 0.0
        %v2414 = vmax.f32 %v2361, 0.0
        %v2415 = vmax.f32 %v2363, 0.0
        %v2416 = vmax.f32 %v2365, 0.0
        %v2417 = vmax.f32 %v2369, 0.0
        %v2418 = vmax.f32 %v2371, 0.0
        %v2419 = vmax.f32 %v2373, 0.0
        %v2420 = vmax.f32 %v2375, 0.0
        %v2421 = vmax.f32 %v2379, 0.0
        %v2422 = vmax.f32 %v2381, 0.0
        %v2423 = vmax.f32 %v2383, 0.0
        %v2424 = vmax.f32 %v2385, 0.0
        %v2425 = vmax.f32 %v2389, 0.0
        %v2426 = vmax.f32 %v2391, 0.0
        %v2427 = vmax.f32 %v2393, 0.0
        %v2428 = vmax.f32 %v2395, 0.0
        %v2429 = vpack.c.bf16 %v2399, %v2397
        %v2430 = vpack.c.bf16 %v2400, %v2398
        %v2431 = vpack.c.bf16 %v2403, %v2401
        %v2432 = vpack.c.bf16 %v2404, %v2402
        %v2433 = vpack.c.bf16 %v2407, %v2405
        %v2434 = vpack.c.bf16 %v2408, %v2406
        %v2435 = vpack.c.bf16 %v2411, %v2409
        %v2436 = vpack.c.bf16 %v2412, %v2410
        %v2437 = vpack.c.bf16 %v2415, %v2413
        %v2438 = vpack.c.bf16 %v2416, %v2414
        %v2439 = vpack.c.bf16 %v2419, %v2417
        %v2440 = vpack.c.bf16 %v2420, %v2418
        %v2441 = vpack.c.bf16 %v2423, %v2421
        %v2442 = vpack.c.bf16 %v2424, %v2422
        %v2443 = vpack.c.bf16 %v2427, %v2425
        %v2444 = vpack.c.bf16 %v2428, %v2426
        %s2445 = scalar_lea.vmem %s3, 1024
        %v2446 = vld [vmem:[%s2445] sm:$0xff]
        %v2447 = vld [vmem:[%s2445 + $0x8] sm:$0xff]
        %v2448 = vld [vmem:[%s2445 + $0x10] sm:$0xff]
        %v2449 = vld [vmem:[%s2445 + $0x18] sm:$0xff]
        %v2450 = vld [vmem:[%s2445 + $0x20] sm:$0xff]
        %v2451 = vld [vmem:[%s2445 + $0x28] sm:$0xff]
        %v2452 = vld [vmem:[%s2445 + $0x30] sm:$0xff]
        %v2453 = vld [vmem:[%s2445 + $0x38] sm:$0xff]
        %v2454 = vld [vmem:[%s2445 + $0x40] sm:$0xff]
        %v2455 = vld [vmem:[%s2445 + $0x48] sm:$0xff]
        %v2456 = vld [vmem:[%s2445 + $0x50] sm:$0xff]
        %v2457 = vld [vmem:[%s2445 + $0x58] sm:$0xff]
        %v2458 = vld [vmem:[%s2445 + $0x60] sm:$0xff]
        %v2459 = vld [vmem:[%s2445 + $0x68] sm:$0xff]
        %v2460 = vld [vmem:[%s2445 + $0x70] sm:$0xff]
        %v2461 = vld [vmem:[%s2445 + $0x78] sm:$0xff]
        %v2462 = vld [vmem:[%s2445 + $0x80] sm:$0xff]
        %v2463 = vld [vmem:[%s2445 + $0x88] sm:$0xff]
        %v2464 = vld [vmem:[%s2445 + $0x90] sm:$0xff]
        %v2465 = vld [vmem:[%s2445 + $0x98] sm:$0xff]
        %v2466 = vld [vmem:[%s2445 + $0xa0] sm:$0xff]
        %v2467 = vld [vmem:[%s2445 + $0xa8] sm:$0xff]
        %v2468 = vld [vmem:[%s2445 + $0xb0] sm:$0xff]
        %v2469 = vld [vmem:[%s2445 + $0xb8] sm:$0xff]
        %v2470 = vld [vmem:[%s2445 + $0xc0] sm:$0xff]
        %v2471 = vld [vmem:[%s2445 + $0xc8] sm:$0xff]
        %v2472 = vld [vmem:[%s2445 + $0xd0] sm:$0xff]
        %v2473 = vld [vmem:[%s2445 + $0xd8] sm:$0xff]
        %v2474 = vld [vmem:[%s2445 + $0xe0] sm:$0xff]
        %v2475 = vld [vmem:[%s2445 + $0xe8] sm:$0xff]
        %v2476 = vld [vmem:[%s2445 + $0xf0] sm:$0xff]
        %v2477 = vld [vmem:[%s2445 + $0xf8] sm:$0xff]
        %s2478 = scalar_lea.vmem %s4, 8
        %v2479 = vld [vmem:[%s2478] sm:$0x3]
        %v2481 = vlaneseq
        %v2482 = vshrl.u32 %v2481, 7
        %v2483 = vsub.s32 0, %v2482
        %v2484 = vrot.slane %v2479, %v2483
        %v2485 = vlaneseq
        %v2486 = vshrl.u32 %v2485, 7
        %v2487 = vsub.s32 1, %v2486
        %v2488 = vrot.slane %v2479, %v2487
        %v2523 = vunpack.c.l.b16 %v2446
        %v2524 = vunpack.c.h.b16 %v2446
        %v2525 = vunpack.c.l.b16 %v2447
        %v2526 = vunpack.c.h.b16 %v2447
        %v2527 = vunpack.c.l.b16 %v2448
        %v2528 = vunpack.c.h.b16 %v2448
        %v2529 = vunpack.c.l.b16 %v2449
        %v2530 = vunpack.c.h.b16 %v2449
        %v2531 = vunpack.c.l.b16 %v2450
        %v2532 = vunpack.c.h.b16 %v2450
        %v2533 = vunpack.c.l.b16 %v2451
        %v2534 = vunpack.c.h.b16 %v2451
        %v2535 = vunpack.c.l.b16 %v2452
        %v2536 = vunpack.c.h.b16 %v2452
        %v2537 = vunpack.c.l.b16 %v2453
        %v2538 = vunpack.c.h.b16 %v2453
        %v2539 = vunpack.c.l.b16 %v2454
        %v2540 = vunpack.c.h.b16 %v2454
        %v2541 = vunpack.c.l.b16 %v2455
        %v2542 = vunpack.c.h.b16 %v2455
        %v2543 = vunpack.c.l.b16 %v2456
        %v2544 = vunpack.c.h.b16 %v2456
        %v2545 = vunpack.c.l.b16 %v2457
        %v2546 = vunpack.c.h.b16 %v2457
        %v2547 = vunpack.c.l.b16 %v2458
        %v2548 = vunpack.c.h.b16 %v2458
        %v2549 = vunpack.c.l.b16 %v2459
        %v2550 = vunpack.c.h.b16 %v2459
        %v2551 = vunpack.c.l.b16 %v2460
        %v2552 = vunpack.c.h.b16 %v2460
        %v2553 = vunpack.c.l.b16 %v2461
        %v2554 = vunpack.c.h.b16 %v2461
        %v2555 = vunpack.c.l.b16 %v2462
        %v2556 = vunpack.c.h.b16 %v2462
        %v2557 = vunpack.c.l.b16 %v2463
        %v2558 = vunpack.c.h.b16 %v2463
        %v2559 = vunpack.c.l.b16 %v2464
        %v2560 = vunpack.c.h.b16 %v2464
        %v2561 = vunpack.c.l.b16 %v2465
        %v2562 = vunpack.c.h.b16 %v2465
        %v2563 = vunpack.c.l.b16 %v2466
        %v2564 = vunpack.c.h.b16 %v2466
        %v2565 = vunpack.c.l.b16 %v2467
        %v2566 = vunpack.c.h.b16 %v2467
        %v2567 = vunpack.c.l.b16 %v2468
        %v2568 = vunpack.c.h.b16 %v2468
        %v2569 = vunpack.c.l.b16 %v2469
        %v2570 = vunpack.c.h.b16 %v2469
        %v2571 = vunpack.c.l.b16 %v2470
        %v2572 = vunpack.c.h.b16 %v2470
        %v2573 = vunpack.c.l.b16 %v2471
        %v2574 = vunpack.c.h.b16 %v2471
        %v2575 = vunpack.c.l.b16 %v2472
        %v2576 = vunpack.c.h.b16 %v2472
        %v2577 = vunpack.c.l.b16 %v2473
        %v2578 = vunpack.c.h.b16 %v2473
        %v2579 = vunpack.c.l.b16 %v2474
        %v2580 = vunpack.c.h.b16 %v2474
        %v2581 = vunpack.c.l.b16 %v2475
        %v2582 = vunpack.c.h.b16 %v2475
        %v2583 = vunpack.c.l.b16 %v2476
        %v2584 = vunpack.c.h.b16 %v2476
        %v2585 = vunpack.c.l.b16 %v2477
        %v2586 = vunpack.c.h.b16 %v2477
        %v2587 = vpack.c.b16 %v2525, %v2523
        %v2588 = vpack.c.b16 %v2526, %v2524
        %v2589 = vpack.c.b16 %v2529, %v2527
        %v2590 = vpack.c.b16 %v2530, %v2528
        %v2591 = vpack.c.b16 %v2533, %v2531
        %v2592 = vpack.c.b16 %v2534, %v2532
        %v2593 = vpack.c.b16 %v2537, %v2535
        %v2594 = vpack.c.b16 %v2538, %v2536
        %v2595 = vpack.c.b16 %v2541, %v2539
        %v2596 = vpack.c.b16 %v2542, %v2540
        %v2597 = vpack.c.b16 %v2545, %v2543
        %v2598 = vpack.c.b16 %v2546, %v2544
        %v2599 = vpack.c.b16 %v2549, %v2547
        %v2600 = vpack.c.b16 %v2550, %v2548
        %v2601 = vpack.c.b16 %v2553, %v2551
        %v2602 = vpack.c.b16 %v2554, %v2552
        %v2603 = vpack.c.b16 %v2557, %v2555
        %v2604 = vpack.c.b16 %v2558, %v2556
        %v2605 = vpack.c.b16 %v2561, %v2559
        %v2606 = vpack.c.b16 %v2562, %v2560
        %v2607 = vpack.c.b16 %v2565, %v2563
        %v2608 = vpack.c.b16 %v2566, %v2564
        %v2609 = vpack.c.b16 %v2569, %v2567
        %v2610 = vpack.c.b16 %v2570, %v2568
        %v2611 = vpack.c.b16 %v2573, %v2571
        %v2612 = vpack.c.b16 %v2574, %v2572
        %v2613 = vpack.c.b16 %v2577, %v2575
        %v2614 = vpack.c.b16 %v2578, %v2576
        %v2615 = vpack.c.b16 %v2581, %v2579
        %v2616 = vpack.c.b16 %v2582, %v2580
        %v2617 = vpack.c.b16 %v2585, %v2583
        %v2618 = vpack.c.b16 %v2586, %v2584
        %2651 = vmatprep.subr.bf16.mxu0 %v2588
        %2652 = vmatpush1.bf16.msra.mxu0 %v2587
        %2653 = vmatprep.subr.bf16.mxu0 %v2590
        %2654 = vmatpush1.bf16.msra.mxu0 %v2589
        %2655 = vmatprep.subr.bf16.mxu0 %v2592
        %2656 = vmatpush1.bf16.msra.mxu0 %v2591
        %2657 = vmatprep.subr.bf16.mxu0 %v2594
        %2658 = vmatpush1.bf16.msra.mxu0 %v2593
        %2659 = vmatprep.subr.bf16.mxu0 %v2596
        %2660 = vmatpush1.bf16.msra.mxu0 %v2595
        %2661 = vmatprep.subr.bf16.mxu0 %v2598
        %2662 = vmatpush1.bf16.msra.mxu0 %v2597
        %2663 = vmatprep.subr.bf16.mxu0 %v2600
        %2664 = vmatpush1.bf16.msra.mxu0 %v2599
        %2665 = vmatprep.subr.bf16.mxu0 %v2602
        %2666 = vmatpush1.bf16.msra.mxu0 %v2601
        %2667 = vmatprep.subr.bf16.mxu0 %v2604
        %2668 = vmatpush1.bf16.msra.mxu0 %v2603
        %2669 = vmatprep.subr.bf16.mxu0 %v2606
        %2670 = vmatpush1.bf16.msra.mxu0 %v2605
        %2671 = vmatprep.subr.bf16.mxu0 %v2608
        %2672 = vmatpush1.bf16.msra.mxu0 %v2607
        %2673 = vmatprep.subr.bf16.mxu0 %v2610
        %2674 = vmatpush1.bf16.msra.mxu0 %v2609
        %2675 = vmatprep.subr.bf16.mxu0 %v2612
        %2676 = vmatpush1.bf16.msra.mxu0 %v2611
        %2677 = vmatprep.subr.bf16.mxu0 %v2614
        %2678 = vmatpush1.bf16.msra.mxu0 %v2613
        %2679 = vmatprep.subr.bf16.mxu0 %v2616
        %2680 = vmatpush1.bf16.msra.mxu0 %v2615
        %2681 = vmatprep.subr.bf16.mxu0 %v2618
        %2682 = vmatpush1.bf16.msra.mxu0 %v2617
        %2683 = vmatprep.mubr.bf16.mxu0 %v2430
        %2684 = vmatmul.mubr.bf16.gmra.mrb[0].mxu0 %v2429
        %v2685 = vpop.f32.mrb[0].mxu0
        %v2686 = vadd.f32 %v2484, %v2685
        %v2687 = vpop.f32.mrb[0].mxu0
        %v2688 = vadd.f32 %v2488, %v2687
        %v2689 = vpop.f32.mrb[0].mxu0
        %v2690 = vadd.f32 %v2484, %v2689
        %v2691 = vpop.f32.mrb[0].mxu0
        %v2692 = vadd.f32 %v2488, %v2691
        %2693 = vmatprep.mubr.bf16.mxu0 %v2432
        %2694 = vmatmul.mubr.bf16.gmra.mrb[0].mxu0 %v2431
        %v2695 = vpop.f32.mrb[0].mxu0
        %v2696 = vadd.f32 %v2484, %v2695
        %v2697 = vpop.f32.mrb[0].mxu0
        %v2698 = vadd.f32 %v2488, %v2697
        %v2699 = vpop.f32.mrb[0].mxu0
        %v2700 = vadd.f32 %v2484, %v2699
        %v2701 = vpop.f32.mrb[0].mxu0
        %v2702 = vadd.f32 %v2488, %v2701
        %2703 = vmatprep.mubr.bf16.mxu0 %v2434
        %2704 = vmatmul.mubr.bf16.gmra.mrb[0].mxu0 %v2433
        %v2705 = vpop.f32.mrb[0].mxu0
        %v2706 = vadd.f32 %v2484, %v2705
        %v2707 = vpop.f32.mrb[0].mxu0
        %v2708 = vadd.f32 %v2488, %v2707
        %v2709 = vpop.f32.mrb[0].mxu0
        %v2710 = vadd.f32 %v2484, %v2709
        %v2711 = vpop.f32.mrb[0].mxu0
        %v2712 = vadd.f32 %v2488, %v2711
        %2713 = vmatprep.mubr.bf16.mxu0 %v2436
        %2714 = vmatmul.mubr.bf16.gmra.mrb[0].mxu0 %v2435
        %v2715 = vpop.f32.mrb[0].mxu0
        %v2716 = vadd.f32 %v2484, %v2715
        %v2717 = vpop.f32.mrb[0].mxu0
        %v2718 = vadd.f32 %v2488, %v2717
        %v2719 = vpop.f32.mrb[0].mxu0
        %v2720 = vadd.f32 %v2484, %v2719
        %v2721 = vpop.f32.mrb[0].mxu0
        %v2722 = vadd.f32 %v2488, %v2721
        %2723 = vmatprep.mubr.bf16.mxu0 %v2438
        %2724 = vmatmul.mubr.bf16.gmra.mrb[0].mxu0 %v2437
        %v2725 = vpop.f32.mrb[0].mxu0
        %v2726 = vadd.f32 %v2484, %v2725
        %v2727 = vpop.f32.mrb[0].mxu0
        %v2728 = vadd.f32 %v2488, %v2727
        %v2729 = vpop.f32.mrb[0].mxu0
        %v2730 = vadd.f32 %v2484, %v2729
        %v2731 = vpop.f32.mrb[0].mxu0
        %v2732 = vadd.f32 %v2488, %v2731
        %2733 = vmatprep.mubr.bf16.mxu0 %v2440
        %2734 = vmatmul.mubr.bf16.gmra.mrb[0].mxu0 %v2439
        %v2735 = vpop.f32.mrb[0].mxu0
        %v2736 = vadd.f32 %v2484, %v2735
        %v2737 = vpop.f32.mrb[0].mxu0
        %v2738 = vadd.f32 %v2488, %v2737
        %v2739 = vpop.f32.mrb[0].mxu0
        %v2740 = vadd.f32 %v2484, %v2739
        %v2741 = vpop.f32.mrb[0].mxu0
        %v2742 = vadd.f32 %v2488, %v2741
        %2743 = vmatprep.mubr.bf16.mxu0 %v2442
        %2744 = vmatmul.mubr.bf16.gmra.mrb[0].mxu0 %v2441
        %v2745 = vpop.f32.mrb[0].mxu0
        %v2746 = vadd.f32 %v2484, %v2745
        %v2747 = vpop.f32.mrb[0].mxu0
        %v2748 = vadd.f32 %v2488, %v2747
        %v2749 = vpop.f32.mrb[0].mxu0
        %v2750 = vadd.f32 %v2484, %v2749
        %v2751 = vpop.f32.mrb[0].mxu0
        %v2752 = vadd.f32 %v2488, %v2751
        %2753 = vmatprep.mubr.bf16.mxu0 %v2444
        %2754 = vmatmul.mubr.bf16.gmra.mrb[0].mxu0 %v2443
        %v2755 = vpop.f32.mrb[0].mxu0
        %v2756 = vadd.f32 %v2484, %v2755
        %v2757 = vpop.f32.mrb[0].mxu0
        %v2758 = vadd.f32 %v2488, %v2757
        %v2759 = vpop.f32.mrb[0].mxu0
        %v2760 = vadd.f32 %v2484, %v2759
        %v2761 = vpop.f32.mrb[0].mxu0
        %v2762 = vadd.f32 %v2488, %v2761
        %2763 = vdwg.mxu0
        %v2764 = vmax.f32 %v2686, 0.0
        %v2765 = vmax.f32 %v2688, 0.0
        %v2766 = vmax.f32 %v2690, 0.0
        %v2767 = vmax.f32 %v2692, 0.0
        %v2768 = vmax.f32 %v2696, 0.0
        %v2769 = vmax.f32 %v2698, 0.0
        %v2770 = vmax.f32 %v2700, 0.0
        %v2771 = vmax.f32 %v2702, 0.0
        %v2772 = vmax.f32 %v2706, 0.0
        %v2773 = vmax.f32 %v2708, 0.0
        %v2774 = vmax.f32 %v2710, 0.0
        %v2775 = vmax.f32 %v2712, 0.0
        %v2776 = vmax.f32 %v2716, 0.0
        %v2777 = vmax.f32 %v2718, 0.0
        %v2778 = vmax.f32 %v2720, 0.0
        %v2779 = vmax.f32 %v2722, 0.0
        %v2780 = vmax.f32 %v2726, 0.0
        %v2781 = vmax.f32 %v2728, 0.0
        %v2782 = vmax.f32 %v2730, 0.0
        %v2783 = vmax.f32 %v2732, 0.0
        %v2784 = vmax.f32 %v2736, 0.0
        %v2785 = vmax.f32 %v2738, 0.0
        %v2786 = vmax.f32 %v2740, 0.0
        %v2787 = vmax.f32 %v2742, 0.0
        %v2788 = vmax.f32 %v2746, 0.0
        %v2789 = vmax.f32 %v2748, 0.0
        %v2790 = vmax.f32 %v2750, 0.0
        %v2791 = vmax.f32 %v2752, 0.0
        %v2792 = vmax.f32 %v2756, 0.0
        %v2793 = vmax.f32 %v2758, 0.0
        %v2794 = vmax.f32 %v2760, 0.0
        %v2795 = vmax.f32 %v2762, 0.0
        %v2796 = vpack.c.bf16 %v2766, %v2764
        %v2797 = vpack.c.bf16 %v2767, %v2765
        %v2798 = vpack.c.bf16 %v2770, %v2768
        %v2799 = vpack.c.bf16 %v2771, %v2769
        %v2800 = vpack.c.bf16 %v2774, %v2772
        %v2801 = vpack.c.bf16 %v2775, %v2773
        %v2802 = vpack.c.bf16 %v2778, %v2776
        %v2803 = vpack.c.bf16 %v2779, %v2777
        %v2804 = vpack.c.bf16 %v2782, %v2780
        %v2805 = vpack.c.bf16 %v2783, %v2781
        %v2806 = vpack.c.bf16 %v2786, %v2784
        %v2807 = vpack.c.bf16 %v2787, %v2785
        %v2808 = vpack.c.bf16 %v2790, %v2788
        %v2809 = vpack.c.bf16 %v2791, %v2789
        %v2810 = vpack.c.bf16 %v2794, %v2792
        %v2811 = vpack.c.bf16 %v2795, %v2793
        %s2812 = scalar_lea.vmem %s3, 1280
        %v2813 = vld [vmem:[%s2812] sm:$0xff]
        %v2814 = vld [vmem:[%s2812 + $0x8] sm:$0xff]
        %v2815 = vld [vmem:[%s2812 + $0x10] sm:$0xff]
        %v2816 = vld [vmem:[%s2812 + $0x18] sm:$0xff]
        %v2817 = vld [vmem:[%s2812 + $0x20] sm:$0xff]
        %v2818 = vld [vmem:[%s2812 + $0x28] sm:$0xff]
        %v2819 = vld [vmem:[%s2812 + $0x30] sm:$0xff]
        %v2820 = vld [vmem:[%s2812 + $0x38] sm:$0xff]
        %v2821 = vld [vmem:[%s2812 + $0x40] sm:$0xff]
        %v2822 = vld [vmem:[%s2812 + $0x48] sm:$0xff]
        %v2823 = vld [vmem:[%s2812 + $0x50] sm:$0xff]
        %v2824 = vld [vmem:[%s2812 + $0x58] sm:$0xff]
        %v2825 = vld [vmem:[%s2812 + $0x60] sm:$0xff]
        %v2826 = vld [vmem:[%s2812 + $0x68] sm:$0xff]
        %v2827 = vld [vmem:[%s2812 + $0x70] sm:$0xff]
        %v2828 = vld [vmem:[%s2812 + $0x78] sm:$0xff]
        %v2829 = vld [vmem:[%s2812 + $0x80] sm:$0xff]
        %v2830 = vld [vmem:[%s2812 + $0x88] sm:$0xff]
        %v2831 = vld [vmem:[%s2812 + $0x90] sm:$0xff]
        %v2832 = vld [vmem:[%s2812 + $0x98] sm:$0xff]
        %v2833 = vld [vmem:[%s2812 + $0xa0] sm:$0xff]
        %v2834 = vld [vmem:[%s2812 + $0xa8] sm:$0xff]
        %v2835 = vld [vmem:[%s2812 + $0xb0] sm:$0xff]
        %v2836 = vld [vmem:[%s2812 + $0xb8] sm:$0xff]
        %v2837 = vld [vmem:[%s2812 + $0xc0] sm:$0xff]
        %v2838 = vld [vmem:[%s2812 + $0xc8] sm:$0xff]
        %v2839 = vld [vmem:[%s2812 + $0xd0] sm:$0xff]
        %v2840 = vld [vmem:[%s2812 + $0xd8] sm:$0xff]
        %v2841 = vld [vmem:[%s2812 + $0xe0] sm:$0xff]
        %v2842 = vld [vmem:[%s2812 + $0xe8] sm:$0xff]
        %v2843 = vld [vmem:[%s2812 + $0xf0] sm:$0xff]
        %v2844 = vld [vmem:[%s2812 + $0xf8] sm:$0xff]
        %s2845 = scalar_lea.vmem %s4, 10
        %v2846 = vld [vmem:[%s2845] sm:$0x3]
        %v2848 = vlaneseq
        %v2849 = vshrl.u32 %v2848, 7
        %v2850 = vsub.s32 0, %v2849
        %v2851 = vrot.slane %v2846, %v2850
        %v2852 = vlaneseq
        %v2853 = vshrl.u32 %v2852, 7
        %v2854 = vsub.s32 1, %v2853
        %v2855 = vrot.slane %v2846, %v2854
        %v2890 = vunpack.c.l.b16 %v2813
        %v2891 = vunpack.c.h.b16 %v2813
        %v2892 = vunpack.c.l.b16 %v2814
        %v2893 = vunpack.c.h.b16 %v2814
        %v2894 = vunpack.c.l.b16 %v2815
        %v2895 = vunpack.c.h.b16 %v2815
        %v2896 = vunpack.c.l.b16 %v2816
        %v2897 = vunpack.c.h.b16 %v2816
        %v2898 = vunpack.c.l.b16 %v2817
        %v2899 = vunpack.c.h.b16 %v2817
        %v2900 = vunpack.c.l.b16 %v2818
        %v2901 = vunpack.c.h.b16 %v2818
        %v2902 = vunpack.c.l.b16 %v2819
        %v2903 = vunpack.c.h.b16 %v2819
        %v2904 = vunpack.c.l.b16 %v2820
        %v2905 = vunpack.c.h.b16 %v2820
        %v2906 = vunpack.c.l.b16 %v2821
        %v2907 = vunpack.c.h.b16 %v2821
        %v2908 = vunpack.c.l.b16 %v2822
        %v2909 = vunpack.c.h.b16 %v2822
        %v2910 = vunpack.c.l.b16 %v2823
        %v2911 = vunpack.c.h.b16 %v2823
        %v2912 = vunpack.c.l.b16 %v2824
        %v2913 = vunpack.c.h.b16 %v2824
        %v2914 = vunpack.c.l.b16 %v2825
        %v2915 = vunpack.c.h.b16 %v2825
        %v2916 = vunpack.c.l.b16 %v2826
        %v2917 = vunpack.c.h.b16 %v2826
        %v2918 = vunpack.c.l.b16 %v2827
        %v2919 = vunpack.c.h.b16 %v2827
        %v2920 = vunpack.c.l.b16 %v2828
        %v2921 = vunpack.c.h.b16 %v2828
        %v2922 = vunpack.c.l.b16 %v2829
        %v2923 = vunpack.c.h.b16 %v2829
        %v2924 = vunpack.c.l.b16 %v2830
        %v2925 = vunpack.c.h.b16 %v2830
        %v2926 = vunpack.c.l.b16 %v2831
        %v2927 = vunpack.c.h.b16 %v2831
        %v2928 = vunpack.c.l.b16 %v2832
        %v2929 = vunpack.c.h.b16 %v2832
        %v2930 = vunpack.c.l.b16 %v2833
        %v2931 = vunpack.c.h.b16 %v2833
        %v2932 = vunpack.c.l.b16 %v2834
        %v2933 = vunpack.c.h.b16 %v2834
        %v2934 = vunpack.c.l.b16 %v2835
        %v2935 = vunpack.c.h.b16 %v2835
        %v2936 = vunpack.c.l.b16 %v2836
        %v2937 = vunpack.c.h.b16 %v2836
        %v2938 = vunpack.c.l.b16 %v2837
        %v2939 = vunpack.c.h.b16 %v2837
        %v2940 = vunpack.c.l.b16 %v2838
        %v2941 = vunpack.c.h.b16 %v2838
        %v2942 = vunpack.c.l.b16 %v2839
        %v2943 = vunpack.c.h.b16 %v2839
        %v2944 = vunpack.c.l.b16 %v2840
        %v2945 = vunpack.c.h.b16 %v2840
        %v2946 = vunpack.c.l.b16 %v2841
        %v2947 = vunpack.c.h.b16 %v2841
        %v2948 = vunpack.c.l.b16 %v2842
        %v2949 = vunpack.c.h.b16 %v2842
        %v2950 = vunpack.c.l.b16 %v2843
        %v2951 = vunpack.c.h.b16 %v2843
        %v2952 = vunpack.c.l.b16 %v2844
        %v2953 = vunpack.c.h.b16 %v2844
        %v2954 = vpack.c.b16 %v2892, %v2890
        %v2955 = vpack.c.b16 %v2893, %v2891
        %v2956 = vpack.c.b16 %v2896, %v2894
        %v2957 = vpack.c.b16 %v2897, %v2895
        %v2958 = vpack.c.b16 %v2900, %v2898
        %v2959 = vpack.c.b16 %v2901, %v2899
        %v2960 = vpack.c.b16 %v2904, %v2902
        %v2961 = vpack.c.b16 %v2905, %v2903
        %v2962 = vpack.c.b16 %v2908, %v2906
        %v2963 = vpack.c.b16 %v2909, %v2907
        %v2964 = vpack.c.b16 %v2912, %v2910
        %v2965 = vpack.c.b16 %v2913, %v2911
        %v2966 = vpack.c.b16 %v2916, %v2914
        %v2967 = vpack.c.b16 %v2917, %v2915
        %v2968 = vpack.c.b16 %v2920, %v2918
        %v2969 = vpack.c.b16 %v2921, %v2919
        %v2970 = vpack.c.b16 %v2924, %v2922
        %v2971 = vpack.c.b16 %v2925, %v2923
        %v2972 = vpack.c.b16 %v2928, %v2926
        %v2973 = vpack.c.b16 %v2929, %v2927
        %v2974 = vpack.c.b16 %v2932, %v2930
        %v2975 = vpack.c.b16 %v2933, %v2931
        %v2976 = vpack.c.b16 %v2936, %v2934
        %v2977 = vpack.c.b16 %v2937, %v2935
        %v2978 = vpack.c.b16 %v2940, %v2938
        %v2979 = vpack.c.b16 %v2941, %v2939
        %v2980 = vpack.c.b16 %v2944, %v2942
        %v2981 = vpack.c.b16 %v2945, %v2943
        %v2982 = vpack.c.b16 %v2948, %v2946
        %v2983 = vpack.c.b16 %v2949, %v2947
        %v2984 = vpack.c.b16 %v2952, %v2950
        %v2985 = vpack.c.b16 %v2953, %v2951
        %3018 = vmatprep.subr.bf16.mxu0 %v2955
        %3019 = vmatpush1.bf16.msra.mxu0 %v2954
        %3020 = vmatprep.subr.bf16.mxu0 %v2957
        %3021 = vmatpush1.bf16.msra.mxu0 %v2956
        %3022 = vmatprep.subr.bf16.mxu0 %v2959
        %3023 = vmatpush1.bf16.msra.mxu0 %v2958
        %3024 = vmatprep.subr.bf16.mxu0 %v2961
        %3025 = vmatpush1.bf16.msra.mxu0 %v2960
        %3026 = vmatprep.subr.bf16.mxu0 %v2963
        %3027 = vmatpush1.bf16.msra.mxu0 %v2962
        %3028 = vmatprep.subr.bf16.mxu0 %v2965
        %3029 = vmatpush1.bf16.msra.mxu0 %v2964
        %3030 = vmatprep.subr.bf16.mxu0 %v2967
        %3031 = vmatpush1.bf16.msra.mxu0 %v2966
        %3032 = vmatprep.subr.bf16.mxu0 %v2969
        %3033 = vmatpush1.bf16.msra.mxu0 %v2968
        %3034 = vmatprep.subr.bf16.mxu0 %v2971
        %3035 = vmatpush1.bf16.msra.mxu0 %v2970
        %3036 = vmatprep.subr.bf16.mxu0 %v2973
        %3037 = vmatpush1.bf16.msra.mxu0 %v2972
        %3038 = vmatprep.subr.bf16.mxu0 %v2975
        %3039 = vmatpush1.bf16.msra.mxu0 %v2974
        %3040 = vmatprep.subr.bf16.mxu0 %v2977
        %3041 = vmatpush1.bf16.msra.mxu0 %v2976
        %3042 = vmatprep.subr.bf16.mxu0 %v2979
        %3043 = vmatpush1.bf16.msra.mxu0 %v2978
        %3044 = vmatprep.subr.bf16.mxu0 %v2981
        %3045 = vmatpush1.bf16.msra.mxu0 %v2980
        %3046 = vmatprep.subr.bf16.mxu0 %v2983
        %3047 = vmatpush1.bf16.msra.mxu0 %v2982
        %3048 = vmatprep.subr.bf16.mxu0 %v2985
        %3049 = vmatpush1.bf16.msra.mxu0 %v2984
        %3050 = vmatprep.mubr.bf16.mxu0 %v2797
        %3051 = vmatmul.mubr.bf16.gmra.mrb[0].mxu0 %v2796
        %v3052 = vpop.f32.mrb[0].mxu0
        %v3053 = vadd.f32 %v2851, %v3052
        %v3054 = vpop.f32.mrb[0].mxu0
        %v3055 = vadd.f32 %v2855, %v3054
        %v3056 = vpop.f32.mrb[0].mxu0
        %v3057 = vadd.f32 %v2851, %v3056
        %v3058 = vpop.f32.mrb[0].mxu0
        %v3059 = vadd.f32 %v2855, %v3058
        %3060 = vmatprep.mubr.bf16.mxu0 %v2799
        %3061 = vmatmul.mubr.bf16.gmra.mrb[0].mxu0 %v2798
        %v3062 = vpop.f32.mrb[0].mxu0
        %v3063 = vadd.f32 %v2851, %v3062
        %v3064 = vpop.f32.mrb[0].mxu0
        %v3065 = vadd.f32 %v2855, %v3064
        %v3066 = vpop.f32.mrb[0].mxu0
        %v3067 = vadd.f32 %v2851, %v3066
        %v3068 = vpop.f32.mrb[0].mxu0
        %v3069 = vadd.f32 %v2855, %v3068
        %3070 = vmatprep.mubr.bf16.mxu0 %v2801
        %3071 = vmatmul.mubr.bf16.gmra.mrb[0].mxu0 %v2800
        %v3072 = vpop.f32.mrb[0].mxu0
        %v3073 = vadd.f32 %v2851, %v3072
        %v3074 = vpop.f32.mrb[0].mxu0
        %v3075 = vadd.f32 %v2855, %v3074
        %v3076 = vpop.f32.mrb[0].mxu0
        %v3077 = vadd.f32 %v2851, %v3076
        %v3078 = vpop.f32.mrb[0].mxu0
        %v3079 = vadd.f32 %v2855, %v3078
        %3080 = vmatprep.mubr.bf16.mxu0 %v2803
        %3081 = vmatmul.mubr.bf16.gmra.mrb[0].mxu0 %v2802
        %v3082 = vpop.f32.mrb[0].mxu0
        %v3083 = vadd.f32 %v2851, %v3082
        %v3084 = vpop.f32.mrb[0].mxu0
        %v3085 = vadd.f32 %v2855, %v3084
        %v3086 = vpop.f32.mrb[0].mxu0
        %v3087 = vadd.f32 %v2851, %v3086
        %v3088 = vpop.f32.mrb[0].mxu0
        %v3089 = vadd.f32 %v2855, %v3088
        %3090 = vmatprep.mubr.bf16.mxu0 %v2805
        %3091 = vmatmul.mubr.bf16.gmra.mrb[0].mxu0 %v2804
        %v3092 = vpop.f32.mrb[0].mxu0
        %v3093 = vadd.f32 %v2851, %v3092
        %v3094 = vpop.f32.mrb[0].mxu0
        %v3095 = vadd.f32 %v2855, %v3094
        %v3096 = vpop.f32.mrb[0].mxu0
        %v3097 = vadd.f32 %v2851, %v3096
        %v3098 = vpop.f32.mrb[0].mxu0
        %v3099 = vadd.f32 %v2855, %v3098
        %3100 = vmatprep.mubr.bf16.mxu0 %v2807
        %3101 = vmatmul.mubr.bf16.gmra.mrb[0].mxu0 %v2806
        %v3102 = vpop.f32.mrb[0].mxu0
        %v3103 = vadd.f32 %v2851, %v3102
        %v3104 = vpop.f32.mrb[0].mxu0
        %v3105 = vadd.f32 %v2855, %v3104
        %v3106 = vpop.f32.mrb[0].mxu0
        %v3107 = vadd.f32 %v2851, %v3106
        %v3108 = vpop.f32.mrb[0].mxu0
        %v3109 = vadd.f32 %v2855, %v3108
        %3110 = vmatprep.mubr.bf16.mxu0 %v2809
        %3111 = vmatmul.mubr.bf16.gmra.mrb[0].mxu0 %v2808
        %v3112 = vpop.f32.mrb[0].mxu0
        %v3113 = vadd.f32 %v2851, %v3112
        %v3114 = vpop.f32.mrb[0].mxu0
        %v3115 = vadd.f32 %v2855, %v3114
        %v3116 = vpop.f32.mrb[0].mxu0
        %v3117 = vadd.f32 %v2851, %v3116
        %v3118 = vpop.f32.mrb[0].mxu0
        %v3119 = vadd.f32 %v2855, %v3118
        %3120 = vmatprep.mubr.bf16.mxu0 %v2811
        %3121 = vmatmul.mubr.bf16.gmra.mrb[0].mxu0 %v2810
        %v3122 = vpop.f32.mrb[0].mxu0
        %v3123 = vadd.f32 %v2851, %v3122
        %v3124 = vpop.f32.mrb[0].mxu0
        %v3125 = vadd.f32 %v2855, %v3124
        %v3126 = vpop.f32.mrb[0].mxu0
        %v3127 = vadd.f32 %v2851, %v3126
        %v3128 = vpop.f32.mrb[0].mxu0
        %v3129 = vadd.f32 %v2855, %v3128
        %3130 = vdwg.mxu0
        %v3131 = vmax.f32 %v3053, 0.0
        %v3132 = vmax.f32 %v3055, 0.0
        %v3133 = vmax.f32 %v3057, 0.0
        %v3134 = vmax.f32 %v3059, 0.0
        %v3135 = vmax.f32 %v3063, 0.0
        %v3136 = vmax.f32 %v3065, 0.0
        %v3137 = vmax.f32 %v3067, 0.0
        %v3138 = vmax.f32 %v3069, 0.0
        %v3139 = vmax.f32 %v3073, 0.0
        %v3140 = vmax.f32 %v3075, 0.0
        %v3141 = vmax.f32 %v3077, 0.0
        %v3142 = vmax.f32 %v3079, 0.0
        %v3143 = vmax.f32 %v3083, 0.0
        %v3144 = vmax.f32 %v3085, 0.0
        %v3145 = vmax.f32 %v3087, 0.0
        %v3146 = vmax.f32 %v3089, 0.0
        %v3147 = vmax.f32 %v3093, 0.0
        %v3148 = vmax.f32 %v3095, 0.0
        %v3149 = vmax.f32 %v3097, 0.0
        %v3150 = vmax.f32 %v3099, 0.0
        %v3151 = vmax.f32 %v3103, 0.0
        %v3152 = vmax.f32 %v3105, 0.0
        %v3153 = vmax.f32 %v3107, 0.0
        %v3154 = vmax.f32 %v3109, 0.0
        %v3155 = vmax.f32 %v3113, 0.0
        %v3156 = vmax.f32 %v3115, 0.0
        %v3157 = vmax.f32 %v3117, 0.0
        %v3158 = vmax.f32 %v3119, 0.0
        %v3159 = vmax.f32 %v3123, 0.0
        %v3160 = vmax.f32 %v3125, 0.0
        %v3161 = vmax.f32 %v3127, 0.0
        %v3162 = vmax.f32 %v3129, 0.0
        %v3163 = vpack.c.bf16 %v3133, %v3131
        %v3164 = vpack.c.bf16 %v3134, %v3132
        %v3165 = vpack.c.bf16 %v3137, %v3135
        %v3166 = vpack.c.bf16 %v3138, %v3136
        %v3167 = vpack.c.bf16 %v3141, %v3139
        %v3168 = vpack.c.bf16 %v3142, %v3140
        %v3169 = vpack.c.bf16 %v3145, %v3143
        %v3170 = vpack.c.bf16 %v3146, %v3144
        %v3171 = vpack.c.bf16 %v3149, %v3147
        %v3172 = vpack.c.bf16 %v3150, %v3148
        %v3173 = vpack.c.bf16 %v3153, %v3151
        %v3174 = vpack.c.bf16 %v3154, %v3152
        %v3175 = vpack.c.bf16 %v3157, %v3155
        %v3176 = vpack.c.bf16 %v3158, %v3156
        %v3177 = vpack.c.bf16 %v3161, %v3159
        %v3178 = vpack.c.bf16 %v3162, %v3160
        %s3179 = scalar_lea.vmem %s3, 1536
        %v3180 = vld [vmem:[%s3179] sm:$0xff]
        %v3181 = vld [vmem:[%s3179 + $0x8] sm:$0xff]
        %v3182 = vld [vmem:[%s3179 + $0x10] sm:$0xff]
        %v3183 = vld [vmem:[%s3179 + $0x18] sm:$0xff]
        %v3184 = vld [vmem:[%s3179 + $0x20] sm:$0xff]
        %v3185 = vld [vmem:[%s3179 + $0x28] sm:$0xff]
        %v3186 = vld [vmem:[%s3179 + $0x30] sm:$0xff]
        %v3187 = vld [vmem:[%s3179 + $0x38] sm:$0xff]
        %v3188 = vld [vmem:[%s3179 + $0x40] sm:$0xff]
        %v3189 = vld [vmem:[%s3179 + $0x48] sm:$0xff]
        %v3190 = vld [vmem:[%s3179 + $0x50] sm:$0xff]
        %v3191 = vld [vmem:[%s3179 + $0x58] sm:$0xff]
        %v3192 = vld [vmem:[%s3179 + $0x60] sm:$0xff]
        %v3193 = vld [vmem:[%s3179 + $0x68] sm:$0xff]
        %v3194 = vld [vmem:[%s3179 + $0x70] sm:$0xff]
        %v3195 = vld [vmem:[%s3179 + $0x78] sm:$0xff]
        %v3196 = vld [vmem:[%s3179 + $0x80] sm:$0xff]
        %v3197 = vld [vmem:[%s3179 + $0x88] sm:$0xff]
        %v3198 = vld [vmem:[%s3179 + $0x90] sm:$0xff]
        %v3199 = vld [vmem:[%s3179 + $0x98] sm:$0xff]
        %v3200 = vld [vmem:[%s3179 + $0xa0] sm:$0xff]
        %v3201 = vld [vmem:[%s3179 + $0xa8] sm:$0xff]
        %v3202 = vld [vmem:[%s3179 + $0xb0] sm:$0xff]
        %v3203 = vld [vmem:[%s3179 + $0xb8] sm:$0xff]
        %v3204 = vld [vmem:[%s3179 + $0xc0] sm:$0xff]
        %v3205 = vld [vmem:[%s3179 + $0xc8] sm:$0xff]
        %v3206 = vld [vmem:[%s3179 + $0xd0] sm:$0xff]
        %v3207 = vld [vmem:[%s3179 + $0xd8] sm:$0xff]
        %v3208 = vld [vmem:[%s3179 + $0xe0] sm:$0xff]
        %v3209 = vld [vmem:[%s3179 + $0xe8] sm:$0xff]
        %v3210 = vld [vmem:[%s3179 + $0xf0] sm:$0xff]
        %v3211 = vld [vmem:[%s3179 + $0xf8] sm:$0xff]
        %s3212 = scalar_lea.vmem %s4, 12
        %v3213 = vld [vmem:[%s3212] sm:$0x3]
        %v3215 = vlaneseq
        %v3216 = vshrl.u32 %v3215, 7
        %v3217 = vsub.s32 0, %v3216
        %v3218 = vrot.slane %v3213, %v3217
        %v3219 = vlaneseq
        %v3220 = vshrl.u32 %v3219, 7
        %v3221 = vsub.s32 1, %v3220
        %v3222 = vrot.slane %v3213, %v3221
        %v3257 = vunpack.c.l.b16 %v3180
        %v3258 = vunpack.c.h.b16 %v3180
        %v3259 = vunpack.c.l.b16 %v3181
        %v3260 = vunpack.c.h.b16 %v3181
        %v3261 = vunpack.c.l.b16 %v3182
        %v3262 = vunpack.c.h.b16 %v3182
        %v3263 = vunpack.c.l.b16 %v3183
        %v3264 = vunpack.c.h.b16 %v3183
        %v3265 = vunpack.c.l.b16 %v3184
        %v3266 = vunpack.c.h.b16 %v3184
        %v3267 = vunpack.c.l.b16 %v3185
        %v3268 = vunpack.c.h.b16 %v3185
        %v3269 = vunpack.c.l.b16 %v3186
        %v3270 = vunpack.c.h.b16 %v3186
        %v3271 = vunpack.c.l.b16 %v3187
        %v3272 = vunpack.c.h.b16 %v3187
        %v3273 = vunpack.c.l.b16 %v3188
        %v3274 = vunpack.c.h.b16 %v3188
        %v3275 = vunpack.c.l.b16 %v3189
        %v3276 = vunpack.c.h.b16 %v3189
        %v3277 = vunpack.c.l.b16 %v3190
        %v3278 = vunpack.c.h.b16 %v3190
        %v3279 = vunpack.c.l.b16 %v3191
        %v3280 = vunpack.c.h.b16 %v3191
        %v3281 = vunpack.c.l.b16 %v3192
        %v3282 = vunpack.c.h.b16 %v3192
        %v3283 = vunpack.c.l.b16 %v3193
        %v3284 = vunpack.c.h.b16 %v3193
        %v3285 = vunpack.c.l.b16 %v3194
        %v3286 = vunpack.c.h.b16 %v3194
        %v3287 = vunpack.c.l.b16 %v3195
        %v3288 = vunpack.c.h.b16 %v3195
        %v3289 = vunpack.c.l.b16 %v3196
        %v3290 = vunpack.c.h.b16 %v3196
        %v3291 = vunpack.c.l.b16 %v3197
        %v3292 = vunpack.c.h.b16 %v3197
        %v3293 = vunpack.c.l.b16 %v3198
        %v3294 = vunpack.c.h.b16 %v3198
        %v3295 = vunpack.c.l.b16 %v3199
        %v3296 = vunpack.c.h.b16 %v3199
        %v3297 = vunpack.c.l.b16 %v3200
        %v3298 = vunpack.c.h.b16 %v3200
        %v3299 = vunpack.c.l.b16 %v3201
        %v3300 = vunpack.c.h.b16 %v3201
        %v3301 = vunpack.c.l.b16 %v3202
        %v3302 = vunpack.c.h.b16 %v3202
        %v3303 = vunpack.c.l.b16 %v3203
        %v3304 = vunpack.c.h.b16 %v3203
        %v3305 = vunpack.c.l.b16 %v3204
        %v3306 = vunpack.c.h.b16 %v3204
        %v3307 = vunpack.c.l.b16 %v3205
        %v3308 = vunpack.c.h.b16 %v3205
        %v3309 = vunpack.c.l.b16 %v3206
        %v3310 = vunpack.c.h.b16 %v3206
        %v3311 = vunpack.c.l.b16 %v3207
        %v3312 = vunpack.c.h.b16 %v3207
        %v3313 = vunpack.c.l.b16 %v3208
        %v3314 = vunpack.c.h.b16 %v3208
        %v3315 = vunpack.c.l.b16 %v3209
        %v3316 = vunpack.c.h.b16 %v3209
        %v3317 = vunpack.c.l.b16 %v3210
        %v3318 = vunpack.c.h.b16 %v3210
        %v3319 = vunpack.c.l.b16 %v3211
        %v3320 = vunpack.c.h.b16 %v3211
        %v3321 = vpack.c.b16 %v3259, %v3257
        %v3322 = vpack.c.b16 %v3260, %v3258
        %v3323 = vpack.c.b16 %v3263, %v3261
        %v3324 = vpack.c.b16 %v3264, %v3262
        %v3325 = vpack.c.b16 %v3267, %v3265
        %v3326 = vpack.c.b16 %v3268, %v3266
        %v3327 = vpack.c.b16 %v3271, %v3269
        %v3328 = vpack.c.b16 %v3272, %v3270
        %v3329 = vpack.c.b16 %v3275, %v3273
        %v3330 = vpack.c.b16 %v3276, %v3274
        %v3331 = vpack.c.b16 %v3279, %v3277
        %v3332 = vpack.c.b16 %v3280, %v3278
        %v3333 = vpack.c.b16 %v3283, %v3281
        %v3334 = vpack.c.b16 %v3284, %v3282
        %v3335 = vpack.c.b16 %v3287, %v3285
        %v3336 = vpack.c.b16 %v3288, %v3286
        %v3337 = vpack.c.b16 %v3291, %v3289
        %v3338 = vpack.c.b16 %v3292, %v3290
        %v3339 = vpack.c.b16 %v3295, %v3293
        %v3340 = vpack.c.b16 %v3296, %v3294
        %v3341 = vpack.c.b16 %v3299, %v3297
        %v3342 = vpack.c.b16 %v3300, %v3298
        %v3343 = vpack.c.b16 %v3303, %v3301
        %v3344 = vpack.c.b16 %v3304, %v3302
        %v3345 = vpack.c.b16 %v3307, %v3305
        %v3346 = vpack.c.b16 %v3308, %v3306
        %v3347 = vpack.c.b16 %v3311, %v3309
        %v3348 = vpack.c.b16 %v3312, %v3310
        %v3349 = vpack.c.b16 %v3315, %v3313
        %v3350 = vpack.c.b16 %v3316, %v3314
        %v3351 = vpack.c.b16 %v3319, %v3317
        %v3352 = vpack.c.b16 %v3320, %v3318
        %3385 = vmatprep.subr.bf16.mxu0 %v3322
        %3386 = vmatpush1.bf16.msra.mxu0 %v3321
        %3387 = vmatprep.subr.bf16.mxu0 %v3324
        %3388 = vmatpush1.bf16.msra.mxu0 %v3323
        %3389 = vmatprep.subr.bf16.mxu0 %v3326
        %3390 = vmatpush1.bf16.msra.mxu0 %v3325
        %3391 = vmatprep.subr.bf16.mxu0 %v3328
        %3392 = vmatpush1.bf16.msra.mxu0 %v3327
        %3393 = vmatprep.subr.bf16.mxu0 %v3330
        %3394 = vmatpush1.bf16.msra.mxu0 %v3329
        %3395 = vmatprep.subr.bf16.mxu0 %v3332
        %3396 = vmatpush1.bf16.msra.mxu0 %v3331
        %3397 = vmatprep.subr.bf16.mxu0 %v3334
        %3398 = vmatpush1.bf16.msra.mxu0 %v3333
        %3399 = vmatprep.subr.bf16.mxu0 %v3336
        %3400 = vmatpush1.bf16.msra.mxu0 %v3335
        %3401 = vmatprep.subr.bf16.mxu0 %v3338
        %3402 = vmatpush1.bf16.msra.mxu0 %v3337
        %3403 = vmatprep.subr.bf16.mxu0 %v3340
        %3404 = vmatpush1.bf16.msra.mxu0 %v3339
        %3405 = vmatprep.subr.bf16.mxu0 %v3342
        %3406 = vmatpush1.bf16.msra.mxu0 %v3341
        %3407 = vmatprep.subr.bf16.mxu0 %v3344
        %3408 = vmatpush1.bf16.msra.mxu0 %v3343
        %3409 = vmatprep.subr.bf16.mxu0 %v3346
        %3410 = vmatpush1.bf16.msra.mxu0 %v3345
        %3411 = vmatprep.subr.bf16.mxu0 %v3348
        %3412 = vmatpush1.bf16.msra.mxu0 %v3347
        %3413 = vmatprep.subr.bf16.mxu0 %v3350
        %3414 = vmatpush1.bf16.msra.mxu0 %v3349
        %3415 = vmatprep.subr.bf16.mxu0 %v3352
        %3416 = vmatpush1.bf16.msra.mxu0 %v3351
        %3417 = vmatprep.mubr.bf16.mxu0 %v3164
        %3418 = vmatmul.mubr.bf16.gmra.mrb[0].mxu0 %v3163
        %v3419 = vpop.f32.mrb[0].mxu0
        %v3420 = vadd.f32 %v3218, %v3419
        %v3421 = vpop.f32.mrb[0].mxu0
        %v3422 = vadd.f32 %v3222, %v3421
        %v3423 = vpop.f32.mrb[0].mxu0
        %v3424 = vadd.f32 %v3218, %v3423
        %v3425 = vpop.f32.mrb[0].mxu0
        %v3426 = vadd.f32 %v3222, %v3425
        %3427 = vmatprep.mubr.bf16.mxu0 %v3166
        %3428 = vmatmul.mubr.bf16.gmra.mrb[0].mxu0 %v3165
        %v3429 = vpop.f32.mrb[0].mxu0
        %v3430 = vadd.f32 %v3218, %v3429
        %v3431 = vpop.f32.mrb[0].mxu0
        %v3432 = vadd.f32 %v3222, %v3431
        %v3433 = vpop.f32.mrb[0].mxu0
        %v3434 = vadd.f32 %v3218, %v3433
        %v3435 = vpop.f32.mrb[0].mxu0
        %v3436 = vadd.f32 %v3222, %v3435
        %3437 = vmatprep.mubr.bf16.mxu0 %v3168
        %3438 = vmatmul.mubr.bf16.gmra.mrb[0].mxu0 %v3167
        %v3439 = vpop.f32.mrb[0].mxu0
        %v3440 = vadd.f32 %v3218, %v3439
        %v3441 = vpop.f32.mrb[0].mxu0
        %v3442 = vadd.f32 %v3222, %v3441
        %v3443 = vpop.f32.mrb[0].mxu0
        %v3444 = vadd.f32 %v3218, %v3443
        %v3445 = vpop.f32.mrb[0].mxu0
        %v3446 = vadd.f32 %v3222, %v3445
        %3447 = vmatprep.mubr.bf16.mxu0 %v3170
        %3448 = vmatmul.mubr.bf16.gmra.mrb[0].mxu0 %v3169
        %v3449 = vpop.f32.mrb[0].mxu0
        %v3450 = vadd.f32 %v3218, %v3449
        %v3451 = vpop.f32.mrb[0].mxu0
        %v3452 = vadd.f32 %v3222, %v3451
        %v3453 = vpop.f32.mrb[0].mxu0
        %v3454 = vadd.f32 %v3218, %v3453
        %v3455 = vpop.f32.mrb[0].mxu0
        %v3456 = vadd.f32 %v3222, %v3455
        %3457 = vmatprep.mubr.bf16.mxu0 %v3172
        %3458 = vmatmul.mubr.bf16.gmra.mrb[0].mxu0 %v3171
        %v3459 = vpop.f32.mrb[0].mxu0
        %v3460 = vadd.f32 %v3218, %v3459
        %v3461 = vpop.f32.mrb[0].mxu0
        %v3462 = vadd.f32 %v3222, %v3461
        %v3463 = vpop.f32.mrb[0].mxu0
        %v3464 = vadd.f32 %v3218, %v3463
        %v3465 = vpop.f32.mrb[0].mxu0
        %v3466 = vadd.f32 %v3222, %v3465
        %3467 = vmatprep.mubr.bf16.mxu0 %v3174
        %3468 = vmatmul.mubr.bf16.gmra.mrb[0].mxu0 %v3173
        %v3469 = vpop.f32.mrb[0].mxu0
        %v3470 = vadd.f32 %v3218, %v3469
        %v3471 = vpop.f32.mrb[0].mxu0
        %v3472 = vadd.f32 %v3222, %v3471
        %v3473 = vpop.f32.mrb[0].mxu0
        %v3474 = vadd.f32 %v3218, %v3473
        %v3475 = vpop.f32.mrb[0].mxu0
        %v3476 = vadd.f32 %v3222, %v3475
        %3477 = vmatprep.mubr.bf16.mxu0 %v3176
        %3478 = vmatmul.mubr.bf16.gmra.mrb[0].mxu0 %v3175
        %v3479 = vpop.f32.mrb[0].mxu0
        %v3480 = vadd.f32 %v3218, %v3479
        %v3481 = vpop.f32.mrb[0].mxu0
        %v3482 = vadd.f32 %v3222, %v3481
        %v3483 = vpop.f32.mrb[0].mxu0
        %v3484 = vadd.f32 %v3218, %v3483
        %v3485 = vpop.f32.mrb[0].mxu0
        %v3486 = vadd.f32 %v3222, %v3485
        %3487 = vmatprep.mubr.bf16.mxu0 %v3178
        %3488 = vmatmul.mubr.bf16.gmra.mrb[0].mxu0 %v3177
        %v3489 = vpop.f32.mrb[0].mxu0
        %v3490 = vadd.f32 %v3218, %v3489
        %v3491 = vpop.f32.mrb[0].mxu0
        %v3492 = vadd.f32 %v3222, %v3491
        %v3493 = vpop.f32.mrb[0].mxu0
        %v3494 = vadd.f32 %v3218, %v3493
        %v3495 = vpop.f32.mrb[0].mxu0
        %v3496 = vadd.f32 %v3222, %v3495
        %3497 = vdwg.mxu0
        %v3498 = vmax.f32 %v3420, 0.0
        %v3499 = vmax.f32 %v3422, 0.0
        %v3500 = vmax.f32 %v3424, 0.0
        %v3501 = vmax.f32 %v3426, 0.0
        %v3502 = vmax.f32 %v3430, 0.0
        %v3503 = vmax.f32 %v3432, 0.0
        %v3504 = vmax.f32 %v3434, 0.0
        %v3505 = vmax.f32 %v3436, 0.0
        %v3506 = vmax.f32 %v3440, 0.0
        %v3507 = vmax.f32 %v3442, 0.0
        %v3508 = vmax.f32 %v3444, 0.0
        %v3509 = vmax.f32 %v3446, 0.0
        %v3510 = vmax.f32 %v3450, 0.0
        %v3511 = vmax.f32 %v3452, 0.0
        %v3512 = vmax.f32 %v3454, 0.0
        %v3513 = vmax.f32 %v3456, 0.0
        %v3514 = vmax.f32 %v3460, 0.0
        %v3515 = vmax.f32 %v3462, 0.0
        %v3516 = vmax.f32 %v3464, 0.0
        %v3517 = vmax.f32 %v3466, 0.0
        %v3518 = vmax.f32 %v3470, 0.0
        %v3519 = vmax.f32 %v3472, 0.0
        %v3520 = vmax.f32 %v3474, 0.0
        %v3521 = vmax.f32 %v3476, 0.0
        %v3522 = vmax.f32 %v3480, 0.0
        %v3523 = vmax.f32 %v3482, 0.0
        %v3524 = vmax.f32 %v3484, 0.0
        %v3525 = vmax.f32 %v3486, 0.0
        %v3526 = vmax.f32 %v3490, 0.0
        %v3527 = vmax.f32 %v3492, 0.0
        %v3528 = vmax.f32 %v3494, 0.0
        %v3529 = vmax.f32 %v3496, 0.0
        %v3530 = vpack.c.bf16 %v3500, %v3498
        %v3531 = vpack.c.bf16 %v3501, %v3499
        %v3532 = vpack.c.bf16 %v3504, %v3502
        %v3533 = vpack.c.bf16 %v3505, %v3503
        %v3534 = vpack.c.bf16 %v3508, %v3506
        %v3535 = vpack.c.bf16 %v3509, %v3507
        %v3536 = vpack.c.bf16 %v3512, %v3510
        %v3537 = vpack.c.bf16 %v3513, %v3511
        %v3538 = vpack.c.bf16 %v3516, %v3514
        %v3539 = vpack.c.bf16 %v3517, %v3515
        %v3540 = vpack.c.bf16 %v3520, %v3518
        %v3541 = vpack.c.bf16 %v3521, %v3519
        %v3542 = vpack.c.bf16 %v3524, %v3522
        %v3543 = vpack.c.bf16 %v3525, %v3523
        %v3544 = vpack.c.bf16 %v3528, %v3526
        %v3545 = vpack.c.bf16 %v3529, %v3527
        %s3546 = scalar_lea.vmem %s3, 1792
        %v3547 = vld [vmem:[%s3546] sm:$0xff]
        %v3548 = vld [vmem:[%s3546 + $0x8] sm:$0xff]
        %v3549 = vld [vmem:[%s3546 + $0x10] sm:$0xff]
        %v3550 = vld [vmem:[%s3546 + $0x18] sm:$0xff]
        %v3551 = vld [vmem:[%s3546 + $0x20] sm:$0xff]
        %v3552 = vld [vmem:[%s3546 + $0x28] sm:$0xff]
        %v3553 = vld [vmem:[%s3546 + $0x30] sm:$0xff]
        %v3554 = vld [vmem:[%s3546 + $0x38] sm:$0xff]
        %v3555 = vld [vmem:[%s3546 + $0x40] sm:$0xff]
        %v3556 = vld [vmem:[%s3546 + $0x48] sm:$0xff]
        %v3557 = vld [vmem:[%s3546 + $0x50] sm:$0xff]
        %v3558 = vld [vmem:[%s3546 + $0x58] sm:$0xff]
        %v3559 = vld [vmem:[%s3546 + $0x60] sm:$0xff]
        %v3560 = vld [vmem:[%s3546 + $0x68] sm:$0xff]
        %v3561 = vld [vmem:[%s3546 + $0x70] sm:$0xff]
        %v3562 = vld [vmem:[%s3546 + $0x78] sm:$0xff]
        %v3563 = vld [vmem:[%s3546 + $0x80] sm:$0xff]
        %v3564 = vld [vmem:[%s3546 + $0x88] sm:$0xff]
        %v3565 = vld [vmem:[%s3546 + $0x90] sm:$0xff]
        %v3566 = vld [vmem:[%s3546 + $0x98] sm:$0xff]
        %v3567 = vld [vmem:[%s3546 + $0xa0] sm:$0xff]
        %v3568 = vld [vmem:[%s3546 + $0xa8] sm:$0xff]
        %v3569 = vld [vmem:[%s3546 + $0xb0] sm:$0xff]
        %v3570 = vld [vmem:[%s3546 + $0xb8] sm:$0xff]
        %v3571 = vld [vmem:[%s3546 + $0xc0] sm:$0xff]
        %v3572 = vld [vmem:[%s3546 + $0xc8] sm:$0xff]
        %v3573 = vld [vmem:[%s3546 + $0xd0] sm:$0xff]
        %v3574 = vld [vmem:[%s3546 + $0xd8] sm:$0xff]
        %v3575 = vld [vmem:[%s3546 + $0xe0] sm:$0xff]
        %v3576 = vld [vmem:[%s3546 + $0xe8] sm:$0xff]
        %v3577 = vld [vmem:[%s3546 + $0xf0] sm:$0xff]
        %v3578 = vld [vmem:[%s3546 + $0xf8] sm:$0xff]
        %s3579 = scalar_lea.vmem %s4, 14
        %v3580 = vld [vmem:[%s3579] sm:$0x3]
        %v3582 = vlaneseq
        %v3583 = vshrl.u32 %v3582, 7
        %v3584 = vsub.s32 0, %v3583
        %v3585 = vrot.slane %v3580, %v3584
        %v3586 = vlaneseq
        %v3587 = vshrl.u32 %v3586, 7
        %v3588 = vsub.s32 1, %v3587
        %v3589 = vrot.slane %v3580, %v3588
        %v3624 = vunpack.c.l.b16 %v3547
        %v3625 = vunpack.c.h.b16 %v3547
        %v3626 = vunpack.c.l.b16 %v3548
        %v3627 = vunpack.c.h.b16 %v3548
        %v3628 = vunpack.c.l.b16 %v3549
        %v3629 = vunpack.c.h.b16 %v3549
        %v3630 = vunpack.c.l.b16 %v3550
        %v3631 = vunpack.c.h.b16 %v3550
        %v3632 = vunpack.c.l.b16 %v3551
        %v3633 = vunpack.c.h.b16 %v3551
        %v3634 = vunpack.c.l.b16 %v3552
        %v3635 = vunpack.c.h.b16 %v3552
        %v3636 = vunpack.c.l.b16 %v3553
        %v3637 = vunpack.c.h.b16 %v3553
        %v3638 = vunpack.c.l.b16 %v3554
        %v3639 = vunpack.c.h.b16 %v3554
        %v3640 = vunpack.c.l.b16 %v3555
        %v3641 = vunpack.c.h.b16 %v3555
        %v3642 = vunpack.c.l.b16 %v3556
        %v3643 = vunpack.c.h.b16 %v3556
        %v3644 = vunpack.c.l.b16 %v3557
        %v3645 = vunpack.c.h.b16 %v3557
        %v3646 = vunpack.c.l.b16 %v3558
        %v3647 = vunpack.c.h.b16 %v3558
        %v3648 = vunpack.c.l.b16 %v3559
        %v3649 = vunpack.c.h.b16 %v3559
        %v3650 = vunpack.c.l.b16 %v3560
        %v3651 = vunpack.c.h.b16 %v3560
        %v3652 = vunpack.c.l.b16 %v3561
        %v3653 = vunpack.c.h.b16 %v3561
        %v3654 = vunpack.c.l.b16 %v3562
        %v3655 = vunpack.c.h.b16 %v3562
        %v3656 = vunpack.c.l.b16 %v3563
        %v3657 = vunpack.c.h.b16 %v3563
        %v3658 = vunpack.c.l.b16 %v3564
        %v3659 = vunpack.c.h.b16 %v3564
        %v3660 = vunpack.c.l.b16 %v3565
        %v3661 = vunpack.c.h.b16 %v3565
        %v3662 = vunpack.c.l.b16 %v3566
        %v3663 = vunpack.c.h.b16 %v3566
        %v3664 = vunpack.c.l.b16 %v3567
        %v3665 = vunpack.c.h.b16 %v3567
        %v3666 = vunpack.c.l.b16 %v3568
        %v3667 = vunpack.c.h.b16 %v3568
        %v3668 = vunpack.c.l.b16 %v3569
        %v3669 = vunpack.c.h.b16 %v3569
        %v3670 = vunpack.c.l.b16 %v3570
        %v3671 = vunpack.c.h.b16 %v3570
        %v3672 = vunpack.c.l.b16 %v3571
        %v3673 = vunpack.c.h.b16 %v3571
        %v3674 = vunpack.c.l.b16 %v3572
        %v3675 = vunpack.c.h.b16 %v3572
        %v3676 = vunpack.c.l.b16 %v3573
        %v3677 = vunpack.c.h.b16 %v3573
        %v3678 = vunpack.c.l.b16 %v3574
        %v3679 = vunpack.c.h.b16 %v3574
        %v3680 = vunpack.c.l.b16 %v3575
        %v3681 = vunpack.c.h.b16 %v3575
        %v3682 = vunpack.c.l.b16 %v3576
        %v3683 = vunpack.c.h.b16 %v3576
        %v3684 = vunpack.c.l.b16 %v3577
        %v3685 = vunpack.c.h.b16 %v3577
        %v3686 = vunpack.c.l.b16 %v3578
        %v3687 = vunpack.c.h.b16 %v3578
        %v3688 = vpack.c.b16 %v3626, %v3624
        %v3689 = vpack.c.b16 %v3627, %v3625
        %v3690 = vpack.c.b16 %v3630, %v3628
        %v3691 = vpack.c.b16 %v3631, %v3629
        %v3692 = vpack.c.b16 %v3634, %v3632
        %v3693 = vpack.c.b16 %v3635, %v3633
        %v3694 = vpack.c.b16 %v3638, %v3636
        %v3695 = vpack.c.b16 %v3639, %v3637
        %v3696 = vpack.c.b16 %v3642, %v3640
        %v3697 = vpack.c.b16 %v3643, %v3641
        %v3698 = vpack.c.b16 %v3646, %v3644
        %v3699 = vpack.c.b16 %v3647, %v3645
        %v3700 = vpack.c.b16 %v3650, %v3648
        %v3701 = vpack.c.b16 %v3651, %v3649
        %v3702 = vpack.c.b16 %v3654, %v3652
        %v3703 = vpack.c.b16 %v3655, %v3653
        %v3704 = vpack.c.b16 %v3658, %v3656
        %v3705 = vpack.c.b16 %v3659, %v3657
        %v3706 = vpack.c.b16 %v3662, %v3660
        %v3707 = vpack.c.b16 %v3663, %v3661
        %v3708 = vpack.c.b16 %v3666, %v3664
        %v3709 = vpack.c.b16 %v3667, %v3665
        %v3710 = vpack.c.b16 %v3670, %v3668
        %v3711 = vpack.c.b16 %v3671, %v3669
        %v3712 = vpack.c.b16 %v3674, %v3672
        %v3713 = vpack.c.b16 %v3675, %v3673
        %v3714 = vpack.c.b16 %v3678, %v3676
        %v3715 = vpack.c.b16 %v3679, %v3677
        %v3716 = vpack.c.b16 %v3682, %v3680
        %v3717 = vpack.c.b16 %v3683, %v3681
        %v3718 = vpack.c.b16 %v3686, %v3684
        %v3719 = vpack.c.b16 %v3687, %v3685
        %3752 = vmatprep.subr.bf16.mxu0 %v3689
        %3753 = vmatpush1.bf16.msra.mxu0 %v3688
        %3754 = vmatprep.subr.bf16.mxu0 %v3691
        %3755 = vmatpush1.bf16.msra.mxu0 %v3690
        %3756 = vmatprep.subr.bf16.mxu0 %v3693
        %3757 = vmatpush1.bf16.msra.mxu0 %v3692
        %3758 = vmatprep.subr.bf16.mxu0 %v3695
        %3759 = vmatpush1.bf16.msra.mxu0 %v3694
        %3760 = vmatprep.subr.bf16.mxu0 %v3697
        %3761 = vmatpush1.bf16.msra.mxu0 %v3696
        %3762 = vmatprep.subr.bf16.mxu0 %v3699
        %3763 = vmatpush1.bf16.msra.mxu0 %v3698
        %3764 = vmatprep.subr.bf16.mxu0 %v3701
        %3765 = vmatpush1.bf16.msra.mxu0 %v3700
        %3766 = vmatprep.subr.bf16.mxu0 %v3703
        %3767 = vmatpush1.bf16.msra.mxu0 %v3702
        %3768 = vmatprep.subr.bf16.mxu0 %v3705
        %3769 = vmatpush1.bf16.msra.mxu0 %v3704
        %3770 = vmatprep.subr.bf16.mxu0 %v3707
        %3771 = vmatpush1.bf16.msra.mxu0 %v3706
        %3772 = vmatprep.subr.bf16.mxu0 %v3709
        %3773 = vmatpush1.bf16.msra.mxu0 %v3708
        %3774 = vmatprep.subr.bf16.mxu0 %v3711
        %3775 = vmatpush1.bf16.msra.mxu0 %v3710
        %3776 = vmatprep.subr.bf16.mxu0 %v3713
        %3777 = vmatpush1.bf16.msra.mxu0 %v3712
        %3778 = vmatprep.subr.bf16.mxu0 %v3715
        %3779 = vmatpush1.bf16.msra.mxu0 %v3714
        %3780 = vmatprep.subr.bf16.mxu0 %v3717
        %3781 = vmatpush1.bf16.msra.mxu0 %v3716
        %3782 = vmatprep.subr.bf16.mxu0 %v3719
        %3783 = vmatpush1.bf16.msra.mxu0 %v3718
        %3784 = vmatprep.mubr.bf16.mxu0 %v3531
        %3785 = vmatmul.mubr.bf16.gmra.mrb[0].mxu0 %v3530
        %v3786 = vpop.f32.mrb[0].mxu0
        %v3787 = vadd.f32 %v3585, %v3786
        %v3788 = vpop.f32.mrb[0].mxu0
        %v3789 = vadd.f32 %v3589, %v3788
        %v3790 = vpop.f32.mrb[0].mxu0
        %v3791 = vadd.f32 %v3585, %v3790
        %v3792 = vpop.f32.mrb[0].mxu0
        %v3793 = vadd.f32 %v3589, %v3792
        %3794 = vmatprep.mubr.bf16.mxu0 %v3533
        %3795 = vmatmul.mubr.bf16.gmra.mrb[0].mxu0 %v3532
        %v3796 = vpop.f32.mrb[0].mxu0
        %v3797 = vadd.f32 %v3585, %v3796
        %v3798 = vpop.f32.mrb[0].mxu0
        %v3799 = vadd.f32 %v3589, %v3798
        %v3800 = vpop.f32.mrb[0].mxu0
        %v3801 = vadd.f32 %v3585, %v3800
        %v3802 = vpop.f32.mrb[0].mxu0
        %v3803 = vadd.f32 %v3589, %v3802
        %3804 = vmatprep.mubr.bf16.mxu0 %v3535
        %3805 = vmatmul.mubr.bf16.gmra.mrb[0].mxu0 %v3534
        %v3806 = vpop.f32.mrb[0].mxu0
        %v3807 = vadd.f32 %v3585, %v3806
        %v3808 = vpop.f32.mrb[0].mxu0
        %v3809 = vadd.f32 %v3589, %v3808
        %v3810 = vpop.f32.mrb[0].mxu0
        %v3811 = vadd.f32 %v3585, %v3810
        %v3812 = vpop.f32.mrb[0].mxu0
        %v3813 = vadd.f32 %v3589, %v3812
        %3814 = vmatprep.mubr.bf16.mxu0 %v3537
        %3815 = vmatmul.mubr.bf16.gmra.mrb[0].mxu0 %v3536
        %v3816 = vpop.f32.mrb[0].mxu0
        %v3817 = vadd.f32 %v3585, %v3816
        %v3818 = vpop.f32.mrb[0].mxu0
        %v3819 = vadd.f32 %v3589, %v3818
        %v3820 = vpop.f32.mrb[0].mxu0
        %v3821 = vadd.f32 %v3585, %v3820
        %v3822 = vpop.f32.mrb[0].mxu0
        %v3823 = vadd.f32 %v3589, %v3822
        %3824 = vmatprep.mubr.bf16.mxu0 %v3539
        %3825 = vmatmul.mubr.bf16.gmra.mrb[0].mxu0 %v3538
        %v3826 = vpop.f32.mrb[0].mxu0
        %v3827 = vadd.f32 %v3585, %v3826
        %v3828 = vpop.f32.mrb[0].mxu0
        %v3829 = vadd.f32 %v3589, %v3828
        %v3830 = vpop.f32.mrb[0].mxu0
        %v3831 = vadd.f32 %v3585, %v3830
        %v3832 = vpop.f32.mrb[0].mxu0
        %v3833 = vadd.f32 %v3589, %v3832
        %3834 = vmatprep.mubr.bf16.mxu0 %v3541
        %3835 = vmatmul.mubr.bf16.gmra.mrb[0].mxu0 %v3540
        %v3836 = vpop.f32.mrb[0].mxu0
        %v3837 = vadd.f32 %v3585, %v3836
        %v3838 = vpop.f32.mrb[0].mxu0
        %v3839 = vadd.f32 %v3589, %v3838
        %v3840 = vpop.f32.mrb[0].mxu0
        %v3841 = vadd.f32 %v3585, %v3840
        %v3842 = vpop.f32.mrb[0].mxu0
        %v3843 = vadd.f32 %v3589, %v3842
        %3844 = vmatprep.mubr.bf16.mxu0 %v3543
        %3845 = vmatmul.mubr.bf16.gmra.mrb[0].mxu0 %v3542
        %v3846 = vpop.f32.mrb[0].mxu0
        %v3847 = vadd.f32 %v3585, %v3846
        %v3848 = vpop.f32.mrb[0].mxu0
        %v3849 = vadd.f32 %v3589, %v3848
        %v3850 = vpop.f32.mrb[0].mxu0
        %v3851 = vadd.f32 %v3585, %v3850
        %v3852 = vpop.f32.mrb[0].mxu0
        %v3853 = vadd.f32 %v3589, %v3852
        %3854 = vmatprep.mubr.bf16.mxu0 %v3545
        %3855 = vmatmul.mubr.bf16.gmra.mrb[0].mxu0 %v3544
        %v3856 = vpop.f32.mrb[0].mxu0
        %v3857 = vadd.f32 %v3585, %v3856
        %v3858 = vpop.f32.mrb[0].mxu0
        %v3859 = vadd.f32 %v3589, %v3858
        %v3860 = vpop.f32.mrb[0].mxu0
        %v3861 = vadd.f32 %v3585, %v3860
        %v3862 = vpop.f32.mrb[0].mxu0
        %v3863 = vadd.f32 %v3589, %v3862
        %3864 = vdwg.mxu0
        %v3865 = vmax.f32 %v3787, 0.0
        %v3866 = vmax.f32 %v3789, 0.0
        %v3867 = vmax.f32 %v3791, 0.0
        %v3868 = vmax.f32 %v3793, 0.0
        %v3869 = vmax.f32 %v3797, 0.0
        %v3870 = vmax.f32 %v3799, 0.0
        %v3871 = vmax.f32 %v3801, 0.0
        %v3872 = vmax.f32 %v3803, 0.0
        %v3873 = vmax.f32 %v3807, 0.0
        %v3874 = vmax.f32 %v3809, 0.0
        %v3875 = vmax.f32 %v3811, 0.0
        %v3876 = vmax.f32 %v3813, 0.0
        %v3877 = vmax.f32 %v3817, 0.0
        %v3878 = vmax.f32 %v3819, 0.0
        %v3879 = vmax.f32 %v3821, 0.0
        %v3880 = vmax.f32 %v3823, 0.0
        %v3881 = vmax.f32 %v3827, 0.0
        %v3882 = vmax.f32 %v3829, 0.0
        %v3883 = vmax.f32 %v3831, 0.0
        %v3884 = vmax.f32 %v3833, 0.0
        %v3885 = vmax.f32 %v3837, 0.0
        %v3886 = vmax.f32 %v3839, 0.0
        %v3887 = vmax.f32 %v3841, 0.0
        %v3888 = vmax.f32 %v3843, 0.0
        %v3889 = vmax.f32 %v3847, 0.0
        %v3890 = vmax.f32 %v3849, 0.0
        %v3891 = vmax.f32 %v3851, 0.0
        %v3892 = vmax.f32 %v3853, 0.0
        %v3893 = vmax.f32 %v3857, 0.0
        %v3894 = vmax.f32 %v3859, 0.0
        %v3895 = vmax.f32 %v3861, 0.0
        %v3896 = vmax.f32 %v3863, 0.0
        %v3897 = vpack.c.bf16 %v3867, %v3865
        %v3898 = vpack.c.bf16 %v3868, %v3866
        %v3899 = vpack.c.bf16 %v3871, %v3869
        %v3900 = vpack.c.bf16 %v3872, %v3870
        %v3901 = vpack.c.bf16 %v3875, %v3873
        %v3902 = vpack.c.bf16 %v3876, %v3874
        %v3903 = vpack.c.bf16 %v3879, %v3877
        %v3904 = vpack.c.bf16 %v3880, %v3878
        %v3905 = vpack.c.bf16 %v3883, %v3881
        %v3906 = vpack.c.bf16 %v3884, %v3882
        %v3907 = vpack.c.bf16 %v3887, %v3885
        %v3908 = vpack.c.bf16 %v3888, %v3886
        %v3909 = vpack.c.bf16 %v3891, %v3889
        %v3910 = vpack.c.bf16 %v3892, %v3890
        %v3911 = vpack.c.bf16 %v3895, %v3893
        %v3912 = vpack.c.bf16 %v3896, %v3894
        %s3913 = scalar_lea.vmem %s3, 2048
        %v3914 = vld [vmem:[%s3913] sm:$0xff]
        %v3915 = vld [vmem:[%s3913 + $0x8] sm:$0xff]
        %v3916 = vld [vmem:[%s3913 + $0x10] sm:$0xff]
        %v3917 = vld [vmem:[%s3913 + $0x18] sm:$0xff]
        %v3918 = vld [vmem:[%s3913 + $0x20] sm:$0xff]
        %v3919 = vld [vmem:[%s3913 + $0x28] sm:$0xff]
        %v3920 = vld [vmem:[%s3913 + $0x30] sm:$0xff]
        %v3921 = vld [vmem:[%s3913 + $0x38] sm:$0xff]
        %v3922 = vld [vmem:[%s3913 + $0x40] sm:$0xff]
        %v3923 = vld [vmem:[%s3913 + $0x48] sm:$0xff]
        %v3924 = vld [vmem:[%s3913 + $0x50] sm:$0xff]
        %v3925 = vld [vmem:[%s3913 + $0x58] sm:$0xff]
        %v3926 = vld [vmem:[%s3913 + $0x60] sm:$0xff]
        %v3927 = vld [vmem:[%s3913 + $0x68] sm:$0xff]
        %v3928 = vld [vmem:[%s3913 + $0x70] sm:$0xff]
        %v3929 = vld [vmem:[%s3913 + $0x78] sm:$0xff]
        %v3930 = vld [vmem:[%s3913 + $0x80] sm:$0xff]
        %v3931 = vld [vmem:[%s3913 + $0x88] sm:$0xff]
        %v3932 = vld [vmem:[%s3913 + $0x90] sm:$0xff]
        %v3933 = vld [vmem:[%s3913 + $0x98] sm:$0xff]
        %v3934 = vld [vmem:[%s3913 + $0xa0] sm:$0xff]
        %v3935 = vld [vmem:[%s3913 + $0xa8] sm:$0xff]
        %v3936 = vld [vmem:[%s3913 + $0xb0] sm:$0xff]
        %v3937 = vld [vmem:[%s3913 + $0xb8] sm:$0xff]
        %v3938 = vld [vmem:[%s3913 + $0xc0] sm:$0xff]
        %v3939 = vld [vmem:[%s3913 + $0xc8] sm:$0xff]
        %v3940 = vld [vmem:[%s3913 + $0xd0] sm:$0xff]
        %v3941 = vld [vmem:[%s3913 + $0xd8] sm:$0xff]
        %v3942 = vld [vmem:[%s3913 + $0xe0] sm:$0xff]
        %v3943 = vld [vmem:[%s3913 + $0xe8] sm:$0xff]
        %v3944 = vld [vmem:[%s3913 + $0xf0] sm:$0xff]
        %v3945 = vld [vmem:[%s3913 + $0xf8] sm:$0xff]
        %s3946 = scalar_lea.vmem %s4, 16
        %v3947 = vld [vmem:[%s3946] sm:$0x3]
        %v3949 = vlaneseq
        %v3950 = vshrl.u32 %v3949, 7
        %v3951 = vsub.s32 0, %v3950
        %v3952 = vrot.slane %v3947, %v3951
        %v3986 = vunpack.c.l.b16 %v3914
        %v3987 = vunpack.c.h.b16 %v3914
        %v3988 = vunpack.c.l.b16 %v3915
        %v3989 = vunpack.c.h.b16 %v3915
        %v3990 = vunpack.c.l.b16 %v3916
        %v3991 = vunpack.c.h.b16 %v3916
        %v3992 = vunpack.c.l.b16 %v3917
        %v3993 = vunpack.c.h.b16 %v3917
        %v3994 = vunpack.c.l.b16 %v3918
        %v3995 = vunpack.c.h.b16 %v3918
        %v3996 = vunpack.c.l.b16 %v3919
        %v3997 = vunpack.c.h.b16 %v3919
        %v3998 = vunpack.c.l.b16 %v3920
        %v3999 = vunpack.c.h.b16 %v3920
        %v4000 = vunpack.c.l.b16 %v3921
        %v4001 = vunpack.c.h.b16 %v3921
        %v4002 = vunpack.c.l.b16 %v3922
        %v4003 = vunpack.c.h.b16 %v3922
        %v4004 = vunpack.c.l.b16 %v3923
        %v4005 = vunpack.c.h.b16 %v3923
        %v4006 = vunpack.c.l.b16 %v3924
        %v4007 = vunpack.c.h.b16 %v3924
        %v4008 = vunpack.c.l.b16 %v3925
        %v4009 = vunpack.c.h.b16 %v3925
        %v4010 = vunpack.c.l.b16 %v3926
        %v4011 = vunpack.c.h.b16 %v3926
        %v4012 = vunpack.c.l.b16 %v3927
        %v4013 = vunpack.c.h.b16 %v3927
        %v4014 = vunpack.c.l.b16 %v3928
        %v4015 = vunpack.c.h.b16 %v3928
        %v4016 = vunpack.c.l.b16 %v3929
        %v4017 = vunpack.c.h.b16 %v3929
        %v4018 = vunpack.c.l.b16 %v3930
        %v4019 = vunpack.c.h.b16 %v3930
        %v4020 = vunpack.c.l.b16 %v3931
        %v4021 = vunpack.c.h.b16 %v3931
        %v4022 = vunpack.c.l.b16 %v3932
        %v4023 = vunpack.c.h.b16 %v3932
        %v4024 = vunpack.c.l.b16 %v3933
        %v4025 = vunpack.c.h.b16 %v3933
        %v4026 = vunpack.c.l.b16 %v3934
        %v4027 = vunpack.c.h.b16 %v3934
        %v4028 = vunpack.c.l.b16 %v3935
        %v4029 = vunpack.c.h.b16 %v3935
        %v4030 = vunpack.c.l.b16 %v3936
        %v4031 = vunpack.c.h.b16 %v3936
        %v4032 = vunpack.c.l.b16 %v3937
        %v4033 = vunpack.c.h.b16 %v3937
        %v4034 = vunpack.c.l.b16 %v3938
        %v4035 = vunpack.c.h.b16 %v3938
        %v4036 = vunpack.c.l.b16 %v3939
        %v4037 = vunpack.c.h.b16 %v3939
        %v4038 = vunpack.c.l.b16 %v3940
        %v4039 = vunpack.c.h.b16 %v3940
        %v4040 = vunpack.c.l.b16 %v3941
        %v4041 = vunpack.c.h.b16 %v3941
        %v4042 = vunpack.c.l.b16 %v3942
        %v4043 = vunpack.c.h.b16 %v3942
        %v4044 = vunpack.c.l.b16 %v3943
        %v4045 = vunpack.c.h.b16 %v3943
        %v4046 = vunpack.c.l.b16 %v3944
        %v4047 = vunpack.c.h.b16 %v3944
        %v4048 = vunpack.c.l.b16 %v3945
        %v4049 = vunpack.c.h.b16 %v3945
        %v4050 = vpack.c.b16 %v3988, %v3986
        %v4051 = vpack.c.b16 %v3989, %v3987
        %v4052 = vpack.c.b16 %v3992, %v3990
        %v4053 = vpack.c.b16 %v3993, %v3991
        %v4054 = vpack.c.b16 %v3996, %v3994
        %v4055 = vpack.c.b16 %v3997, %v3995
        %v4056 = vpack.c.b16 %v4000, %v3998
        %v4057 = vpack.c.b16 %v4001, %v3999
        %v4058 = vpack.c.b16 %v4004, %v4002
        %v4059 = vpack.c.b16 %v4005, %v4003
        %v4060 = vpack.c.b16 %v4008, %v4006
        %v4061 = vpack.c.b16 %v4009, %v4007
        %v4062 = vpack.c.b16 %v4012, %v4010
        %v4063 = vpack.c.b16 %v4013, %v4011
        %v4064 = vpack.c.b16 %v4016, %v4014
        %v4065 = vpack.c.b16 %v4017, %v4015
        %v4066 = vpack.c.b16 %v4020, %v4018
        %v4067 = vpack.c.b16 %v4021, %v4019
        %v4068 = vpack.c.b16 %v4024, %v4022
        %v4069 = vpack.c.b16 %v4025, %v4023
        %v4070 = vpack.c.b16 %v4028, %v4026
        %v4071 = vpack.c.b16 %v4029, %v4027
        %v4072 = vpack.c.b16 %v4032, %v4030
        %v4073 = vpack.c.b16 %v4033, %v4031
        %v4074 = vpack.c.b16 %v4036, %v4034
        %v4075 = vpack.c.b16 %v4037, %v4035
        %v4076 = vpack.c.b16 %v4040, %v4038
        %v4077 = vpack.c.b16 %v4041, %v4039
        %v4078 = vpack.c.b16 %v4044, %v4042
        %v4079 = vpack.c.b16 %v4045, %v4043
        %v4080 = vpack.c.b16 %v4048, %v4046
        %v4081 = vpack.c.b16 %v4049, %v4047
        %4114 = vmatprep.subr.bf16.mxu0 %v4051
        %4115 = vmatpush1.bf16.msra.mxu0 %v4050
        %4116 = vmatprep.subr.bf16.mxu0 %v4053
        %4117 = vmatpush1.bf16.msra.mxu0 %v4052
        %4118 = vmatprep.subr.bf16.mxu0 %v4055
        %4119 = vmatpush1.bf16.msra.mxu0 %v4054
        %4120 = vmatprep.subr.bf16.mxu0 %v4057
        %4121 = vmatpush1.bf16.msra.mxu0 %v4056
        %4122 = vmatprep.subr.bf16.mxu0 %v4059
        %4123 = vmatpush1.bf16.msra.mxu0 %v4058
        %4124 = vmatprep.subr.bf16.mxu0 %v4061
        %4125 = vmatpush1.bf16.msra.mxu0 %v4060
        %4126 = vmatprep.subr.bf16.mxu0 %v4063
        %4127 = vmatpush1.bf16.msra.mxu0 %v4062
        %4128 = vmatprep.subr.bf16.mxu0 %v4065
        %4129 = vmatpush1.bf16.msra.mxu0 %v4064
        %4130 = vmatprep.subr.bf16.mxu0 %v4067
        %4131 = vmatpush1.bf16.msra.mxu0 %v4066
        %4132 = vmatprep.subr.bf16.mxu0 %v4069
        %4133 = vmatpush1.bf16.msra.mxu0 %v4068
        %4134 = vmatprep.subr.bf16.mxu0 %v4071
        %4135 = vmatpush1.bf16.msra.mxu0 %v4070
        %4136 = vmatprep.subr.bf16.mxu0 %v4073
        %4137 = vmatpush1.bf16.msra.mxu0 %v4072
        %4138 = vmatprep.subr.bf16.mxu0 %v4075
        %4139 = vmatpush1.bf16.msra.mxu0 %v4074
        %4140 = vmatprep.subr.bf16.mxu0 %v4077
        %4141 = vmatpush1.bf16.msra.mxu0 %v4076
        %4142 = vmatprep.subr.bf16.mxu0 %v4079
        %4143 = vmatpush1.bf16.msra.mxu0 %v4078
        %4144 = vmatprep.subr.bf16.mxu0 %v4081
        %4145 = vmatpush1.bf16.msra.mxu0 %v4080
        %4146 = vmatprep.mubr.bf16.mxu0 %v3898
        %4147 = vmatmul.mubr.bf16.gmra.mrb[0].mxu0 %v3897
        %v4148 = vpop.f32.mrb[0].mxu0
        %v4149 = vadd.f32 %v3952, %v4148
        %v4150 = vpop.f32.mrb[0].mxu0
        %v4151 = vpop.f32.mrb[0].mxu0
        %v4152 = vadd.f32 %v3952, %v4151
        %v4153 = vpop.f32.mrb[0].mxu0
        %4154 = vmatprep.mubr.bf16.mxu0 %v3900
        %4155 = vmatmul.mubr.bf16.gmra.mrb[0].mxu0 %v3899
        %v4156 = vpop.f32.mrb[0].mxu0
        %v4157 = vadd.f32 %v3952, %v4156
        %v4158 = vpop.f32.mrb[0].mxu0
        %v4159 = vpop.f32.mrb[0].mxu0
        %v4160 = vadd.f32 %v3952, %v4159
        %v4161 = vpop.f32.mrb[0].mxu0
        %4162 = vmatprep.mubr.bf16.mxu0 %v3902
        %4163 = vmatmul.mubr.bf16.gmra.mrb[0].mxu0 %v3901
        %v4164 = vpop.f32.mrb[0].mxu0
        %v4165 = vadd.f32 %v3952, %v4164
        %v4166 = vpop.f32.mrb[0].mxu0
        %v4167 = vpop.f32.mrb[0].mxu0
        %v4168 = vadd.f32 %v3952, %v4167
        %v4169 = vpop.f32.mrb[0].mxu0
        %4170 = vmatprep.mubr.bf16.mxu0 %v3904
        %4171 = vmatmul.mubr.bf16.gmra.mrb[0].mxu0 %v3903
        %v4172 = vpop.f32.mrb[0].mxu0
        %v4173 = vadd.f32 %v3952, %v4172
        %v4174 = vpop.f32.mrb[0].mxu0
        %v4175 = vpop.f32.mrb[0].mxu0
        %v4176 = vadd.f32 %v3952, %v4175
        %v4177 = vpop.f32.mrb[0].mxu0
        %4178 = vmatprep.mubr.bf16.mxu0 %v3906
        %4179 = vmatmul.mubr.bf16.gmra.mrb[0].mxu0 %v3905
        %v4180 = vpop.f32.mrb[0].mxu0
        %v4181 = vadd.f32 %v3952, %v4180
        %v4182 = vpop.f32.mrb[0].mxu0
        %v4183 = vpop.f32.mrb[0].mxu0
        %v4184 = vadd.f32 %v3952, %v4183
        %v4185 = vpop.f32.mrb[0].mxu0
        %4186 = vmatprep.mubr.bf16.mxu0 %v3908
        %4187 = vmatmul.mubr.bf16.gmra.mrb[0].mxu0 %v3907
        %v4188 = vpop.f32.mrb[0].mxu0
        %v4189 = vadd.f32 %v3952, %v4188
        %v4190 = vpop.f32.mrb[0].mxu0
        %v4191 = vpop.f32.mrb[0].mxu0
        %v4192 = vadd.f32 %v3952, %v4191
        %v4193 = vpop.f32.mrb[0].mxu0
        %4194 = vmatprep.mubr.bf16.mxu0 %v3910
        %4195 = vmatmul.mubr.bf16.gmra.mrb[0].mxu0 %v3909
        %v4196 = vpop.f32.mrb[0].mxu0
        %v4197 = vadd.f32 %v3952, %v4196
        %v4198 = vpop.f32.mrb[0].mxu0
        %v4199 = vpop.f32.mrb[0].mxu0
        %v4200 = vadd.f32 %v3952, %v4199
        %v4201 = vpop.f32.mrb[0].mxu0
        %4202 = vmatprep.mubr.bf16.mxu0 %v3912
        %4203 = vmatmul.mubr.bf16.gmra.mrb[0].mxu0 %v3911
        %v4204 = vpop.f32.mrb[0].mxu0
        %v4205 = vadd.f32 %v3952, %v4204
        %v4206 = vpop.f32.mrb[0].mxu0
        %v4207 = vpop.f32.mrb[0].mxu0
        %v4208 = vadd.f32 %v3952, %v4207
        %v4209 = vpop.f32.mrb[0].mxu0
        %4210 = vdwg.mxu0
        %4211 = vst [vmem:[%s235] sm:$0xff] %v4149
        %4212 = vst [vmem:[%s235 + $0x8] sm:$0xff] %v4152
        %4213 = vst [vmem:[%s235 + $0x10] sm:$0xff] %v4157
        %4214 = vst [vmem:[%s235 + $0x18] sm:$0xff] %v4160
        %4215 = vst [vmem:[%s235 + $0x20] sm:$0xff] %v4165
        %4216 = vst [vmem:[%s235 + $0x28] sm:$0xff] %v4168
        %4217 = vst [vmem:[%s235 + $0x30] sm:$0xff] %v4173
        %4218 = vst [vmem:[%s235 + $0x38] sm:$0xff] %v4176
        %4219 = vst [vmem:[%s235 + $0x40] sm:$0xff] %v4181
        %4220 = vst [vmem:[%s235 + $0x48] sm:$0xff] %v4184
        %4221 = vst [vmem:[%s235 + $0x50] sm:$0xff] %v4189
        %4222 = vst [vmem:[%s235 + $0x58] sm:$0xff] %v4192
        %4223 = vst [vmem:[%s235 + $0x60] sm:$0xff] %v4197
        %4224 = vst [vmem:[%s235 + $0x68] sm:$0xff] %v4200
        %4225 = vst [vmem:[%s235 + $0x70] sm:$0xff] %v4205
        %4226 = vst [vmem:[%s235 + $0x78] sm:$0xff] %v4208
        %s4227 = sand.u32 %s138, 1
        %s4228 = scalar_lea.sflag [#allocation4], %s4227
        %s4229 = sand.u32 %s138, 1
        %s4230 = smul.addr %s4229, 128
        %s4231 = scalar_lea.vmem [#allocation5], %s4230
        // Predicated region
        $region45: #{network_forward.1} parent=39 // pred_check
          %p4232 = pneg %p148
        $region46: #{network_forward.1} parent=39 // pred_check_branch
          %4234 = sbr.rel (%p4232) target = $region48
        $region47: #{network_forward.1} parent=39 // pred_region
          %s4235 = smul.u32 16, %s20
          %s4237 = ssub.s32 2048, 2048
          %4238 = vsyncadd %s4228, %s4237
          %s4239 = smul.addr %s4235, 128
          %s4240 = scalar_lea.hbm %s5, %s4239
          %s4241 = sshll.u32 %s4231, 4
          %s4242 = int_to_ptr.vmem [resolvable:$true] %s4241
          %4247 = dma.vmem_to_hbm [thread:$0]  %s4242, 2048, %s4240, %s4228, 128, 128, 8
        $region48: #{network_forward.1} parent=39 // pred_fallthru
          _
      $region40: #{network_forward.1} parent=5 // pred_fallthru
        _
      %p4248 = scmp.le.s32.totalorder 2, %s15
      // Predicated region
      $region49: #{network_forward.1} parent=5 // pred_check
        %p4249 = pneg %p4248
      $region50: #{network_forward.1} parent=5 // pred_check_branch
        %4251 = sbr.rel (%p4249) target = $region52
      $region51: #{network_forward.1} parent=5 // pred_region
        %s4252 = ssub.s32 %s15, 2
        // Predicated region
        $region53: #{network_forward.1} parent=51 // pred_check
          %p4253 = pneg %p154
        $region54: #{network_forward.1} parent=51 // pred_check_branch
          %4255 = sbr.rel (%p4253) target = $region56
        $region55: #{network_forward.1} parent=51 // pred_region
          %s4256 = sand.u32 %s139, 1
          %s4257 = scalar_lea.sflag [#allocation4], %s4256
          %s4258 = sand.u32 %s139, 1
          %s4259 = smul.addr %s4258, 128
          %s4260 = scalar_lea.vmem [#allocation5], %s4259
          %4261 = dma.done %s4257, 2048
        $region56: #{network_forward.1} parent=51 // pred_fallthru
          _
      $region52: #{network_forward.1} parent=5 // pred_fallthru
        _
    $region6: #{network_forward.1} parent=1 // loop_footer
      %s19 = sadd.s32 1, %s15
    $region7: #{network_forward.1} parent=1 // loop_footer_branch
      %14 = sbr.rel target = $region3
    $region8: #{network_forward.1} parent=1 // loop_exit
      _
    %4262 = vsyncpa [#allocation3], 1
    %s4263 = scalar_lea.sflag [#allocation3], 1
    %4264 = vsyncpa %s4263, 1
    %4265 = vsyncpa [#allocation4], 1
    %s4266 = scalar_lea.sflag [#allocation4], 1
    %4267 = vsyncpa %s4266, 1

</llo_original>
